<compile_context>
chip_gen: v5e
topology: v5e:2x2
jax: 0.10.0
libtpu: 0.0.40
codegen_flags: <defaults>
</compile_context>

<pallas_src>
import math
from functools import partial

import jax
import jax.numpy as jnp
from jax.experimental import pallas as pl
from jax.experimental.pallas import tpu as pltpu

STYLE_DIM = 512          # latent / style dimensionality (fixed by the module)
MAPPER_LAYERS = 4        # Mapper = PixelNorm + 4 x EqualLinear(512,512, lr_mul=0.01, fused_lrelu)
LR_MUL = 0.01
NEG_SLOPE = 0.2
FL_SCALE = math.sqrt(2.0)   # fused_leaky_relu output scale


# --------------------------------------------------------------------------
# Pallas kernel 1: per-level latent Mapper (LevelsMapper hot path)
# Grid iterates over the selected w+ indices (one independent Mapper per index).
# Weights arrive pre-transposed to (in, out), pre-scaled, bf16; biases pre-scaled f32.
# --------------------------------------------------------------------------
def _mapper_kernel(x_ref, w_ref, b_ref, o_ref):
    x = x_ref[0].astype(jnp.float32)                              # (B, 512)
    # PixelNorm
    x = x * jax.lax.rsqrt(jnp.mean(x * x, axis=1, keepdims=True) + 1e-8)
    for l in range(MAPPER_LAYERS):
        w = w_ref[0, l]                                           # (512, 512) bf16, (in, out)
        y = jnp.dot(x.astype(jnp.bfloat16), w,
                    preferred_element_type=jnp.float32)           # f32 accumulation
        y = y + b_ref[0, l]                                       # (1, 512) f32, lr_mul baked
        x = jnp.where(y >= 0.0, y, NEG_SLOPE * y) * FL_SCALE      # fused_leaky_relu
    o_ref[0] = x.astype(o_ref.dtype)


def levels_mapper(x_sel, w_prep, b_prep):
    # x_sel: (S, B, 512)   w_prep: (S, 4, 512, 512) bf16 (in,out)   b_prep: (S, 4, 1, 512) f32
    S, B, D = x_sel.shape
    return pl.pallas_call(
        _mapper_kernel,
        out_shape=jax.ShapeDtypeStruct((S, B, D), x_sel.dtype),
        grid=(S,),
        in_specs=[
            pl.BlockSpec((1, B, D), lambda s: (s, 0, 0)),
            pl.BlockSpec((1, MAPPER_LAYERS, D, D), lambda s: (s, 0, 0, 0)),
            pl.BlockSpec((1, MAPPER_LAYERS, 1, D), lambda s: (s, 0, 0, 0)),
        ],
        out_specs=pl.BlockSpec((1, B, D), lambda s: (s, 0, 0)),
        compiler_params=pltpu.CompilerParams(
            dimension_semantics=("parallel",),
            vmem_limit_bytes=32 * 1024 * 1024),
    )(x_sel, w_prep, b_prep)


# --------------------------------------------------------------------------
# Pallas kernel 2: StyleGAN2 modulated conv2d (StyledConv / ToRGB hot path)
# scale-input formulation:
#   x_mod = x * style ; y = demod * sum_t mask_t * (w_tap_t @ shift_t(x_mod))
#   (+noise) (+bias) (lrelu) (+skip)
# Grid over batch ("parallel"); one lane-dense (c_out, hw) block per step.
# --------------------------------------------------------------------------
def _shift_cols(x, off, hw):
    # out[:, p] = x[:, (p + off) mod hw]   (circular; out-of-image wraps are masked by caller)
    off = off % hw
    if off == 0:
        return x
    if hw % 128 == 0:
        return pltpu.roll(x, shift=hw - off, axis=1)      # XLU lane rotate (free-ish slot)
    # tiny sub-vreg resolutions (hw < 128): plain 2-slice shift
    return jnp.concatenate([x[:, off:], x[:, :off]], axis=1)


def _modconv_kernel(*refs, c_out, k, height, width,
                    demodulate, activate, has_noise, has_skip):
    idx = 0
    x_ref = refs[idx]; idx += 1            # (1, c_in, hw)   bf16 activation
    s_ref = refs[idx]; idx += 1            # (1, c_in, 1)    f32 style (hoisted EqualLinear)
    d_ref = None
    if demodulate:
        d_ref = refs[idx]; idx += 1        # (1, c_out, 1)   f32 demod (FL_SCALE baked if act)
    w_ref = refs[idx]; idx += 1            # (k*k, c_out, c_in) bf16, w_scale baked, per tap
    b_ref = refs[idx]; idx += 1            # (c_out, 1)      f32 (FL_SCALE baked if act)
    m_ref = None
    if k > 1:
        m_ref = refs[idx]; idx += 1        # (k*k, hw)       f32 boundary masks per tap
    n_ref = None
    if has_noise:
        n_ref = refs[idx]; idx += 1        # (1, 1, hw)      f32, noise_w & FL_SCALE baked
    sk_ref = None
    if has_skip:
        sk_ref = refs[idx]; idx += 1       # (1, c_out, hw)
    o_ref = refs[idx]                      # (1, c_out, hw)

    hw = height * width
    pad = k // 2

    # scale-input modulation in f32, single cast to bf16 for the MXU
    xm = (x_ref[0].astype(jnp.float32) * s_ref[0].astype(jnp.float32)).astype(jnp.bfloat16)

    # per-tap MXU accumulation; mask applied AFTER the matmul (broadcasts over channels)
    acc = None
    for dy in range(k):
        for dx in range(k):
            t = dy * k + dx
            off = (dy - pad) * width + (dx - pad)
            xt = _shift_cols(xm, off, hw)                               # (c_in, hw) bf16
            part = jnp.dot(w_ref[t], xt, preferred_element_type=jnp.float32)  # (c_out, hw)
            if k > 1:
                part = part * m_ref[t:t + 1, :]
            acc = part if acc is None else acc + part

    if demodulate:
        acc = acc * d_ref[0].astype(jnp.float32)                        # (c_out, 1) broadcast
    if has_noise:
        acc = acc + n_ref[0].astype(jnp.float32)                        # (1, hw) broadcast
    acc = acc + b_ref[...].astype(jnp.float32)                          # (c_out, 1) broadcast
    if activate:
        acc = jnp.where(acc >= 0.0, acc, NEG_SLOPE * acc)               # sqrt(2) already baked
    if has_skip:
        acc = acc + sk_ref[0].astype(jnp.float32)
    o_ref[0] = acc.astype(o_ref.dtype)


def _conv_masks(k, H, W):
    # (k*k, H*W) f32 validity masks for 'same' padding (pad = k//2), precomputed at init.
    pad = k // 2
    hh = jnp.arange(H)[:, None]
    ww = jnp.arange(W)[None, :]
    rows = []
    for dy in range(k):
        for dx in range(k):
            m = ((hh + dy - pad >= 0) & (hh + dy - pad < H) &
                 (ww + dx - pad >= 0) & (ww + dx - pad < W))
            rows.append(m.reshape(H * W))
    return jnp.stack(rows, axis=0).astype(jnp.float32)


def modulated_conv2d(x, latent, p, *, k, demodulate, activate, masks_by_res=None,
                     noise=None, skip=None, upsample=False, out_dtype=jnp.bfloat16):
    # x: (B, C_in, H, W) bf16 activation    latent: (B, 512)
    if upsample:
        # TODO(synk): StyleGAN2 upsampling is conv_transpose2d(stride=2) + upfirdn2d FIR blur;
        # approximated with nearest-neighbor 2x (not yet fused into the kernel read pattern).
        x = jnp.repeat(jnp.repeat(x, 2, axis=2), 2, axis=3)
    B, C_in, H, W = x.shape
    HW, KK = H * W, k * k
    C_out = p['w_taps'].shape[1]

    # hoisted per-layer style EqualLinear (tiny batched matmul; scale/transpose baked at init)
    s = latent.astype(jnp.float32) @ p['mod_wT'] + p['mod_b'][None, :]           # (B, C_in)

    inputs = [x.reshape(B, C_in, HW), s.reshape(B, C_in, 1)]
    in_specs = [
        pl.BlockSpec((1, C_in, HW), lambda b: (b, 0, 0)),
        pl.BlockSpec((1, C_in, 1), lambda b: (b, 0, 0)),
    ]
    if demodulate:
        # demod[b,o] = rsqrt(sum_c w2[o,c] * s[b,c]^2 + eps), w2 precomputed at init
        demod = jax.lax.rsqrt(jnp.einsum('oc,bc->bo', p['w2'], s * s) + 1e-8)    # (B, C_out)
        if activate:
            demod = demod * FL_SCALE            # bake fused_leaky_relu sqrt(2)
        inputs.append(demod.reshape(B, C_out, 1))
        in_specs.append(pl.BlockSpec((1, C_out, 1), lambda b: (b, 0, 0)))
    inputs += [p['w_taps'], p['bias_col']]
    in_specs += [
        pl.BlockSpec((KK, C_out, C_in), lambda b: (0, 0, 0)),
        pl.BlockSpec((C_out, 1), lambda b: (0, 0)),
    ]
    if k > 1:
        inputs.append(masks_by_res[H])
        in_specs.append(pl.BlockSpec((KK, HW), lambda b: (0, 0)))
    has_noise = noise is not None
    has_skip = skip is not None
    if has_noise:
        inputs.append((noise * p['noise_w_scaled']).reshape(B, 1, HW).astype(jnp.float32))
        in_specs.append(pl.BlockSpec((1, 1, HW), lambda b: (b, 0, 0)))
    if has_skip:
        inputs.append(skip.reshape(B, C_out, HW))
        in_specs.append(pl.BlockSpec((1, C_out, HW), lambda b: (b, 0, 0)))

    kernel = partial(_modconv_kernel, c_out=C_out, k=k, height=H, width=W,
                     demodulate=demodulate, activate=activate,
                     has_noise=has_noise, has_skip=has_skip)
    # TODO(synk): at real StyleGAN widths (HW >= ~4K pixels, 512 ch) add an HW lane grid axis
    # with halo-consistent boundary masks and generation-specific tile budgets (v7x: 64 MiB
    # VMEM / 2 TCs); at these demo sizes one lane-dense block per batch element suffices.
    out = pl.pallas_call(
        kernel,
        out_shape=jax.ShapeDtypeStruct((B, C_out, HW), out_dtype),
        grid=(B,),
        in_specs=in_specs,
        out_specs=pl.BlockSpec((1, C_out, HW), lambda b: (b, 0, 0)),
        compiler_params=pltpu.CompilerParams(
            dimension_semantics=("parallel",),
            vmem_limit_bytes=32 * 1024 * 1024),
    )(*inputs)
    return out.reshape(B, C_out, H, W)


# --------------------------------------------------------------------------
# StyleGAN2 Generator (synthesis network, input_is_latent=True path)
# --------------------------------------------------------------------------
def _styled_conv(x, latent, p, masks_by_res, noise, upsample):
    return modulated_conv2d(x, latent, p, k=3, demodulate=True, activate=True,
                            masks_by_res=masks_by_res, noise=noise, upsample=upsample,
                            out_dtype=jnp.bfloat16)


def _to_rgb(x, latent, p, skip):
    return modulated_conv2d(x, latent, p, k=1, demodulate=False, activate=False,
                            noise=None, skip=skip, out_dtype=jnp.float32)


def _upsample2x(x):
    # TODO(synk): ToRGB skip upsampling uses upfirdn2d FIR blur; nearest-neighbor here.
    return jnp.repeat(jnp.repeat(x, 2, axis=2), 2, axis=3)


def generator_forward(latent, dec, noises):
    # latent: (B, n_latent, 512) already in W+ (input_is_latent=True -> style MLP skipped)
    B = latent.shape[0]
    const = dec['const']
    masks = dec['masks']
    out = jnp.broadcast_to(const, (B,) + const.shape[1:])           # bf16
    out = _styled_conv(out, latent[:, 0], dec['conv1'], masks, noises[0], upsample=False)
    skip = _to_rgb(out, latent[:, 1], dec['to_rgb1'], skip=None)
    i, ni = 1, 1
    for block in dec['blocks']:
        out = _styled_conv(out, latent[:, i], block['conv_up'], masks, noises[ni], upsample=True)
        out = _styled_conv(out, latent[:, i + 1], block['conv'], masks, noises[ni + 1],
                           upsample=False)
        skip = _to_rgb(out, latent[:, i + 2], block['to_rgb'], skip=_upsample2x(skip))
        i += 2
        ni += 2
    return skip                                                     # (B, 3, size, size) f32


def make_noises(key, batch, stylegan_size):
    # randomize_noise=True -> fresh gaussian noise per layer
    log_size = int(math.log2(stylegan_size))
    keys = jax.random.split(key, 2 * (log_size - 2) + 1)
    noises = [jax.random.normal(keys[0], (batch, 1, 4, 4), jnp.float32)]
    ki = 1
    for res_log in range(3, log_size + 1):
        r = 2 ** res_log
        for _ in range(2):
            noises.append(jax.random.normal(keys[ki], (batch, 1, r, r), jnp.float32))
            ki += 1
    return noises


def adaptive_avg_pool2d(x, out_hw):
    # face_pool = AdaptiveAvgPool2d((256, 256))  (glue)
    def one_axis(a, axis, out_s):
        in_s = a.shape[axis]
        if out_s == in_s:
            return a
        if out_s % in_s == 0:
            return jnp.repeat(a, out_s // in_s, axis=axis)
        if in_s % out_s == 0:
            r = in_s // out_s
            shp = list(a.shape)
            shp[axis:axis + 1] = [out_s, r]
            return a.reshape(shp).mean(axis=axis + 1)
        # TODO(synk): general (non-divisible) adaptive pooling windows not implemented.
        raise NotImplementedError
    x = one_axis(x, 2, out_hw[0])
    x = one_axis(x, 3, out_hw[1])
    return x


# --------------------------------------------------------------------------
# Parameter construction (deterministic, synthetic — no checkpoint loading)
# All per-layer kernel prep (tap split, scales, bf16 casts, masks) happens HERE, once.
# --------------------------------------------------------------------------
def _init_modconv(key, c_in, c_out, k, styled):
    ks = jax.random.split(key, 3)
    weight = jax.random.normal(ks[0], (c_out, c_in, k, k), jnp.float32)
    mod_w = jax.random.normal(ks[1], (c_in, STYLE_DIM), jnp.float32)
    bias = jax.random.normal(ks[2], (c_out,), jnp.float32) * 0.1
    kk = k * k
    w_scale = 1.0 / math.sqrt(c_in * kk)
    mod_scale = 1.0 / math.sqrt(STYLE_DIM)
    activate = styled                      # styled convs end in fused_leaky_relu; ToRGB does not
    act_scale = FL_SCALE if activate else 1.0
    p = {
        # per-tap batch-invariant weights, conv scale baked, tap-major (k*k, c_out, c_in), bf16
        'w_taps': (jnp.transpose(weight.reshape(c_out, c_in, kk), (2, 0, 1)) * w_scale
                   ).astype(jnp.bfloat16),
        # modulation EqualLinear: scale baked, pre-transposed to (512, c_in)
        'mod_wT': (mod_w * mod_scale).T,
        'mod_b': jnp.ones((c_in,), jnp.float32),            # EqualLinear(bias_init=1)
        # bias column with fused_leaky_relu sqrt(2) baked when activated
        'bias_col': (bias * act_scale).reshape(c_out, 1),
    }
    if styled:
        # demod needs sum_k W^2 (conv scale baked): demod = rsqrt(w2 @ s^2 + eps)
        p['w2'] = (w_scale ** 2) * jnp.sum(weight ** 2, axis=(2, 3))       # (c_out, c_in)
        # torch inits NoiseInjection weight to 0; small nonzero so the noise path is exercised.
        p['noise_w_scaled'] = jnp.float32(0.1) * act_scale
    return p


def init_params(key, *, stylegan_size=16, change_type='HairStyle'):
    log_size = int(math.log2(stylegan_size))
    n_latent = 2 * log_size - 2

    # set_mapper() index selection
    if change_type == 'HairStyle':
        mlp_list = [0, 1, 2, 3, 4]
    elif change_type == 'HairColor':
        mlp_list = [7, 8, 9]
    elif change_type in ('EmotionStyle', 'Age', 'Gender'):
        mlp_list = [4, 5, 6]
    else:
        mlp_list = list(range(18))
    mlp_list = [i for i in mlp_list if i < n_latent]
    S = len(mlp_list)

    keys = jax.random.split(key, 3)
    # EqualLinear torch init: weight = randn(out,in)/lr_mul, bias = 0 (small randn here).
    mapper_w = jax.random.normal(keys[0], (S, MAPPER_LAYERS, STYLE_DIM, STYLE_DIM),
                                 jnp.float32) / LR_MUL
    mapper_b = jax.random.normal(keys[1], (S, MAPPER_LAYERS, 1, STYLE_DIM),
                                 jnp.float32) * 0.1
    # bake EqualLinear scale into weights, lr_mul into biases; transpose to (in, out); bf16
    eq_scale = (1.0 / math.sqrt(STYLE_DIM)) * LR_MUL
    mapper_w_prep = (jnp.swapaxes(mapper_w, 2, 3) * eq_scale).astype(jnp.bfloat16)
    mapper_b_prep = (mapper_b * LR_MUL).astype(jnp.float32)

    # Decoder synthesis net. Real Generator(stylegan_size, 512, 8) uses 512 channels at
    # these resolutions; a smaller width keeps this synthetic demo small.
    channels = {4: 64, 8: 64, 16: 32}
    dec_keys = jax.random.split(keys[2], 3 + 3 * (log_size - 2))
    dec = {
        'const': jax.random.normal(dec_keys[0], (1, channels[4], 4, 4),
                                   jnp.float32).astype(jnp.bfloat16),
        'conv1': _init_modconv(dec_keys[1], channels[4], channels[4], 3, styled=True),
        'to_rgb1': _init_modconv(dec_keys[2], channels[4], 3, 1, styled=False),
        'blocks': [],
        # boundary masks for the 3x3 convs, per resolution, built once
        'masks': {4: _conv_masks(3, 4, 4)},
    }
    in_ch = channels[4]
    ki = 3
    for res_log in range(3, log_size + 1):
        r = 2 ** res_log
        out_ch = channels[r]
        dec['masks'][r] = _conv_masks(3, r, r)
        dec['blocks'].append({
            'conv_up': _init_modconv(dec_keys[ki], in_ch, out_ch, 3, styled=True),
            'conv': _init_modconv(dec_keys[ki + 1], out_ch, out_ch, 3, styled=True),
            'to_rgb': _init_modconv(dec_keys[ki + 2], out_ch, 3, 1, styled=False),
        })
        in_ch = out_ch
        ki += 3

    return {
        'mlp_list': mlp_list,
        'n_latent': n_latent,
        'stylegan_size': stylegan_size,
        'mapper_w': mapper_w_prep,
        'mapper_b': mapper_b_prep,
        'decoder': dec,
    }


# --------------------------------------------------------------------------
# StyleCLIPMapper.forward
# --------------------------------------------------------------------------
def styleclip_mapper_forward(x, params, *, noise_key, resize=True, latent_mask=None,
                             input_code=False, randomize_noise=True, inject_latent=None,
                             return_latents=False, alpha=None):
    if input_code:
        codes = x
    else:
        # NOTE: latent_mappers.LevelsMapper source is not provided; assumed semantics:
        # one independent 4-layer Mapper per index in mlp_list applied to that w+ row,
        # remaining w+ rows passed through unchanged.
        mlp_list = params['mlp_list']
        x_sel = jnp.stack([x[:, i, :] for i in mlp_list], axis=0)          # (S, B, 512)
        mapped = levels_mapper(x_sel, params['mapper_w'], params['mapper_b'])
        codes = x
        for si, i in enumerate(mlp_list):
            codes = codes.at[:, i, :].set(mapped[si])

    if latent_mask is not None:
        for i in latent_mask:
            if inject_latent is not None:
                if alpha is not None:
                    codes = codes.at[:, i].set(alpha * inject_latent[:, i]
                                               + (1 - alpha) * codes[:, i])
                else:
                    codes = codes.at[:, i].set(inject_latent[:, i])
            else:
                codes = codes.at[:, i].set(0.0)

    B = codes.shape[0]
    noises = make_noises(noise_key, B, params['stylegan_size'])
    images = generator_forward(codes, params['decoder'], noises)
    result_latent = codes                       # input_is_latent=True -> W+ returned as-is

    if resize:
        images = adaptive_avg_pool2d(images, (256, 256))   # face_pool
    if return_latents:
        return images, result_latent
    return images


if __name__ == "__main__":
    key = jax.random.PRNGKey(0)
    k_param, k_x, k_noise = jax.random.split(key, 3)

    params = init_params(k_param, stylegan_size=16, change_type='HairStyle')
    B = 2
    x = jax.random.normal(k_x, (B, params['n_latent'], STYLE_DIM), jnp.float32)

    images = styleclip_mapper_forward(x, params, noise_key=k_noise, resize=True)
    images = jax.block_until_ready(images)

    assert images.shape == (B, 3, 256, 256), images.shape
    assert bool(jnp.all(jnp.isfinite(images)))
    print("KERNEL_OK")
</pallas_src>

<mosaic_0001>
module attributes {stable_mosaic.version = 11 : i64} {
  func.func @_mapper_kernel(%arg0: i32, %arg1: memref<1x2x512xf32, #tpu.memory_space<vmem>>, %arg2: memref<1x4x512x512xbf16, #tpu.memory_space<vmem>>, %arg3: memref<1x4x1x512xf32, #tpu.memory_space<vmem>>, %arg4: memref<1x2x512xf32, #tpu.memory_space<vmem>>) attributes {dimension_semantics = [#tpu.dimension_semantics<parallel>], iteration_bounds = array<i64: 5>, scalar_prefetch = 0 : i64, scratch_operands = 0 : i64, tpu.core_type = #tpu.core_type<tc>, window_params = [{transform_indices = @transform_0, window_bounds = array<i64: 1, 2, 512>}, {transform_indices = @transform_1, window_bounds = array<i64: 1, 4, 512, 512>}, {transform_indices = @transform_2, window_bounds = array<i64: 1, 4, 1, 512>}, {transform_indices = @transform_3, window_bounds = array<i64: 1, 2, 512>}]} {
    %c0 = arith.constant 0 : index
    %c0_0 = arith.constant 0 : index
    %c0_1 = arith.constant 0 : index
    %0 = vector.load %arg1[%c0, %c0_0, %c0_1] : memref<1x2x512xf32, #tpu.memory_space<vmem>>, vector<1x2x512xf32>
    %1 = vector.shape_cast %0 : vector<1x2x512xf32> to vector<2x512xf32>
    %2 = arith.mulf %1, %1 : vector<2x512xf32>
    %cst = arith.constant dense<0.000000e+00> : vector<2xf32>
    %3 = vector.multi_reduction <add>, %2, %cst [1] : vector<2x512xf32> to vector<2xf32>
    %4 = vector.shape_cast %3 : vector<2xf32> to vector<2x1xf32>
    %cst_2 = arith.constant 5.120000e+02 : f32
    %5 = vector.broadcast %cst_2 : f32 to vector<2x1xf32>
    %6 = arith.divf %4, %5 : vector<2x1xf32>
    %cst_3 = arith.constant 9.99999993E-9 : f32
    %7 = vector.broadcast %cst_3 : f32 to vector<2x1xf32>
    %8 = arith.addf %6, %7 : vector<2x1xf32>
    %9 = math.rsqrt %8 : vector<2x1xf32>
    %10 = vector.broadcast %9 : vector<2x1xf32> to vector<2x512xf32>
    %11 = arith.mulf %1, %10 : vector<2x512xf32>
    %c0_4 = arith.constant 0 : index
    %c0_5 = arith.constant 0 : index
    %c0_6 = arith.constant 0 : index
    %c0_7 = arith.constant 0 : index
    %12 = vector.load %arg2[%c0_4, %c0_5, %c0_6, %c0_7] : memref<1x4x512x512xbf16, #tpu.memory_space<vmem>>, vector<1x1x512x512xbf16>
    %13 = vector.shape_cast %12 : vector<1x1x512x512xbf16> to vector<512x512xbf16>
    %14 = arith.truncf %11 : vector<2x512xf32> to vector<2x512xbf16>
    %cst_8 = arith.constant dense<0.000000e+00> : vector<2x512xf32>
    %15 = tpu.matmul %14, %13, %cst_8 {dimension_numbers = #tpu.dot_dimension_numbers<[1], [0], [0], [1], [0, 0, 1, 1], [], []>} : vector<2x512xbf16>, vector<512x512xbf16>, vector<2x512xf32> -> vector<2x512xf32>
    %c0_9 = arith.constant 0 : index
    %c0_10 = arith.constant 0 : index
    %c0_11 = arith.constant 0 : index
    %c0_12 = arith.constant 0 : index
    %16 = vector.load %arg3[%c0_9, %c0_10, %c0_11, %c0_12] : memref<1x4x1x512xf32, #tpu.memory_space<vmem>>, vector<1x1x1x512xf32>
    %17 = vector.shape_cast %16 : vector<1x1x1x512xf32> to vector<1x512xf32>
    %18 = vector.broadcast %17 : vector<1x512xf32> to vector<2x512xf32>
    %19 = arith.addf %15, %18 : vector<2x512xf32>
    %cst_13 = arith.constant 0.000000e+00 : f32
    %20 = vector.broadcast %cst_13 : f32 to vector<2x512xf32>
    %21 = arith.cmpf oge, %19, %20 : vector<2x512xf32>
    %cst_14 = arith.constant 2.000000e-01 : f32
    %22 = vector.broadcast %cst_14 : f32 to vector<2x512xf32>
    %23 = arith.mulf %22, %19 : vector<2x512xf32>
    %24 = arith.select %21, %19, %23 : vector<2x512xi1>, vector<2x512xf32>
    %cst_15 = arith.constant 1.41421354 : f32
    %25 = vector.broadcast %cst_15 : f32 to vector<2x512xf32>
    %26 = arith.mulf %24, %25 : vector<2x512xf32>
    %c0_16 = arith.constant 0 : index
    %c1 = arith.constant 1 : index
    %c0_17 = arith.constant 0 : index
    %c0_18 = arith.constant 0 : index
    %27 = vector.load %arg2[%c0_16, %c1, %c0_17, %c0_18] : memref<1x4x512x512xbf16, #tpu.memory_space<vmem>>, vector<1x1x512x512xbf16>
    %28 = vector.shape_cast %27 : vector<1x1x512x512xbf16> to vector<512x512xbf16>
    %29 = arith.truncf %26 : vector<2x512xf32> to vector<2x512xbf16>
    %cst_19 = arith.constant dense<0.000000e+00> : vector<2x512xf32>
    %30 = tpu.matmul %29, %28, %cst_19 {dimension_numbers = #tpu.dot_dimension_numbers<[1], [0], [0], [1], [0, 0, 1, 1], [], []>} : vector<2x512xbf16>, vector<512x512xbf16>, vector<2x512xf32> -> vector<2x512xf32>
    %c0_20 = arith.constant 0 : index
    %c1_21 = arith.constant 1 : index
    %c0_22 = arith.constant 0 : index
    %c0_23 = arith.constant 0 : index
    %31 = vector.load %arg3[%c0_20, %c1_21, %c0_22, %c0_23] : memref<1x4x1x512xf32, #tpu.memory_space<vmem>>, vector<1x1x1x512xf32>
    %32 = vector.shape_cast %31 : vector<1x1x1x512xf32> to vector<1x512xf32>
    %33 = vector.broadcast %32 : vector<1x512xf32> to vector<2x512xf32>
    %34 = arith.addf %30, %33 : vector<2x512xf32>
    %cst_24 = arith.constant 0.000000e+00 : f32
    %35 = vector.broadcast %cst_24 : f32 to vector<2x512xf32>
    %36 = arith.cmpf oge, %34, %35 : vector<2x512xf32>
    %cst_25 = arith.constant 2.000000e-01 : f32
    %37 = vector.broadcast %cst_25 : f32 to vector<2x512xf32>
    %38 = arith.mulf %37, %34 : vector<2x512xf32>
    %39 = arith.select %36, %34, %38 : vector<2x512xi1>, vector<2x512xf32>
    %cst_26 = arith.constant 1.41421354 : f32
    %40 = vector.broadcast %cst_26 : f32 to vector<2x512xf32>
    %41 = arith.mulf %39, %40 : vector<2x512xf32>
    %c0_27 = arith.constant 0 : index
    %c2 = arith.constant 2 : index
    %c0_28 = arith.constant 0 : index
    %c0_29 = arith.constant 0 : index
    %42 = vector.load %arg2[%c0_27, %c2, %c0_28, %c0_29] : memref<1x4x512x512xbf16, #tpu.memory_space<vmem>>, vector<1x1x512x512xbf16>
    %43 = vector.shape_cast %42 : vector<1x1x512x512xbf16> to vector<512x512xbf16>
    %44 = arith.truncf %41 : vector<2x512xf32> to vector<2x512xbf16>
    %cst_30 = arith.constant dense<0.000000e+00> : vector<2x512xf32>
    %45 = tpu.matmul %44, %43, %cst_30 {dimension_numbers = #tpu.dot_dimension_numbers<[1], [0], [0], [1], [0, 0, 1, 1], [], []>} : vector<2x512xbf16>, vector<512x512xbf16>, vector<2x512xf32> -> vector<2x512xf32>
    %c0_31 = arith.constant 0 : index
    %c2_32 = arith.constant 2 : index
    %c0_33 = arith.constant 0 : index
    %c0_34 = arith.constant 0 : index
    %46 = vector.load %arg3[%c0_31, %c2_32, %c0_33, %c0_34] : memref<1x4x1x512xf32, #tpu.memory_space<vmem>>, vector<1x1x1x512xf32>
    %47 = vector.shape_cast %46 : vector<1x1x1x512xf32> to vector<1x512xf32>
    %48 = vector.broadcast %47 : vector<1x512xf32> to vector<2x512xf32>
    %49 = arith.addf %45, %48 : vector<2x512xf32>
    %cst_35 = arith.constant 0.000000e+00 : f32
    %50 = vector.broadcast %cst_35 : f32 to vector<2x512xf32>
    %51 = arith.cmpf oge, %49, %50 : vector<2x512xf32>
    %cst_36 = arith.constant 2.000000e-01 : f32
    %52 = vector.broadcast %cst_36 : f32 to vector<2x512xf32>
    %53 = arith.mulf %52, %49 : vector<2x512xf32>
    %54 = arith.select %51, %49, %53 : vector<2x512xi1>, vector<2x512xf32>
    %cst_37 = arith.constant 1.41421354 : f32
    %55 = vector.broadcast %cst_37 : f32 to vector<2x512xf32>
    %56 = arith.mulf %54, %55 : vector<2x512xf32>
    %c0_38 = arith.constant 0 : index
    %c3 = arith.constant 3 : index
    %c0_39 = arith.constant 0 : index
    %c0_40 = arith.constant 0 : index
    %57 = vector.load %arg2[%c0_38, %c3, %c0_39, %c0_40] : memref<1x4x512x512xbf16, #tpu.memory_space<vmem>>, vector<1x1x512x512xbf16>
    %58 = vector.shape_cast %57 : vector<1x1x512x512xbf16> to vector<512x512xbf16>
    %59 = arith.truncf %56 : vector<2x512xf32> to vector<2x512xbf16>
    %cst_41 = arith.constant dense<0.000000e+00> : vector<2x512xf32>
    %60 = tpu.matmul %59, %58, %cst_41 {dimension_numbers = #tpu.dot_dimension_numbers<[1], [0], [0], [1], [0, 0, 1, 1], [], []>} : vector<2x512xbf16>, vector<512x512xbf16>, vector<2x512xf32> -> vector<2x512xf32>
    %c0_42 = arith.constant 0 : index
    %c3_43 = arith.constant 3 : index
    %c0_44 = arith.constant 0 : index
    %c0_45 = arith.constant 0 : index
    %61 = vector.load %arg3[%c0_42, %c3_43, %c0_44, %c0_45] : memref<1x4x1x512xf32, #tpu.memory_space<vmem>>, vector<1x1x1x512xf32>
    %62 = vector.shape_cast %61 : vector<1x1x1x512xf32> to vector<1x512xf32>
    %63 = vector.broadcast %62 : vector<1x512xf32> to vector<2x512xf32>
    %64 = arith.addf %60, %63 : vector<2x512xf32>
    %cst_46 = arith.constant 0.000000e+00 : f32
    %65 = vector.broadcast %cst_46 : f32 to vector<2x512xf32>
    %66 = arith.cmpf oge, %64, %65 : vector<2x512xf32>
    %cst_47 = arith.constant 2.000000e-01 : f32
    %67 = vector.broadcast %cst_47 : f32 to vector<2x512xf32>
    %68 = arith.mulf %67, %64 : vector<2x512xf32>
    %69 = arith.select %66, %64, %68 : vector<2x512xi1>, vector<2x512xf32>
    %cst_48 = arith.constant 1.41421354 : f32
    %70 = vector.broadcast %cst_48 : f32 to vector<2x512xf32>
    %71 = arith.mulf %69, %70 : vector<2x512xf32>
    %c0_49 = arith.constant 0 : index
    %c0_50 = arith.constant 0 : index
    %c0_51 = arith.constant 0 : index
    %72 = vector.load %arg4[%c0_49, %c0_50, %c0_51] : memref<1x2x512xf32, #tpu.memory_space<vmem>>, vector<1x2x512xf32>
    %73 = vector.shape_cast %72 : vector<1x2x512xf32> to vector<2x512xf32>
    %74 = vector.shape_cast %71 : vector<2x512xf32> to vector<1x2x512xf32>
    tpu.vector_store %arg4[%c0_49, %c0_50, %c0_51], %74 {strides = array<i32>} : memref<1x2x512xf32, #tpu.memory_space<vmem>>, vector<1x2x512xf32>,
    return
  }
  func.func @transform_0(%arg0: i32) -> (i32, i32, i32) {
    %c0_i32 = arith.constant 0 : i32
    %c0_i32_0 = arith.constant 0 : i32
    %c0_i32_1 = arith.constant 0 : i32
    return %arg0, %c0_i32, %c0_i32_0 : i32, i32, i32
  }
  func.func @transform_1(%arg0: i32) -> (i32, i32, i32, i32) {
    %c0_i32 = arith.constant 0 : i32
    %c0_i32_0 = arith.constant 0 : i32
    %c0_i32_1 = arith.constant 0 : i32
    %c0_i32_2 = arith.constant 0 : i32
    return %arg0, %c0_i32, %c0_i32_0, %c0_i32_1 : i32, i32, i32, i32
  }
  func.func @transform_2(%arg0: i32) -> (i32, i32, i32, i32) {
    %c0_i32 = arith.constant 0 : i32
    %c0_i32_0 = arith.constant 0 : i32
    %c0_i32_1 = arith.constant 0 : i32
    %c0_i32_2 = arith.constant 0 : i32
    return %arg0, %c0_i32, %c0_i32_0, %c0_i32_1 : i32, i32, i32, i32
  }
  func.func @transform_3(%arg0: i32) -> (i32, i32, i32) {
    %c0_i32 = arith.constant 0 : i32
    %c0_i32_0 = arith.constant 0 : i32
    %c0_i32_1 = arith.constant 0 : i32
    return %arg0, %c0_i32, %c0_i32_0 : i32, i32, i32
  }
}

</mosaic_0001>

<llo_original>
// kernel: tpu_custom_call.1
$region0: #{tpu_custom_call.1}
  #allocation0 [shape = 'u32[]', space=smem, size = 0x4, offset = 0x4, fixed_abs, tag = 'smem constant byte address 0x4 - core index']
  #allocation1 [shape = 'u32[72,128]{1,0:T(1,128)}', space=vmem, size = 0x9000, scoped, tag = 'internal scratch']
  %s0 = inlined_call_operand.hbm [shape: f32[5,2,512], index: 0, kind: input, shape index: {}]
  %s1 = inlined_call_operand.hbm [shape: bf16[5,4,512,512], index: 1, kind: input, shape index: {}]
  %s2 = inlined_call_operand.hbm [shape: f32[5,4,1,512], index: 2, kind: input, shape index: {}]
  %s3 = inlined_call_operand.hbm [shape: f32[5,2,512], index: 3, kind: output, shape index: {}]
  %s4 = sld [smem:[#allocation0]]
  $region57: #{tpu_custom_call.1} parent=0
    _
  %s6 = ssub.s32 1, %s4
  %s7 = scalar_select 0, %s6, %s4
  $region1: #{tpu_custom_call.1} parent=0
    #allocation2 [shape = 'u8[8192]{0}', space=vmem, size = 0x2000, scoped, tag = 'input window, operand 0']
    #allocation3 [shape = 's32[2]{0}', space=sflag, size = 0x8, scoped, tag = 'scoped memory for tpu_custom_call.1']
    #allocation4 [shape = 's32[2]{0}', space=sflag, size = 0x8, scoped, tag = 'scoped memory for tpu_custom_call.1']
    #allocation5 [shape = 'u8[4194304]{0}', space=vmem, size = 0x400000, scoped, tag = 'input window, operand 1']
    #allocation6 [shape = 's32[2]{0}', space=sflag, size = 0x8, scoped, tag = 'scoped memory for tpu_custom_call.1']
    #allocation7 [shape = 'u8[16384]{0}', space=vmem, size = 0x4000, scoped, tag = 'input window, operand 2']
    #allocation8 [shape = 'u8[8192]{0}', space=vmem, size = 0x2000, scoped, tag = 'output window, operand 0']
    %8 = vsyncpa [#allocation3], 0
    %s9 = scalar_lea.sflag [#allocation3], 1
    %10 = vsyncpa %s9, 0
    %11 = vsyncpa [#allocation6], 0
    %s12 = scalar_lea.sflag [#allocation6], 1
    %13 = vsyncpa %s12, 0
    %14 = vsyncpa [#allocation4], 0
    %s15 = scalar_lea.sflag [#allocation4], 1
    %16 = vsyncpa %s15, 0
    loop: start=0, step=1, limit=7
    $region2: #{tpu_custom_call.1} parent=1 // loop_pre_header
      _
    $region3: #{tpu_custom_call.1} parent=1 // loop_header
      %s18 = sphi 0, %s22
      %p19 = scmp.ge.s32.totalorder %s18, 7
      %s28 = sphi 0, %s30
      %s31 = sphi 0, %s28
      %s32 = sphi 0, %s31
      %s48 = sphi 0, %s32
      %s54 = sphi 0, %s56
      %s57 = sphi 0, %s54
      %s58 = sphi 0, %s57
      %s74 = sphi 0, %s58
      %s80 = sphi 0, %s82
      %s83 = sphi 0, %s80
      %s84 = sphi 0, %s83
      %s100 = sphi 0, %s84
      %s106 = sphi 0, %s108
      %s109 = sphi 0, %s106
      %s110 = sphi 0, %s109
      %s126 = sphi 0, %s110
    $region4: #{tpu_custom_call.1} parent=1 // loop_header_branch
      %21 = sbr.rel (%p19) target = $region8
    $region5: #{tpu_custom_call.1} parent=1 // loop_body
      %s23 = ssub.s32 %s18, 1
      %s24 = ssub.s32 %s18, 2
      %s25 = sadd.s32 %s18, 1
      %s26 = ssub.s32 %s18, %s25
      %p27 = scmp.eq.s32.totalorder %s26, 0
      %s29 = sadd.s32 %s28, 1
      %s30 = scalar_select %p27, %s28, %s29
      %p33 = pneg %p27
      %p34 = scmp.eq.s32.totalorder %s18, 4
      %p35 = por %p33, %p34
      %p36 = scmp.ne.s32.totalorder %s28, %s31
      %p37 = scmp.eq.s32.totalorder %s18, 0
      %p38 = por %p36, %p37
      %p39 = scmp.ne.s32.totalorder %s28, %s31
      %p40 = scmp.eq.s32.totalorder %s23, 4
      %p41 = por %p39, %p40
      %p42 = scmp.ne.s32.totalorder %s31, %s32
      %p43 = scmp.eq.s32.totalorder %s23, 0
      %p44 = por %p42, %p43
      %p45 = scmp.ne.s32.totalorder %s31, %s32
      %p46 = scmp.eq.s32.totalorder %s24, 4
      %p47 = por %p45, %p46
      %p49 = scmp.ne.s32.totalorder %s32, %s48
      %p50 = scmp.eq.s32.totalorder %s24, 0
      %p51 = por %p49, %p50
      %s52 = ssub.s32 %s18, %s25
      %p53 = scmp.eq.s32.totalorder %s52, 0
      %s55 = sadd.s32 %s54, 1
      %s56 = scalar_select %p53, %s54, %s55
      %p59 = pneg %p53
      %p60 = scmp.eq.s32.totalorder %s18, 4
      %p61 = por %p59, %p60
      %p62 = scmp.ne.s32.totalorder %s54, %s57
      %p63 = scmp.eq.s32.totalorder %s18, 0
      %p64 = por %p62, %p63
      %p65 = scmp.ne.s32.totalorder %s54, %s57
      %p66 = scmp.eq.s32.totalorder %s23, 4
      %p67 = por %p65, %p66
      %p68 = scmp.ne.s32.totalorder %s57, %s58
      %p69 = scmp.eq.s32.totalorder %s23, 0
      %p70 = por %p68, %p69
      %p71 = scmp.ne.s32.totalorder %s57, %s58
      %p72 = scmp.eq.s32.totalorder %s24, 4
      %p73 = por %p71, %p72
      %p75 = scmp.ne.s32.totalorder %s58, %s74
      %p76 = scmp.eq.s32.totalorder %s24, 0
      %p77 = por %p75, %p76
      %s78 = ssub.s32 %s18, %s25
      %p79 = scmp.eq.s32.totalorder %s78, 0
      %s81 = sadd.s32 %s80, 1
      %s82 = scalar_select %p79, %s80, %s81
      %p85 = pneg %p79
      %p86 = scmp.eq.s32.totalorder %s18, 4
      %p87 = por %p85, %p86
      %p88 = scmp.ne.s32.totalorder %s80, %s83
      %p89 = scmp.eq.s32.totalorder %s18, 0
      %p90 = por %p88, %p89
      %p91 = scmp.ne.s32.totalorder %s80, %s83
      %p92 = scmp.eq.s32.totalorder %s23, 4
      %p93 = por %p91, %p92
      %p94 = scmp.ne.s32.totalorder %s83, %s84
      %p95 = scmp.eq.s32.totalorder %s23, 0
      %p96 = por %p94, %p95
      %p97 = scmp.ne.s32.totalorder %s83, %s84
      %p98 = scmp.eq.s32.totalorder %s24, 4
      %p99 = por %p97, %p98
      %p101 = scmp.ne.s32.totalorder %s84, %s100
      %p102 = scmp.eq.s32.totalorder %s24, 0
      %p103 = por %p101, %p102
      %s104 = ssub.s32 %s18, %s25
      %p105 = scmp.eq.s32.totalorder %s104, 0
      %s107 = sadd.s32 %s106, 1
      %s108 = scalar_select %p105, %s106, %s107
      %p111 = pneg %p105
      %p112 = scmp.eq.s32.totalorder %s18, 4
      %p113 = por %p111, %p112
      %p114 = scmp.ne.s32.totalorder %s106, %s109
      %p115 = scmp.eq.s32.totalorder %s18, 0
      %p116 = por %p114, %p115
      %p117 = scmp.ne.s32.totalorder %s106, %s109
      %p118 = scmp.eq.s32.totalorder %s23, 4
      %p119 = por %p117, %p118
      %p120 = scmp.ne.s32.totalorder %s109, %s110
      %p121 = scmp.eq.s32.totalorder %s23, 0
      %p122 = por %p120, %p121
      %p123 = scmp.ne.s32.totalorder %s109, %s110
      %p124 = scmp.eq.s32.totalorder %s24, 4
      %p125 = por %p123, %p124
      %p127 = scmp.ne.s32.totalorder %s110, %s126
      %p128 = scmp.eq.s32.totalorder %s24, 0
      %p129 = por %p127, %p128
      %p130 = scmp.le.s32.totalorder 1, %s18
      %p131 = scmp.lt.s32.totalorder %s18, 6
      %p132 = pnand %p130, %p131
      %p133 = pneg %p132
      // Predicated region
      $region9: #{tpu_custom_call.1} parent=5 // pred_check
        _
      $region10: #{tpu_custom_call.1} parent=5 // pred_check_branch
        %135 = sbr.rel (%p132) target = $region12
      $region11: #{tpu_custom_call.1} parent=5 // pred_region
        %s136 = ssub.s32 %s18, 1
      $region12: #{tpu_custom_call.1} parent=5 // pred_fallthru
        _
      %p137 = scmp.lt.s32.totalorder %s18, 5
      // Predicated region
      $region13: #{tpu_custom_call.1} parent=5 // pred_check
        %p138 = pneg %p137
      $region14: #{tpu_custom_call.1} parent=5 // pred_check_branch
        %140 = sbr.rel (%p138) target = $region16
      $region15: #{tpu_custom_call.1} parent=5 // pred_region
        // Predicated region
        $region17: #{tpu_custom_call.1} parent=15 // pred_check
          %p141 = pneg %p38
        $region18: #{tpu_custom_call.1} parent=15 // pred_check_branch
          %143 = sbr.rel (%p141) target = $region20
        $region19: #{tpu_custom_call.1} parent=15 // pred_region
          %s144 = sand.u32 %s28, 1
          %s145 = scalar_lea.sflag [#allocation3], %s144
          %s146 = sand.u32 %s28, 1
          %s147 = smul.addr %s146, 8
          %s148 = scalar_lea.vmem [#allocation2], %s147
          %150 = vsyncadd %s145, 0
          %s151 = smul.addr %s18, 4
          %s152 = smul.addr %s151, 2
          %s153 = scalar_lea.hbm %s0, %s152
          %s155 = sshll.u32 %s153, 4
          %s156 = int_to_ptr.hbm [resolvable:$true] %s155
          %s157 = sshll.u32 %s148, 4
          %s158 = int_to_ptr.vmem [resolvable:$true] %s157
          %160 = dma.hbm_to_vmem [thread:$0]  %s156, 128, %s158, %s145
        $region20: #{tpu_custom_call.1} parent=15 // pred_fallthru
          _
        // Predicated region
        $region21: #{tpu_custom_call.1} parent=15 // pred_check
          %p161 = pneg %p64
        $region22: #{tpu_custom_call.1} parent=15 // pred_check_branch
          %163 = sbr.rel (%p161) target = $region24
        $region23: #{tpu_custom_call.1} parent=15 // pred_region
          %s164 = sand.u32 %s18, 1
          %s165 = scalar_lea.sflag [#allocation6], %s164
          %s166 = sand.u32 %s54, 1
          %s167 = smul.addr %s166, 4096
          %s168 = scalar_lea.vmem [#allocation5], %s167
          %170 = vsyncadd %s165, 0
          %s171 = smul.addr %s18, 1024
          %s172 = smul.addr %s171, 4
          %s173 = scalar_lea.hbm %s1, %s172
          %s174 = sshll.u32 %s173, 4
          %s175 = int_to_ptr.hbm [resolvable:$true] %s174
          %s176 = sshll.u32 %s168, 4
          %s177 = int_to_ptr.vmem [resolvable:$true] %s176
          %182 = dma.hbm_to_vmem [thread:$0]  %s175, 65536, %s177, %s165, 256, 256, 16
        $region24: #{tpu_custom_call.1} parent=15 // pred_fallthru
          _
        // Predicated region
        $region25: #{tpu_custom_call.1} parent=15 // pred_check
          %p183 = pneg %p90
        $region26: #{tpu_custom_call.1} parent=15 // pred_check_branch
          %185 = sbr.rel (%p183) target = $region28
        $region27: #{tpu_custom_call.1} parent=15 // pred_region
          %s186 = sand.u32 %s18, 1
          %s187 = scalar_lea.sflag [#allocation6], %s186
          %s188 = sand.u32 %s80, 1
          %s189 = smul.addr %s188, 16
          %s190 = scalar_lea.vmem [#allocation7], %s189
          %192 = vsyncadd %s187, 0
          %s193 = smul.addr %s18, 16
          %s194 = scalar_lea.hbm %s2, %s193
          %s195 = sshll.u32 %s194, 4
          %s196 = int_to_ptr.hbm [resolvable:$true] %s195
          %s197 = sshll.u32 %s190, 4
          %s198 = int_to_ptr.vmem [resolvable:$true] %s197
          %203 = dma.hbm_to_vmem [thread:$0]  %s196, 256, %s198, %s187, 64, 64, 4
        $region28: #{tpu_custom_call.1} parent=15 // pred_fallthru
          _
      $region16: #{tpu_custom_call.1} parent=5 // pred_fallthru
        _
      %p204 = scmp.le.s32.totalorder 1, %s18
      %p205 = scmp.lt.s32.totalorder %s18, 6
      %p206 = pnand %p204, %p205
      %p207 = pneg %p206
      // Predicated region
      $region29: #{tpu_custom_call.1} parent=5 // pred_check
        _
      $region30: #{tpu_custom_call.1} parent=5 // pred_check_branch
        %209 = sbr.rel (%p206) target = $region32
      $region31: #{tpu_custom_call.1} parent=5 // pred_region
        %s210 = ssub.s32 %s18, 1
        %s211 = sand.u32 %s31, 1
        %s212 = scalar_lea.sflag [#allocation3], %s211
        %s213 = sand.u32 %s31, 1
        %s214 = smul.addr %s213, 8
        %s215 = scalar_lea.vmem [#allocation2], %s214
        // Predicated region
        $region33: #{tpu_custom_call.1} parent=31 // pred_check
          %p216 = pneg %p44
        $region34: #{tpu_custom_call.1} parent=31 // pred_check_branch
          %218 = sbr.rel (%p216) target = $region36
        $region35: #{tpu_custom_call.1} parent=31 // pred_region
          %220 = dma.done %s212, 128
        $region36: #{tpu_custom_call.1} parent=31 // pred_fallthru
          _
        %s221 = sand.u32 %s23, 1
        %s222 = scalar_lea.sflag [#allocation6], %s221
        %s223 = sand.u32 %s57, 1
        %s224 = smul.addr %s223, 4096
        %s225 = scalar_lea.vmem [#allocation5], %s224
        // Predicated region
        $region37: #{tpu_custom_call.1} parent=31 // pred_check
          %p226 = pneg %p70
        $region38: #{tpu_custom_call.1} parent=31 // pred_check_branch
          %228 = sbr.rel (%p226) target = $region40
        $region39: #{tpu_custom_call.1} parent=31 // pred_region
          %230 = dma.done %s222, 65536
        $region40: #{tpu_custom_call.1} parent=31 // pred_fallthru
          _
        %s231 = sand.u32 %s23, 1
        %s232 = scalar_lea.sflag [#allocation6], %s231
        %s233 = sand.u32 %s83, 1
        %s234 = smul.addr %s233, 16
        %s235 = scalar_lea.vmem [#allocation7], %s234
        // Predicated region
        $region41: #{tpu_custom_call.1} parent=31 // pred_check
          %p236 = pneg %p96
        $region42: #{tpu_custom_call.1} parent=31 // pred_check_branch
          %238 = sbr.rel (%p236) target = $region44
        $region43: #{tpu_custom_call.1} parent=31 // pred_region
          %240 = dma.done %s232, 256
        $region44: #{tpu_custom_call.1} parent=31 // pred_fallthru
          _
        %s241 = sand.u32 %s31, 1
        %s242 = scalar_lea.sflag [#allocation3], %s241
        %s243 = sand.u32 %s31, 1
        %s244 = smul.addr %s243, 8
        %s245 = scalar_lea.vmem [#allocation2], %s244
        %p246 = pneg %p44
        %p247 = pneg %p41
        %s248 = sand.u32 %s23, 1
        %s249 = scalar_lea.sflag [#allocation6], %s248
        %s250 = sand.u32 %s57, 1
        %s251 = smul.addr %s250, 4096
        %s252 = scalar_lea.vmem [#allocation5], %s251
        %p253 = pneg %p70
        %p254 = pneg %p67
        %s255 = sand.u32 %s23, 1
        %s256 = scalar_lea.sflag [#allocation6], %s255
        %s257 = sand.u32 %s83, 1
        %s258 = smul.addr %s257, 16
        %s259 = scalar_lea.vmem [#allocation7], %s258
        %p260 = pneg %p96
        %p261 = pneg %p93
        %p262 = pneg %p122
        %p263 = pneg %p119
        %s264 = sand.u32 %s109, 1
        %s265 = scalar_lea.sflag [#allocation4], %s264
        %s266 = sand.u32 %s109, 1
        %s267 = smul.addr %s266, 8
        %s268 = scalar_lea.vmem [#allocation8], %s267
        %v269 = vld [vmem:[%s215] sm:$0xff]
        %v270 = vmul.f32 %v269, %v269
        %272 = vst [vmem:[#allocation1] ss:$4 sm:$0xff] %v270
        %v273 = vld.sshfl [vmem:[#allocation1] sm:$0xff pattern:$0x73625140]
        %v274 = vld.sshfl [vmem:[#allocation1 + $0x8] sm:$0xff pattern:$0x73625140]
        %v275 = vld.sshfl [vmem:[#allocation1 + $0x10] sm:$0xff pattern:$0x73625140]
        %v276 = vld.sshfl [vmem:[#allocation1 + $0x18] sm:$0xff pattern:$0x73625140]
        %vm281 = vcmask 1041408
        %v282 = vsel %vm281, %v273, 0.0
        %v283 = vsel %vm281, %v274, 0.0
        %v284 = vadd.f32 %v282, %v283
        %v285 = vsel %vm281, %v275, 0.0
        %v286 = vadd.f32 %v284, %v285
        %v287 = vsel %vm281, %v276, 0.0
        %v288 = vadd.f32 %v286, %v287
        %289 = vadd.xlane.f32.xlu0 %v288
        %v290 = vpop.xlane.xlu0 %289
        %v291 = vrcp.pop 512.0
        %v292 = vmul.f32 512.0, %v291
        %v293 = vsub.f32 1.0, %v292
        %v294 = vmul.f32 %v291, %v293
        %v295 = vadd.f32 %v291, %v294
        %vm296 = vweird.f32 %v291
        %v297 = vsel %vm296, %v291, %v295
        %v298 = vmul.f32 %v290, %v297
        %v299 = vadd.f32 %v298, 1e-08
        %v300 = vrsqrt.pop %v299
        %v301 = vmul.f32 %v300, %v299
        %v302 = vmul.f32 %v301, %v300
        %v303 = vmul.f32 0.5, %v302
        %v304 = vsub.f32 1.5, %v303
        %v305 = vmul.f32 %v300, %v304
        %vm306 = vweird.f32 %v299
        %vm307 = vweird.f32 %v300
        %vm308 = vmor %vm306, %vm307
        %v309 = vsel %vm308, %v300, %v305
        %v312 = vunpack.c.l.s4 269488144
        %v313 = vunpack.c.0.s8 %v312
        %v314 = vperm.slane %v309, %v313
        %v316 = vmul.f32 %v269, %v314
        %v317 = vld [vmem:[%s225] sm:$0xff]
        %v318 = vld [vmem:[%s225 + $0x8] sm:$0xff]
        %v319 = vld [vmem:[%s225 + $0x10] sm:$0xff]
        %v320 = vld [vmem:[%s225 + $0x18] sm:$0xff]
        %v321 = vld [vmem:[%s225 + $0x20] sm:$0xff]
        %v322 = vld [vmem:[%s225 + $0x28] sm:$0xff]
        %v323 = vld [vmem:[%s225 + $0x30] sm:$0xff]
        %v324 = vld [vmem:[%s225 + $0x38] sm:$0xff]
        %v325 = vld [vmem:[%s225 + $0x40] sm:$0xff]
        %v326 = vld [vmem:[%s225 + $0x48] sm:$0xff]
        %v327 = vld [vmem:[%s225 + $0x50] sm:$0xff]
        %v328 = vld [vmem:[%s225 + $0x58] sm:$0xff]
        %v329 = vld [vmem:[%s225 + $0x60] sm:$0xff]
        %v330 = vld [vmem:[%s225 + $0x68] sm:$0xff]
        %v331 = vld [vmem:[%s225 + $0x70] sm:$0xff]
        %v332 = vld [vmem:[%s225 + $0x78] sm:$0xff]
        %v333 = vld [vmem:[%s225 + $0x80] sm:$0xff]
        %v334 = vld [vmem:[%s225 + $0x88] sm:$0xff]
        %v335 = vld [vmem:[%s225 + $0x90] sm:$0xff]
        %v336 = vld [vmem:[%s225 + $0x98] sm:$0xff]
        %v337 = vld [vmem:[%s225 + $0xa0] sm:$0xff]
        %v338 = vld [vmem:[%s225 + $0xa8] sm:$0xff]
        %v339 = vld [vmem:[%s225 + $0xb0] sm:$0xff]
        %v340 = vld [vmem:[%s225 + $0xb8] sm:$0xff]
        %v341 = vld [vmem:[%s225 + $0xc0] sm:$0xff]
        %v342 = vld [vmem:[%s225 + $0xc8] sm:$0xff]
        %v343 = vld [vmem:[%s225 + $0xd0] sm:$0xff]
        %v344 = vld [vmem:[%s225 + $0xd8] sm:$0xff]
        %v345 = vld [vmem:[%s225 + $0xe0] sm:$0xff]
        %v346 = vld [vmem:[%s225 + $0xe8] sm:$0xff]
        %v347 = vld [vmem:[%s225 + $0xf0] sm:$0xff]
        %v348 = vld [vmem:[%s225 + $0xf8] sm:$0xff]
        %v349 = vld [vmem:[%s225 + $0x100] sm:$0xff]
        %v350 = vld [vmem:[%s225 + $0x108] sm:$0xff]
        %v351 = vld [vmem:[%s225 + $0x110] sm:$0xff]
        %v352 = vld [vmem:[%s225 + $0x118] sm:$0xff]
        %v353 = vld [vmem:[%s225 + $0x120] sm:$0xff]
        %v354 = vld [vmem:[%s225 + $0x128] sm:$0xff]
        %v355 = vld [vmem:[%s225 + $0x130] sm:$0xff]
        %v356 = vld [vmem:[%s225 + $0x138] sm:$0xff]
        %v357 = vld [vmem:[%s225 + $0x140] sm:$0xff]
        %v358 = vld [vmem:[%s225 + $0x148] sm:$0xff]
        %v359 = vld [vmem:[%s225 + $0x150] sm:$0xff]
        %v360 = vld [vmem:[%s225 + $0x158] sm:$0xff]
        %v361 = vld [vmem:[%s225 + $0x160] sm:$0xff]
        %v362 = vld [vmem:[%s225 + $0x168] sm:$0xff]
        %v363 = vld [vmem:[%s225 + $0x170] sm:$0xff]
        %v364 = vld [vmem:[%s225 + $0x178] sm:$0xff]
        %v365 = vld [vmem:[%s225 + $0x180] sm:$0xff]
        %v366 = vld [vmem:[%s225 + $0x188] sm:$0xff]
        %v367 = vld [vmem:[%s225 + $0x190] sm:$0xff]
        %v368 = vld [vmem:[%s225 + $0x198] sm:$0xff]
        %v369 = vld [vmem:[%s225 + $0x1a0] sm:$0xff]
        %v370 = vld [vmem:[%s225 + $0x1a8] sm:$0xff]
        %v371 = vld [vmem:[%s225 + $0x1b0] sm:$0xff]
        %v372 = vld [vmem:[%s225 + $0x1b8] sm:$0xff]
        %v373 = vld [vmem:[%s225 + $0x1c0] sm:$0xff]
        %v374 = vld [vmem:[%s225 + $0x1c8] sm:$0xff]
        %v375 = vld [vmem:[%s225 + $0x1d0] sm:$0xff]
        %v376 = vld [vmem:[%s225 + $0x1d8] sm:$0xff]
        %v377 = vld [vmem:[%s225 + $0x1e0] sm:$0xff]
        %v378 = vld [vmem:[%s225 + $0x1e8] sm:$0xff]
        %v379 = vld [vmem:[%s225 + $0x1f0] sm:$0xff]
        %v380 = vld [vmem:[%s225 + $0x1f8] sm:$0xff]
        %v381 = vld [vmem:[%s225 + $0x200] sm:$0xff]
        %v382 = vld [vmem:[%s225 + $0x208] sm:$0xff]
        %v383 = vld [vmem:[%s225 + $0x210] sm:$0xff]
        %v384 = vld [vmem:[%s225 + $0x218] sm:$0xff]
        %v385 = vld [vmem:[%s225 + $0x220] sm:$0xff]
        %v386 = vld [vmem:[%s225 + $0x228] sm:$0xff]
        %v387 = vld [vmem:[%s225 + $0x230] sm:$0xff]
        %v388 = vld [vmem:[%s225 + $0x238] sm:$0xff]
        %v389 = vld [vmem:[%s225 + $0x240] sm:$0xff]
        %v390 = vld [vmem:[%s225 + $0x248] sm:$0xff]
        %v391 = vld [vmem:[%s225 + $0x250] sm:$0xff]
        %v392 = vld [vmem:[%s225 + $0x258] sm:$0xff]
        %v393 = vld [vmem:[%s225 + $0x260] sm:$0xff]
        %v394 = vld [vmem:[%s225 + $0x268] sm:$0xff]
        %v395 = vld [vmem:[%s225 + $0x270] sm:$0xff]
        %v396 = vld [vmem:[%s225 + $0x278] sm:$0xff]
        %v397 = vld [vmem:[%s225 + $0x280] sm:$0xff]
        %v398 = vld [vmem:[%s225 + $0x288] sm:$0xff]
        %v399 = vld [vmem:[%s225 + $0x290] sm:$0xff]
        %v400 = vld [vmem:[%s225 + $0x298] sm:$0xff]
        %v401 = vld [vmem:[%s225 + $0x2a0] sm:$0xff]
        %v402 = vld [vmem:[%s225 + $0x2a8] sm:$0xff]
        %v403 = vld [vmem:[%s225 + $0x2b0] sm:$0xff]
        %v404 = vld [vmem:[%s225 + $0x2b8] sm:$0xff]
        %v405 = vld [vmem:[%s225 + $0x2c0] sm:$0xff]
        %v406 = vld [vmem:[%s225 + $0x2c8] sm:$0xff]
        %v407 = vld [vmem:[%s225 + $0x2d0] sm:$0xff]
        %v408 = vld [vmem:[%s225 + $0x2d8] sm:$0xff]
        %v409 = vld [vmem:[%s225 + $0x2e0] sm:$0xff]
        %v410 = vld [vmem:[%s225 + $0x2e8] sm:$0xff]
        %v411 = vld [vmem:[%s225 + $0x2f0] sm:$0xff]
        %v412 = vld [vmem:[%s225 + $0x2f8] sm:$0xff]
        %v413 = vld [vmem:[%s225 + $0x300] sm:$0xff]
        %v414 = vld [vmem:[%s225 + $0x308] sm:$0xff]
        %v415 = vld [vmem:[%s225 + $0x310] sm:$0xff]
        %v416 = vld [vmem:[%s225 + $0x318] sm:$0xff]
        %v417 = vld [vmem:[%s225 + $0x320] sm:$0xff]
        %v418 = vld [vmem:[%s225 + $0x328] sm:$0xff]
        %v419 = vld [vmem:[%s225 + $0x330] sm:$0xff]
        %v420 = vld [vmem:[%s225 + $0x338] sm:$0xff]
        %v421 = vld [vmem:[%s225 + $0x340] sm:$0xff]
        %v422 = vld [vmem:[%s225 + $0x348] sm:$0xff]
        %v423 = vld [vmem:[%s225 + $0x350] sm:$0xff]
        %v424 = vld [vmem:[%s225 + $0x358] sm:$0xff]
        %v425 = vld [vmem:[%s225 + $0x360] sm:$0xff]
        %v426 = vld [vmem:[%s225 + $0x368] sm:$0xff]
        %v427 = vld [vmem:[%s225 + $0x370] sm:$0xff]
        %v428 = vld [vmem:[%s225 + $0x378] sm:$0xff]
        %v429 = vld [vmem:[%s225 + $0x380] sm:$0xff]
        %v430 = vld [vmem:[%s225 + $0x388] sm:$0xff]
        %v431 = vld [vmem:[%s225 + $0x390] sm:$0xff]
        %v432 = vld [vmem:[%s225 + $0x398] sm:$0xff]
        %v433 = vld [vmem:[%s225 + $0x3a0] sm:$0xff]
        %v434 = vld [vmem:[%s225 + $0x3a8] sm:$0xff]
        %v435 = vld [vmem:[%s225 + $0x3b0] sm:$0xff]
        %v436 = vld [vmem:[%s225 + $0x3b8] sm:$0xff]
        %v437 = vld [vmem:[%s225 + $0x3c0] sm:$0xff]
        %v438 = vld [vmem:[%s225 + $0x3c8] sm:$0xff]
        %v439 = vld [vmem:[%s225 + $0x3d0] sm:$0xff]
        %v440 = vld [vmem:[%s225 + $0x3d8] sm:$0xff]
        %v441 = vld [vmem:[%s225 + $0x3e0] sm:$0xff]
        %v442 = vld [vmem:[%s225 + $0x3e8] sm:$0xff]
        %v443 = vld [vmem:[%s225 + $0x3f0] sm:$0xff]
        %v444 = vld [vmem:[%s225 + $0x3f8] sm:$0xff]
        %446 = vst [vmem:[#allocation1] ss:$4 sm:$0xff] %v316
        %v447 = vld.sshfl [vmem:[#allocation1] sm:$0xff pattern:$0x73625140]
        %v448 = vld.sshfl [vmem:[#allocation1 + $0x8] sm:$0xff pattern:$0x73625140]
        %v449 = vld.sshfl [vmem:[#allocation1 + $0x10] sm:$0xff pattern:$0x73625140]
        %v450 = vld.sshfl [vmem:[#allocation1 + $0x18] sm:$0xff pattern:$0x73625140]
        %v455 = vpack.c.bf16 %v447, %v447
        %v456 = vpack.c.bf16 %v448, %v448
        %v457 = vpack.c.bf16 %v449, %v449
        %v458 = vpack.c.bf16 %v450, %v450
        %v459 = vld [vmem:[%s235] sm:$0xf]
        %v461 = vperm.slane %v459, 0
        %v462 = vperm.slane %v459, 1
        %v463 = vperm.slane %v459, 2
        %v464 = vperm.slane %v459, 3
        %v597 = vunpack.c.l.b16 %v317
        %v598 = vunpack.c.h.b16 %v317
        %v599 = vunpack.c.l.b16 %v318
        %v600 = vunpack.c.h.b16 %v318
        %v601 = vunpack.c.l.b16 %v319
        %v602 = vunpack.c.h.b16 %v319
        %v603 = vunpack.c.l.b16 %v320
        %v604 = vunpack.c.h.b16 %v320
        %v605 = vunpack.c.l.b16 %v321
        %v606 = vunpack.c.h.b16 %v321
        %v607 = vunpack.c.l.b16 %v322
        %v608 = vunpack.c.h.b16 %v322
        %v609 = vunpack.c.l.b16 %v323
        %v610 = vunpack.c.h.b16 %v323
        %v611 = vunpack.c.l.b16 %v324
        %v612 = vunpack.c.h.b16 %v324
        %v613 = vunpack.c.l.b16 %v325
        %v614 = vunpack.c.h.b16 %v325
        %v615 = vunpack.c.l.b16 %v326
        %v616 = vunpack.c.h.b16 %v326
        %v617 = vunpack.c.l.b16 %v327
        %v618 = vunpack.c.h.b16 %v327
        %v619 = vunpack.c.l.b16 %v328
        %v620 = vunpack.c.h.b16 %v328
        %v621 = vunpack.c.l.b16 %v329
        %v622 = vunpack.c.h.b16 %v329
        %v623 = vunpack.c.l.b16 %v330
        %v624 = vunpack.c.h.b16 %v330
        %v625 = vunpack.c.l.b16 %v331
        %v626 = vunpack.c.h.b16 %v331
        %v627 = vunpack.c.l.b16 %v332
        %v628 = vunpack.c.h.b16 %v332
        %v629 = vunpack.c.l.b16 %v333
        %v630 = vunpack.c.h.b16 %v333
        %v631 = vunpack.c.l.b16 %v334
        %v632 = vunpack.c.h.b16 %v334
        %v633 = vunpack.c.l.b16 %v335
        %v634 = vunpack.c.h.b16 %v335
        %v635 = vunpack.c.l.b16 %v336
        %v636 = vunpack.c.h.b16 %v336
        %v637 = vunpack.c.l.b16 %v337
        %v638 = vunpack.c.h.b16 %v337
        %v639 = vunpack.c.l.b16 %v338
        %v640 = vunpack.c.h.b16 %v338
        %v641 = vunpack.c.l.b16 %v339
        %v642 = vunpack.c.h.b16 %v339
        %v643 = vunpack.c.l.b16 %v340
        %v644 = vunpack.c.h.b16 %v340
        %v645 = vunpack.c.l.b16 %v341
        %v646 = vunpack.c.h.b16 %v341
        %v647 = vunpack.c.l.b16 %v342
        %v648 = vunpack.c.h.b16 %v342
        %v649 = vunpack.c.l.b16 %v343
        %v650 = vunpack.c.h.b16 %v343
        %v651 = vunpack.c.l.b16 %v344
        %v652 = vunpack.c.h.b16 %v344
        %v653 = vunpack.c.l.b16 %v345
        %v654 = vunpack.c.h.b16 %v345
        %v655 = vunpack.c.l.b16 %v346
        %v656 = vunpack.c.h.b16 %v346
        %v657 = vunpack.c.l.b16 %v347
        %v658 = vunpack.c.h.b16 %v347
        %v659 = vunpack.c.l.b16 %v348
        %v660 = vunpack.c.h.b16 %v348
        %v661 = vunpack.c.l.b16 %v349
        %v662 = vunpack.c.h.b16 %v349
        %v663 = vunpack.c.l.b16 %v350
        %v664 = vunpack.c.h.b16 %v350
        %v665 = vunpack.c.l.b16 %v351
        %v666 = vunpack.c.h.b16 %v351
        %v667 = vunpack.c.l.b16 %v352
        %v668 = vunpack.c.h.b16 %v352
        %v669 = vunpack.c.l.b16 %v353
        %v670 = vunpack.c.h.b16 %v353
        %v671 = vunpack.c.l.b16 %v354
        %v672 = vunpack.c.h.b16 %v354
        %v673 = vunpack.c.l.b16 %v355
        %v674 = vunpack.c.h.b16 %v355
        %v675 = vunpack.c.l.b16 %v356
        %v676 = vunpack.c.h.b16 %v356
        %v677 = vunpack.c.l.b16 %v357
        %v678 = vunpack.c.h.b16 %v357
        %v679 = vunpack.c.l.b16 %v358
        %v680 = vunpack.c.h.b16 %v358
        %v681 = vunpack.c.l.b16 %v359
        %v682 = vunpack.c.h.b16 %v359
        %v683 = vunpack.c.l.b16 %v360
        %v684 = vunpack.c.h.b16 %v360
        %v685 = vunpack.c.l.b16 %v361
        %v686 = vunpack.c.h.b16 %v361
        %v687 = vunpack.c.l.b16 %v362
        %v688 = vunpack.c.h.b16 %v362
        %v689 = vunpack.c.l.b16 %v363
        %v690 = vunpack.c.h.b16 %v363
        %v691 = vunpack.c.l.b16 %v364
        %v692 = vunpack.c.h.b16 %v364
        %v693 = vunpack.c.l.b16 %v365
        %v694 = vunpack.c.h.b16 %v365
        %v695 = vunpack.c.l.b16 %v366
        %v696 = vunpack.c.h.b16 %v366
        %v697 = vunpack.c.l.b16 %v367
        %v698 = vunpack.c.h.b16 %v367
        %v699 = vunpack.c.l.b16 %v368
        %v700 = vunpack.c.h.b16 %v368
        %v701 = vunpack.c.l.b16 %v369
        %v702 = vunpack.c.h.b16 %v369
        %v703 = vunpack.c.l.b16 %v370
        %v704 = vunpack.c.h.b16 %v370
        %v705 = vunpack.c.l.b16 %v371
        %v706 = vunpack.c.h.b16 %v371
        %v707 = vunpack.c.l.b16 %v372
        %v708 = vunpack.c.h.b16 %v372
        %v709 = vunpack.c.l.b16 %v373
        %v710 = vunpack.c.h.b16 %v373
        %v711 = vunpack.c.l.b16 %v374
        %v712 = vunpack.c.h.b16 %v374
        %v713 = vunpack.c.l.b16 %v375
        %v714 = vunpack.c.h.b16 %v375
        %v715 = vunpack.c.l.b16 %v376
        %v716 = vunpack.c.h.b16 %v376
        %v717 = vunpack.c.l.b16 %v377
        %v718 = vunpack.c.h.b16 %v377
        %v719 = vunpack.c.l.b16 %v378
        %v720 = vunpack.c.h.b16 %v378
        %v721 = vunpack.c.l.b16 %v379
        %v722 = vunpack.c.h.b16 %v379
        %v723 = vunpack.c.l.b16 %v380
        %v724 = vunpack.c.h.b16 %v380
        %v725 = vunpack.c.l.b16 %v381
        %v726 = vunpack.c.h.b16 %v381
        %v727 = vunpack.c.l.b16 %v382
        %v728 = vunpack.c.h.b16 %v382
        %v729 = vunpack.c.l.b16 %v383
        %v730 = vunpack.c.h.b16 %v383
        %v731 = vunpack.c.l.b16 %v384
        %v732 = vunpack.c.h.b16 %v384
        %v733 = vunpack.c.l.b16 %v385
        %v734 = vunpack.c.h.b16 %v385
        %v735 = vunpack.c.l.b16 %v386
        %v736 = vunpack.c.h.b16 %v386
        %v737 = vunpack.c.l.b16 %v387
        %v738 = vunpack.c.h.b16 %v387
        %v739 = vunpack.c.l.b16 %v388
        %v740 = vunpack.c.h.b16 %v388
        %v741 = vunpack.c.l.b16 %v389
        %v742 = vunpack.c.h.b16 %v389
        %v743 = vunpack.c.l.b16 %v390
        %v744 = vunpack.c.h.b16 %v390
        %v745 = vunpack.c.l.b16 %v391
        %v746 = vunpack.c.h.b16 %v391
        %v747 = vunpack.c.l.b16 %v392
        %v748 = vunpack.c.h.b16 %v392
        %v749 = vunpack.c.l.b16 %v393
        %v750 = vunpack.c.h.b16 %v393
        %v751 = vunpack.c.l.b16 %v394
        %v752 = vunpack.c.h.b16 %v394
        %v753 = vunpack.c.l.b16 %v395
        %v754 = vunpack.c.h.b16 %v395
        %v755 = vunpack.c.l.b16 %v396
        %v756 = vunpack.c.h.b16 %v396
        %v757 = vunpack.c.l.b16 %v397
        %v758 = vunpack.c.h.b16 %v397
        %v759 = vunpack.c.l.b16 %v398
        %v760 = vunpack.c.h.b16 %v398
        %v761 = vunpack.c.l.b16 %v399
        %v762 = vunpack.c.h.b16 %v399
        %v763 = vunpack.c.l.b16 %v400
        %v764 = vunpack.c.h.b16 %v400
        %v765 = vunpack.c.l.b16 %v401
        %v766 = vunpack.c.h.b16 %v401
        %v767 = vunpack.c.l.b16 %v402
        %v768 = vunpack.c.h.b16 %v402
        %v769 = vunpack.c.l.b16 %v403
        %v770 = vunpack.c.h.b16 %v403
        %v771 = vunpack.c.l.b16 %v404
        %v772 = vunpack.c.h.b16 %v404
        %v773 = vunpack.c.l.b16 %v405
        %v774 = vunpack.c.h.b16 %v405
        %v775 = vunpack.c.l.b16 %v406
        %v776 = vunpack.c.h.b16 %v406
        %v777 = vunpack.c.l.b16 %v407
        %v778 = vunpack.c.h.b16 %v407
        %v779 = vunpack.c.l.b16 %v408
        %v780 = vunpack.c.h.b16 %v408
        %v781 = vunpack.c.l.b16 %v409
        %v782 = vunpack.c.h.b16 %v409
        %v783 = vunpack.c.l.b16 %v410
        %v784 = vunpack.c.h.b16 %v410
        %v785 = vunpack.c.l.b16 %v411
        %v786 = vunpack.c.h.b16 %v411
        %v787 = vunpack.c.l.b16 %v412
        %v788 = vunpack.c.h.b16 %v412
        %v789 = vunpack.c.l.b16 %v413
        %v790 = vunpack.c.h.b16 %v413
        %v791 = vunpack.c.l.b16 %v414
        %v792 = vunpack.c.h.b16 %v414
        %v793 = vunpack.c.l.b16 %v415
        %v794 = vunpack.c.h.b16 %v415
        %v795 = vunpack.c.l.b16 %v416
        %v796 = vunpack.c.h.b16 %v416
        %v797 = vunpack.c.l.b16 %v417
        %v798 = vunpack.c.h.b16 %v417
        %v799 = vunpack.c.l.b16 %v418
        %v800 = vunpack.c.h.b16 %v418
        %v801 = vunpack.c.l.b16 %v419
        %v802 = vunpack.c.h.b16 %v419
        %v803 = vunpack.c.l.b16 %v420
        %v804 = vunpack.c.h.b16 %v420
        %v805 = vunpack.c.l.b16 %v421
        %v806 = vunpack.c.h.b16 %v421
        %v807 = vunpack.c.l.b16 %v422
        %v808 = vunpack.c.h.b16 %v422
        %v809 = vunpack.c.l.b16 %v423
        %v810 = vunpack.c.h.b16 %v423
        %v811 = vunpack.c.l.b16 %v424
        %v812 = vunpack.c.h.b16 %v424
        %v813 = vunpack.c.l.b16 %v425
        %v814 = vunpack.c.h.b16 %v425
        %v815 = vunpack.c.l.b16 %v426
        %v816 = vunpack.c.h.b16 %v426
        %v817 = vunpack.c.l.b16 %v427
        %v818 = vunpack.c.h.b16 %v427
        %v819 = vunpack.c.l.b16 %v428
        %v820 = vunpack.c.h.b16 %v428
        %v821 = vunpack.c.l.b16 %v429
        %v822 = vunpack.c.h.b16 %v429
        %v823 = vunpack.c.l.b16 %v430
        %v824 = vunpack.c.h.b16 %v430
        %v825 = vunpack.c.l.b16 %v431
        %v826 = vunpack.c.h.b16 %v431
        %v827 = vunpack.c.l.b16 %v432
        %v828 = vunpack.c.h.b16 %v432
        %v829 = vunpack.c.l.b16 %v433
        %v830 = vunpack.c.h.b16 %v433
        %v831 = vunpack.c.l.b16 %v434
        %v832 = vunpack.c.h.b16 %v434
        %v833 = vunpack.c.l.b16 %v435
        %v834 = vunpack.c.h.b16 %v435
        %v835 = vunpack.c.l.b16 %v436
        %v836 = vunpack.c.h.b16 %v436
        %v837 = vunpack.c.l.b16 %v437
        %v838 = vunpack.c.h.b16 %v437
        %v839 = vunpack.c.l.b16 %v438
        %v840 = vunpack.c.h.b16 %v438
        %v841 = vunpack.c.l.b16 %v439
        %v842 = vunpack.c.h.b16 %v439
        %v843 = vunpack.c.l.b16 %v440
        %v844 = vunpack.c.h.b16 %v440
        %v845 = vunpack.c.l.b16 %v441
        %v846 = vunpack.c.h.b16 %v441
        %v847 = vunpack.c.l.b16 %v442
        %v848 = vunpack.c.h.b16 %v442
        %v849 = vunpack.c.l.b16 %v443
        %v850 = vunpack.c.h.b16 %v443
        %v851 = vunpack.c.l.b16 %v444
        %v852 = vunpack.c.h.b16 %v444
        %v853 = vpack.c.b16 %v601, %v597
        %v854 = vpack.c.b16 %v602, %v598
        %v855 = vpack.c.b16 %v603, %v599
        %v856 = vpack.c.b16 %v604, %v600
        %v857 = vpack.c.b16 %v609, %v605
        %v858 = vpack.c.b16 %v610, %v606
        %v859 = vpack.c.b16 %v611, %v607
        %v860 = vpack.c.b16 %v612, %v608
        %v861 = vpack.c.b16 %v617, %v613
        %v862 = vpack.c.b16 %v618, %v614
        %v863 = vpack.c.b16 %v619, %v615
        %v864 = vpack.c.b16 %v620, %v616
        %v865 = vpack.c.b16 %v625, %v621
        %v866 = vpack.c.b16 %v626, %v622
        %v867 = vpack.c.b16 %v627, %v623
        %v868 = vpack.c.b16 %v628, %v624
        %v869 = vpack.c.b16 %v633, %v629
        %v870 = vpack.c.b16 %v634, %v630
        %v871 = vpack.c.b16 %v635, %v631
        %v872 = vpack.c.b16 %v636, %v632
        %v873 = vpack.c.b16 %v641, %v637
        %v874 = vpack.c.b16 %v642, %v638
        %v875 = vpack.c.b16 %v643, %v639
        %v876 = vpack.c.b16 %v644, %v640
        %v877 = vpack.c.b16 %v649, %v645
        %v878 = vpack.c.b16 %v650, %v646
        %v879 = vpack.c.b16 %v651, %v647
        %v880 = vpack.c.b16 %v652, %v648
        %v881 = vpack.c.b16 %v657, %v653
        %v882 = vpack.c.b16 %v658, %v654
        %v883 = vpack.c.b16 %v659, %v655
        %v884 = vpack.c.b16 %v660, %v656
        %v885 = vpack.c.b16 %v665, %v661
        %v886 = vpack.c.b16 %v666, %v662
        %v887 = vpack.c.b16 %v667, %v663
        %v888 = vpack.c.b16 %v668, %v664
        %v889 = vpack.c.b16 %v673, %v669
        %v890 = vpack.c.b16 %v674, %v670
        %v891 = vpack.c.b16 %v675, %v671
        %v892 = vpack.c.b16 %v676, %v672
        %v893 = vpack.c.b16 %v681, %v677
        %v894 = vpack.c.b16 %v682, %v678
        %v895 = vpack.c.b16 %v683, %v679
        %v896 = vpack.c.b16 %v684, %v680
        %v897 = vpack.c.b16 %v689, %v685
        %v898 = vpack.c.b16 %v690, %v686
        %v899 = vpack.c.b16 %v691, %v687
        %v900 = vpack.c.b16 %v692, %v688
        %v901 = vpack.c.b16 %v697, %v693
        %v902 = vpack.c.b16 %v698, %v694
        %v903 = vpack.c.b16 %v699, %v695
        %v904 = vpack.c.b16 %v700, %v696
        %v905 = vpack.c.b16 %v705, %v701
        %v906 = vpack.c.b16 %v706, %v702
        %v907 = vpack.c.b16 %v707, %v703
        %v908 = vpack.c.b16 %v708, %v704
        %v909 = vpack.c.b16 %v713, %v709
        %v910 = vpack.c.b16 %v714, %v710
        %v911 = vpack.c.b16 %v715, %v711
        %v912 = vpack.c.b16 %v716, %v712
        %v913 = vpack.c.b16 %v721, %v717
        %v914 = vpack.c.b16 %v722, %v718
        %v915 = vpack.c.b16 %v723, %v719
        %v916 = vpack.c.b16 %v724, %v720
        %v917 = vpack.c.b16 %v729, %v725
        %v918 = vpack.c.b16 %v730, %v726
        %v919 = vpack.c.b16 %v731, %v727
        %v920 = vpack.c.b16 %v732, %v728
        %v921 = vpack.c.b16 %v737, %v733
        %v922 = vpack.c.b16 %v738, %v734
        %v923 = vpack.c.b16 %v739, %v735
        %v924 = vpack.c.b16 %v740, %v736
        %v925 = vpack.c.b16 %v745, %v741
        %v926 = vpack.c.b16 %v746, %v742
        %v927 = vpack.c.b16 %v747, %v743
        %v928 = vpack.c.b16 %v748, %v744
        %v929 = vpack.c.b16 %v753, %v749
        %v930 = vpack.c.b16 %v754, %v750
        %v931 = vpack.c.b16 %v755, %v751
        %v932 = vpack.c.b16 %v756, %v752
        %v933 = vpack.c.b16 %v761, %v757
        %v934 = vpack.c.b16 %v762, %v758
        %v935 = vpack.c.b16 %v763, %v759
        %v936 = vpack.c.b16 %v764, %v760
        %v937 = vpack.c.b16 %v769, %v765
        %v938 = vpack.c.b16 %v770, %v766
        %v939 = vpack.c.b16 %v771, %v767
        %v940 = vpack.c.b16 %v772, %v768
        %v941 = vpack.c.b16 %v777, %v773
        %v942 = vpack.c.b16 %v778, %v774
        %v943 = vpack.c.b16 %v779, %v775
        %v944 = vpack.c.b16 %v780, %v776
        %v945 = vpack.c.b16 %v785, %v781
        %v946 = vpack.c.b16 %v786, %v782
        %v947 = vpack.c.b16 %v787, %v783
        %v948 = vpack.c.b16 %v788, %v784
        %v949 = vpack.c.b16 %v793, %v789
        %v950 = vpack.c.b16 %v794, %v790
        %v951 = vpack.c.b16 %v795, %v791
        %v952 = vpack.c.b16 %v796, %v792
        %v953 = vpack.c.b16 %v801, %v797
        %v954 = vpack.c.b16 %v802, %v798
        %v955 = vpack.c.b16 %v803, %v799
        %v956 = vpack.c.b16 %v804, %v800
        %v957 = vpack.c.b16 %v809, %v805
        %v958 = vpack.c.b16 %v810, %v806
        %v959 = vpack.c.b16 %v811, %v807
        %v960 = vpack.c.b16 %v812, %v808
        %v961 = vpack.c.b16 %v817, %v813
        %v962 = vpack.c.b16 %v818, %v814
        %v963 = vpack.c.b16 %v819, %v815
        %v964 = vpack.c.b16 %v820, %v816
        %v965 = vpack.c.b16 %v825, %v821
        %v966 = vpack.c.b16 %v826, %v822
        %v967 = vpack.c.b16 %v827, %v823
        %v968 = vpack.c.b16 %v828, %v824
        %v969 = vpack.c.b16 %v833, %v829
        %v970 = vpack.c.b16 %v834, %v830
        %v971 = vpack.c.b16 %v835, %v831
        %v972 = vpack.c.b16 %v836, %v832
        %v973 = vpack.c.b16 %v841, %v837
        %v974 = vpack.c.b16 %v842, %v838
        %v975 = vpack.c.b16 %v843, %v839
        %v976 = vpack.c.b16 %v844, %v840
        %v977 = vpack.c.b16 %v849, %v845
        %v978 = vpack.c.b16 %v850, %v846
        %v979 = vpack.c.b16 %v851, %v847
        %v980 = vpack.c.b16 %v852, %v848
        %1109 = vmatpush.bf16.msra.mxu0 %v881
        %1110 = vmatpush.bf16.msra.mxu0 %v877
        %1111 = vmatpush.bf16.msra.mxu0 %v873
        %1112 = vmatpush.bf16.msra.mxu0 %v869
        %1113 = vmatpush.bf16.msra.mxu0 %v865
        %1114 = vmatpush.bf16.msra.mxu0 %v861
        %1115 = vmatpush.bf16.msra.mxu0 %v857
        %1116 = vmatpush.bf16.msra.mxu0 %v853
        %1117 = vmatmul.bf16.gmra.mxu0 %v455
        %v1118 = vpop.f32.mrf.mxu0
        %v1119 = vadd.f32 %v461, %v1118
        %v1120 = vpop.f32.mrf.mxu0
        %1121 = vdwg.mxu0
        %1122 = vmatpush.bf16.msra.mxu0 %v913
        %1123 = vmatpush.bf16.msra.mxu0 %v909
        %1124 = vmatpush.bf16.msra.mxu0 %v905
        %1125 = vmatpush.bf16.msra.mxu0 %v901
        %1126 = vmatpush.bf16.msra.mxu0 %v897
        %1127 = vmatpush.bf16.msra.mxu0 %v893
        %1128 = vmatpush.bf16.msra.mxu0 %v889
        %1129 = vmatpush.bf16.msra.mxu0 %v885
        %1130 = vmatmul.bf16.gmra.mxu0 %v456
        %v1131 = vpop.f32.mrf.mxu0
        %v1132 = vadd.f32 %v1119, %v1131
        %v1133 = vpop.f32.mrf.mxu0
        %1134 = vdwg.mxu0
        %1135 = vmatpush.bf16.msra.mxu0 %v945
        %1136 = vmatpush.bf16.msra.mxu0 %v941
        %1137 = vmatpush.bf16.msra.mxu0 %v937
        %1138 = vmatpush.bf16.msra.mxu0 %v933
        %1139 = vmatpush.bf16.msra.mxu0 %v929
        %1140 = vmatpush.bf16.msra.mxu0 %v925
        %1141 = vmatpush.bf16.msra.mxu0 %v921
        %1142 = vmatpush.bf16.msra.mxu0 %v917
        %1143 = vmatmul.bf16.gmra.mxu0 %v457
        %v1144 = vpop.f32.mrf.mxu0
        %v1145 = vadd.f32 %v1132, %v1144
        %v1146 = vpop.f32.mrf.mxu0
        %1147 = vdwg.mxu0
        %1148 = vmatpush.bf16.msra.mxu0 %v977
        %1149 = vmatpush.bf16.msra.mxu0 %v973
        %1150 = vmatpush.bf16.msra.mxu0 %v969
        %1151 = vmatpush.bf16.msra.mxu0 %v965
        %1152 = vmatpush.bf16.msra.mxu0 %v961
        %1153 = vmatpush.bf16.msra.mxu0 %v957
        %1154 = vmatpush.bf16.msra.mxu0 %v953
        %1155 = vmatpush.bf16.msra.mxu0 %v949
        %1156 = vmatmul.bf16.gmra.mxu0 %v458
        %v1157 = vpop.f32.mrf.mxu0
        %v1158 = vadd.f32 %v1145, %v1157
        %v1159 = vpop.f32.mrf.mxu0
        %1160 = vdwg.mxu0
        %1161 = vmatpush.bf16.msra.mxu0 %v882
        %1162 = vmatpush.bf16.msra.mxu0 %v878
        %1163 = vmatpush.bf16.msra.mxu0 %v874
        %1164 = vmatpush.bf16.msra.mxu0 %v870
        %1165 = vmatpush.bf16.msra.mxu0 %v866
        %1166 = vmatpush.bf16.msra.mxu0 %v862
        %1167 = vmatpush.bf16.msra.mxu0 %v858
        %1168 = vmatpush.bf16.msra.mxu0 %v854
        %1169 = vmatmul.bf16.gmra.mxu0 %v455
        %v1170 = vpop.f32.mrf.mxu0
        %v1171 = vadd.f32 %v462, %v1170
        %v1172 = vpop.f32.mrf.mxu0
        %1173 = vdwg.mxu0
        %1174 = vmatpush.bf16.msra.mxu0 %v914
        %1175 = vmatpush.bf16.msra.mxu0 %v910
        %1176 = vmatpush.bf16.msra.mxu0 %v906
        %1177 = vmatpush.bf16.msra.mxu0 %v902
        %1178 = vmatpush.bf16.msra.mxu0 %v898
        %1179 = vmatpush.bf16.msra.mxu0 %v894
        %1180 = vmatpush.bf16.msra.mxu0 %v890
        %1181 = vmatpush.bf16.msra.mxu0 %v886
        %1182 = vmatmul.bf16.gmra.mxu0 %v456
        %v1183 = vpop.f32.mrf.mxu0
        %v1184 = vadd.f32 %v1171, %v1183
        %v1185 = vpop.f32.mrf.mxu0
        %1186 = vdwg.mxu0
        %1187 = vmatpush.bf16.msra.mxu0 %v946
        %1188 = vmatpush.bf16.msra.mxu0 %v942
        %1189 = vmatpush.bf16.msra.mxu0 %v938
        %1190 = vmatpush.bf16.msra.mxu0 %v934
        %1191 = vmatpush.bf16.msra.mxu0 %v930
        %1192 = vmatpush.bf16.msra.mxu0 %v926
        %1193 = vmatpush.bf16.msra.mxu0 %v922
        %1194 = vmatpush.bf16.msra.mxu0 %v918
        %1195 = vmatmul.bf16.gmra.mxu0 %v457
        %v1196 = vpop.f32.mrf.mxu0
        %v1197 = vadd.f32 %v1184, %v1196
        %v1198 = vpop.f32.mrf.mxu0
        %1199 = vdwg.mxu0
        %1200 = vmatpush.bf16.msra.mxu0 %v978
        %1201 = vmatpush.bf16.msra.mxu0 %v974
        %1202 = vmatpush.bf16.msra.mxu0 %v970
        %1203 = vmatpush.bf16.msra.mxu0 %v966
        %1204 = vmatpush.bf16.msra.mxu0 %v962
        %1205 = vmatpush.bf16.msra.mxu0 %v958
        %1206 = vmatpush.bf16.msra.mxu0 %v954
        %1207 = vmatpush.bf16.msra.mxu0 %v950
        %1208 = vmatmul.bf16.gmra.mxu0 %v458
        %v1209 = vpop.f32.mrf.mxu0
        %v1210 = vadd.f32 %v1197, %v1209
        %v1211 = vpop.f32.mrf.mxu0
        %1212 = vdwg.mxu0
        %1213 = vmatpush.bf16.msra.mxu0 %v883
        %1214 = vmatpush.bf16.msra.mxu0 %v879
        %1215 = vmatpush.bf16.msra.mxu0 %v875
        %1216 = vmatpush.bf16.msra.mxu0 %v871
        %1217 = vmatpush.bf16.msra.mxu0 %v867
        %1218 = vmatpush.bf16.msra.mxu0 %v863
        %1219 = vmatpush.bf16.msra.mxu0 %v859
        %1220 = vmatpush.bf16.msra.mxu0 %v855
        %1221 = vmatmul.bf16.gmra.mxu0 %v455
        %v1222 = vpop.f32.mrf.mxu0
        %v1223 = vadd.f32 %v463, %v1222
        %v1224 = vpop.f32.mrf.mxu0
        %1225 = vdwg.mxu0
        %1226 = vmatpush.bf16.msra.mxu0 %v915
        %1227 = vmatpush.bf16.msra.mxu0 %v911
        %1228 = vmatpush.bf16.msra.mxu0 %v907
        %1229 = vmatpush.bf16.msra.mxu0 %v903
        %1230 = vmatpush.bf16.msra.mxu0 %v899
        %1231 = vmatpush.bf16.msra.mxu0 %v895
        %1232 = vmatpush.bf16.msra.mxu0 %v891
        %1233 = vmatpush.bf16.msra.mxu0 %v887
        %1234 = vmatmul.bf16.gmra.mxu0 %v456
        %v1235 = vpop.f32.mrf.mxu0
        %v1236 = vadd.f32 %v1223, %v1235
        %v1237 = vpop.f32.mrf.mxu0
        %1238 = vdwg.mxu0
        %1239 = vmatpush.bf16.msra.mxu0 %v947
        %1240 = vmatpush.bf16.msra.mxu0 %v943
        %1241 = vmatpush.bf16.msra.mxu0 %v939
        %1242 = vmatpush.bf16.msra.mxu0 %v935
        %1243 = vmatpush.bf16.msra.mxu0 %v931
        %1244 = vmatpush.bf16.msra.mxu0 %v927
        %1245 = vmatpush.bf16.msra.mxu0 %v923
        %1246 = vmatpush.bf16.msra.mxu0 %v919
        %1247 = vmatmul.bf16.gmra.mxu0 %v457
        %v1248 = vpop.f32.mrf.mxu0
        %v1249 = vadd.f32 %v1236, %v1248
        %v1250 = vpop.f32.mrf.mxu0
        %1251 = vdwg.mxu0
        %1252 = vmatpush.bf16.msra.mxu0 %v979
        %1253 = vmatpush.bf16.msra.mxu0 %v975
        %1254 = vmatpush.bf16.msra.mxu0 %v971
        %1255 = vmatpush.bf16.msra.mxu0 %v967
        %1256 = vmatpush.bf16.msra.mxu0 %v963
        %1257 = vmatpush.bf16.msra.mxu0 %v959
        %1258 = vmatpush.bf16.msra.mxu0 %v955
        %1259 = vmatpush.bf16.msra.mxu0 %v951
        %1260 = vmatmul.bf16.gmra.mxu0 %v458
        %v1261 = vpop.f32.mrf.mxu0
        %v1262 = vadd.f32 %v1249, %v1261
        %v1263 = vpop.f32.mrf.mxu0
        %1264 = vdwg.mxu0
        %1265 = vmatpush.bf16.msra.mxu0 %v884
        %1266 = vmatpush.bf16.msra.mxu0 %v880
        %1267 = vmatpush.bf16.msra.mxu0 %v876
        %1268 = vmatpush.bf16.msra.mxu0 %v872
        %1269 = vmatpush.bf16.msra.mxu0 %v868
        %1270 = vmatpush.bf16.msra.mxu0 %v864
        %1271 = vmatpush.bf16.msra.mxu0 %v860
        %1272 = vmatpush.bf16.msra.mxu0 %v856
        %1273 = vmatmul.bf16.gmra.mxu0 %v455
        %v1274 = vpop.f32.mrf.mxu0
        %v1275 = vadd.f32 %v464, %v1274
        %v1276 = vpop.f32.mrf.mxu0
        %1277 = vdwg.mxu0
        %1278 = vmatpush.bf16.msra.mxu0 %v916
        %1279 = vmatpush.bf16.msra.mxu0 %v912
        %1280 = vmatpush.bf16.msra.mxu0 %v908
        %1281 = vmatpush.bf16.msra.mxu0 %v904
        %1282 = vmatpush.bf16.msra.mxu0 %v900
        %1283 = vmatpush.bf16.msra.mxu0 %v896
        %1284 = vmatpush.bf16.msra.mxu0 %v892
        %1285 = vmatpush.bf16.msra.mxu0 %v888
        %1286 = vmatmul.bf16.gmra.mxu0 %v456
        %v1287 = vpop.f32.mrf.mxu0
        %v1288 = vadd.f32 %v1275, %v1287
        %v1289 = vpop.f32.mrf.mxu0
        %1290 = vdwg.mxu0
        %1291 = vmatpush.bf16.msra.mxu0 %v948
        %1292 = vmatpush.bf16.msra.mxu0 %v944
        %1293 = vmatpush.bf16.msra.mxu0 %v940
        %1294 = vmatpush.bf16.msra.mxu0 %v936
        %1295 = vmatpush.bf16.msra.mxu0 %v932
        %1296 = vmatpush.bf16.msra.mxu0 %v928
        %1297 = vmatpush.bf16.msra.mxu0 %v924
        %1298 = vmatpush.bf16.msra.mxu0 %v920
        %1299 = vmatmul.bf16.gmra.mxu0 %v457
        %v1300 = vpop.f32.mrf.mxu0
        %v1301 = vadd.f32 %v1288, %v1300
        %v1302 = vpop.f32.mrf.mxu0
        %1303 = vdwg.mxu0
        %1304 = vmatpush.bf16.msra.mxu0 %v980
        %1305 = vmatpush.bf16.msra.mxu0 %v976
        %1306 = vmatpush.bf16.msra.mxu0 %v972
        %1307 = vmatpush.bf16.msra.mxu0 %v968
        %1308 = vmatpush.bf16.msra.mxu0 %v964
        %1309 = vmatpush.bf16.msra.mxu0 %v960
        %1310 = vmatpush.bf16.msra.mxu0 %v956
        %1311 = vmatpush.bf16.msra.mxu0 %v952
        %1312 = vmatmul.bf16.gmra.mxu0 %v458
        %v1313 = vpop.f32.mrf.mxu0
        %v1314 = vadd.f32 %v1301, %v1313
        %v1315 = vpop.f32.mrf.mxu0
        %1316 = vdwg.mxu0
        %vm1317 = vcmp.ge.f32.partialorder %v1158, 0.0
        %vm1318 = vcmp.ge.f32.partialorder %v1210, 0.0
        %vm1319 = vcmp.ge.f32.partialorder %v1262, 0.0
        %vm1320 = vcmp.ge.f32.partialorder %v1314, 0.0
        %v1321 = vmul.f32 %v1158, 0.2
        %v1322 = vmul.f32 %v1210, 0.2
        %v1323 = vmul.f32 %v1262, 0.2
        %v1324 = vmul.f32 %v1314, 0.2
        %v1325 = vsel %vm1317, %v1158, %v1321
        %v1326 = vsel %vm1318, %v1210, %v1322
        %v1327 = vsel %vm1319, %v1262, %v1323
        %v1328 = vsel %vm1320, %v1314, %v1324
        %v1329 = vmul.f32 %v1325, 1.4142135
        %v1330 = vmul.f32 %v1326, 1.4142135
        %v1331 = vmul.f32 %v1327, 1.4142135
        %v1332 = vmul.f32 %v1328, 1.4142135
        %s1333 = scalar_lea.vmem %s225, 1024 [#allocation5]
        %v1334 = vld [vmem:[%s1333] sm:$0xff]
        %v1335 = vld [vmem:[%s1333 + $0x8] sm:$0xff]
        %v1336 = vld [vmem:[%s1333 + $0x10] sm:$0xff]
        %v1337 = vld [vmem:[%s1333 + $0x18] sm:$0xff]
        %v1338 = vld [vmem:[%s1333 + $0x20] sm:$0xff]
        %v1339 = vld [vmem:[%s1333 + $0x28] sm:$0xff]
        %v1340 = vld [vmem:[%s1333 + $0x30] sm:$0xff]
        %v1341 = vld [vmem:[%s1333 + $0x38] sm:$0xff]
        %v1342 = vld [vmem:[%s1333 + $0x40] sm:$0xff]
        %v1343 = vld [vmem:[%s1333 + $0x48] sm:$0xff]
        %v1344 = vld [vmem:[%s1333 + $0x50] sm:$0xff]
        %v1345 = vld [vmem:[%s1333 + $0x58] sm:$0xff]
        %v1346 = vld [vmem:[%s1333 + $0x60] sm:$0xff]
        %v1347 = vld [vmem:[%s1333 + $0x68] sm:$0xff]
        %v1348 = vld [vmem:[%s1333 + $0x70] sm:$0xff]
        %v1349 = vld [vmem:[%s1333 + $0x78] sm:$0xff]
        %v1350 = vld [vmem:[%s1333 + $0x80] sm:$0xff]
        %v1351 = vld [vmem:[%s1333 + $0x88] sm:$0xff]
        %v1352 = vld [vmem:[%s1333 + $0x90] sm:$0xff]
        %v1353 = vld [vmem:[%s1333 + $0x98] sm:$0xff]
        %v1354 = vld [vmem:[%s1333 + $0xa0] sm:$0xff]
        %v1355 = vld [vmem:[%s1333 + $0xa8] sm:$0xff]
        %v1356 = vld [vmem:[%s1333 + $0xb0] sm:$0xff]
        %v1357 = vld [vmem:[%s1333 + $0xb8] sm:$0xff]
        %v1358 = vld [vmem:[%s1333 + $0xc0] sm:$0xff]
        %v1359 = vld [vmem:[%s1333 + $0xc8] sm:$0xff]
        %v1360 = vld [vmem:[%s1333 + $0xd0] sm:$0xff]
        %v1361 = vld [vmem:[%s1333 + $0xd8] sm:$0xff]
        %v1362 = vld [vmem:[%s1333 + $0xe0] sm:$0xff]
        %v1363 = vld [vmem:[%s1333 + $0xe8] sm:$0xff]
        %v1364 = vld [vmem:[%s1333 + $0xf0] sm:$0xff]
        %v1365 = vld [vmem:[%s1333 + $0xf8] sm:$0xff]
        %v1366 = vld [vmem:[%s1333 + $0x100] sm:$0xff]
        %v1367 = vld [vmem:[%s1333 + $0x108] sm:$0xff]
        %v1368 = vld [vmem:[%s1333 + $0x110] sm:$0xff]
        %v1369 = vld [vmem:[%s1333 + $0x118] sm:$0xff]
        %v1370 = vld [vmem:[%s1333 + $0x120] sm:$0xff]
        %v1371 = vld [vmem:[%s1333 + $0x128] sm:$0xff]
        %v1372 = vld [vmem:[%s1333 + $0x130] sm:$0xff]
        %v1373 = vld [vmem:[%s1333 + $0x138] sm:$0xff]
        %v1374 = vld [vmem:[%s1333 + $0x140] sm:$0xff]
        %v1375 = vld [vmem:[%s1333 + $0x148] sm:$0xff]
        %v1376 = vld [vmem:[%s1333 + $0x150] sm:$0xff]
        %v1377 = vld [vmem:[%s1333 + $0x158] sm:$0xff]
        %v1378 = vld [vmem:[%s1333 + $0x160] sm:$0xff]
        %v1379 = vld [vmem:[%s1333 + $0x168] sm:$0xff]
        %v1380 = vld [vmem:[%s1333 + $0x170] sm:$0xff]
        %v1381 = vld [vmem:[%s1333 + $0x178] sm:$0xff]
        %v1382 = vld [vmem:[%s1333 + $0x180] sm:$0xff]
        %v1383 = vld [vmem:[%s1333 + $0x188] sm:$0xff]
        %v1384 = vld [vmem:[%s1333 + $0x190] sm:$0xff]
        %v1385 = vld [vmem:[%s1333 + $0x198] sm:$0xff]
        %v1386 = vld [vmem:[%s1333 + $0x1a0] sm:$0xff]
        %v1387 = vld [vmem:[%s1333 + $0x1a8] sm:$0xff]
        %v1388 = vld [vmem:[%s1333 + $0x1b0] sm:$0xff]
        %v1389 = vld [vmem:[%s1333 + $0x1b8] sm:$0xff]
        %v1390 = vld [vmem:[%s1333 + $0x1c0] sm:$0xff]
        %v1391 = vld [vmem:[%s1333 + $0x1c8] sm:$0xff]
        %v1392 = vld [vmem:[%s1333 + $0x1d0] sm:$0xff]
        %v1393 = vld [vmem:[%s1333 + $0x1d8] sm:$0xff]
        %v1394 = vld [vmem:[%s1333 + $0x1e0] sm:$0xff]
        %v1395 = vld [vmem:[%s1333 + $0x1e8] sm:$0xff]
        %v1396 = vld [vmem:[%s1333 + $0x1f0] sm:$0xff]
        %v1397 = vld [vmem:[%s1333 + $0x1f8] sm:$0xff]
        %v1398 = vld [vmem:[%s1333 + $0x200] sm:$0xff]
        %v1399 = vld [vmem:[%s1333 + $0x208] sm:$0xff]
        %v1400 = vld [vmem:[%s1333 + $0x210] sm:$0xff]
        %v1401 = vld [vmem:[%s1333 + $0x218] sm:$0xff]
        %v1402 = vld [vmem:[%s1333 + $0x220] sm:$0xff]
        %v1403 = vld [vmem:[%s1333 + $0x228] sm:$0xff]
        %v1404 = vld [vmem:[%s1333 + $0x230] sm:$0xff]
        %v1405 = vld [vmem:[%s1333 + $0x238] sm:$0xff]
        %v1406 = vld [vmem:[%s1333 + $0x240] sm:$0xff]
        %v1407 = vld [vmem:[%s1333 + $0x248] sm:$0xff]
        %v1408 = vld [vmem:[%s1333 + $0x250] sm:$0xff]
        %v1409 = vld [vmem:[%s1333 + $0x258] sm:$0xff]
        %v1410 = vld [vmem:[%s1333 + $0x260] sm:$0xff]
        %v1411 = vld [vmem:[%s1333 + $0x268] sm:$0xff]
        %v1412 = vld [vmem:[%s1333 + $0x270] sm:$0xff]
        %v1413 = vld [vmem:[%s1333 + $0x278] sm:$0xff]
        %v1414 = vld [vmem:[%s1333 + $0x280] sm:$0xff]
        %v1415 = vld [vmem:[%s1333 + $0x288] sm:$0xff]
        %v1416 = vld [vmem:[%s1333 + $0x290] sm:$0xff]
        %v1417 = vld [vmem:[%s1333 + $0x298] sm:$0xff]
        %v1418 = vld [vmem:[%s1333 + $0x2a0] sm:$0xff]
        %v1419 = vld [vmem:[%s1333 + $0x2a8] sm:$0xff]
        %v1420 = vld [vmem:[%s1333 + $0x2b0] sm:$0xff]
        %v1421 = vld [vmem:[%s1333 + $0x2b8] sm:$0xff]
        %v1422 = vld [vmem:[%s1333 + $0x2c0] sm:$0xff]
        %v1423 = vld [vmem:[%s1333 + $0x2c8] sm:$0xff]
        %v1424 = vld [vmem:[%s1333 + $0x2d0] sm:$0xff]
        %v1425 = vld [vmem:[%s1333 + $0x2d8] sm:$0xff]
        %v1426 = vld [vmem:[%s1333 + $0x2e0] sm:$0xff]
        %v1427 = vld [vmem:[%s1333 + $0x2e8] sm:$0xff]
        %v1428 = vld [vmem:[%s1333 + $0x2f0] sm:$0xff]
        %v1429 = vld [vmem:[%s1333 + $0x2f8] sm:$0xff]
        %v1430 = vld [vmem:[%s1333 + $0x300] sm:$0xff]
        %v1431 = vld [vmem:[%s1333 + $0x308] sm:$0xff]
        %v1432 = vld [vmem:[%s1333 + $0x310] sm:$0xff]
        %v1433 = vld [vmem:[%s1333 + $0x318] sm:$0xff]
        %v1434 = vld [vmem:[%s1333 + $0x320] sm:$0xff]
        %v1435 = vld [vmem:[%s1333 + $0x328] sm:$0xff]
        %v1436 = vld [vmem:[%s1333 + $0x330] sm:$0xff]
        %v1437 = vld [vmem:[%s1333 + $0x338] sm:$0xff]
        %v1438 = vld [vmem:[%s1333 + $0x340] sm:$0xff]
        %v1439 = vld [vmem:[%s1333 + $0x348] sm:$0xff]
        %v1440 = vld [vmem:[%s1333 + $0x350] sm:$0xff]
        %v1441 = vld [vmem:[%s1333 + $0x358] sm:$0xff]
        %v1442 = vld [vmem:[%s1333 + $0x360] sm:$0xff]
        %v1443 = vld [vmem:[%s1333 + $0x368] sm:$0xff]
        %v1444 = vld [vmem:[%s1333 + $0x370] sm:$0xff]
        %v1445 = vld [vmem:[%s1333 + $0x378] sm:$0xff]
        %v1446 = vld [vmem:[%s1333 + $0x380] sm:$0xff]
        %v1447 = vld [vmem:[%s1333 + $0x388] sm:$0xff]
        %v1448 = vld [vmem:[%s1333 + $0x390] sm:$0xff]
        %v1449 = vld [vmem:[%s1333 + $0x398] sm:$0xff]
        %v1450 = vld [vmem:[%s1333 + $0x3a0] sm:$0xff]
        %v1451 = vld [vmem:[%s1333 + $0x3a8] sm:$0xff]
        %v1452 = vld [vmem:[%s1333 + $0x3b0] sm:$0xff]
        %v1453 = vld [vmem:[%s1333 + $0x3b8] sm:$0xff]
        %v1454 = vld [vmem:[%s1333 + $0x3c0] sm:$0xff]
        %v1455 = vld [vmem:[%s1333 + $0x3c8] sm:$0xff]
        %v1456 = vld [vmem:[%s1333 + $0x3d0] sm:$0xff]
        %v1457 = vld [vmem:[%s1333 + $0x3d8] sm:$0xff]
        %v1458 = vld [vmem:[%s1333 + $0x3e0] sm:$0xff]
        %v1459 = vld [vmem:[%s1333 + $0x3e8] sm:$0xff]
        %v1460 = vld [vmem:[%s1333 + $0x3f0] sm:$0xff]
        %v1461 = vld [vmem:[%s1333 + $0x3f8] sm:$0xff]
        %v1462 = vpack.c.bf16 %v1329, %v1329
        %v1463 = vpack.c.bf16 %v1330, %v1330
        %v1464 = vpack.c.bf16 %v1331, %v1331
        %v1465 = vpack.c.bf16 %v1332, %v1332
        %s1466 = scalar_lea.vmem %s235, 4 [#allocation7]
        %v1467 = vld [vmem:[%s1466] sm:$0xf]
        %v1469 = vperm.slane %v1467, 0
        %v1470 = vperm.slane %v1467, 1
        %v1471 = vperm.slane %v1467, 2
        %v1472 = vperm.slane %v1467, 3
        %v1605 = vunpack.c.l.b16 %v1334
        %v1606 = vunpack.c.h.b16 %v1334
        %v1607 = vunpack.c.l.b16 %v1335
        %v1608 = vunpack.c.h.b16 %v1335
        %v1609 = vunpack.c.l.b16 %v1336
        %v1610 = vunpack.c.h.b16 %v1336
        %v1611 = vunpack.c.l.b16 %v1337
        %v1612 = vunpack.c.h.b16 %v1337
        %v1613 = vunpack.c.l.b16 %v1338
        %v1614 = vunpack.c.h.b16 %v1338
        %v1615 = vunpack.c.l.b16 %v1339
        %v1616 = vunpack.c.h.b16 %v1339
        %v1617 = vunpack.c.l.b16 %v1340
        %v1618 = vunpack.c.h.b16 %v1340
        %v1619 = vunpack.c.l.b16 %v1341
        %v1620 = vunpack.c.h.b16 %v1341
        %v1621 = vunpack.c.l.b16 %v1342
        %v1622 = vunpack.c.h.b16 %v1342
        %v1623 = vunpack.c.l.b16 %v1343
        %v1624 = vunpack.c.h.b16 %v1343
        %v1625 = vunpack.c.l.b16 %v1344
        %v1626 = vunpack.c.h.b16 %v1344
        %v1627 = vunpack.c.l.b16 %v1345
        %v1628 = vunpack.c.h.b16 %v1345
        %v1629 = vunpack.c.l.b16 %v1346
        %v1630 = vunpack.c.h.b16 %v1346
        %v1631 = vunpack.c.l.b16 %v1347
        %v1632 = vunpack.c.h.b16 %v1347
        %v1633 = vunpack.c.l.b16 %v1348
        %v1634 = vunpack.c.h.b16 %v1348
        %v1635 = vunpack.c.l.b16 %v1349
        %v1636 = vunpack.c.h.b16 %v1349
        %v1637 = vunpack.c.l.b16 %v1350
        %v1638 = vunpack.c.h.b16 %v1350
        %v1639 = vunpack.c.l.b16 %v1351
        %v1640 = vunpack.c.h.b16 %v1351
        %v1641 = vunpack.c.l.b16 %v1352
        %v1642 = vunpack.c.h.b16 %v1352
        %v1643 = vunpack.c.l.b16 %v1353
        %v1644 = vunpack.c.h.b16 %v1353
        %v1645 = vunpack.c.l.b16 %v1354
        %v1646 = vunpack.c.h.b16 %v1354
        %v1647 = vunpack.c.l.b16 %v1355
        %v1648 = vunpack.c.h.b16 %v1355
        %v1649 = vunpack.c.l.b16 %v1356
        %v1650 = vunpack.c.h.b16 %v1356
        %v1651 = vunpack.c.l.b16 %v1357
        %v1652 = vunpack.c.h.b16 %v1357
        %v1653 = vunpack.c.l.b16 %v1358
        %v1654 = vunpack.c.h.b16 %v1358
        %v1655 = vunpack.c.l.b16 %v1359
        %v1656 = vunpack.c.h.b16 %v1359
        %v1657 = vunpack.c.l.b16 %v1360
        %v1658 = vunpack.c.h.b16 %v1360
        %v1659 = vunpack.c.l.b16 %v1361
        %v1660 = vunpack.c.h.b16 %v1361
        %v1661 = vunpack.c.l.b16 %v1362
        %v1662 = vunpack.c.h.b16 %v1362
        %v1663 = vunpack.c.l.b16 %v1363
        %v1664 = vunpack.c.h.b16 %v1363
        %v1665 = vunpack.c.l.b16 %v1364
        %v1666 = vunpack.c.h.b16 %v1364
        %v1667 = vunpack.c.l.b16 %v1365
        %v1668 = vunpack.c.h.b16 %v1365
        %v1669 = vunpack.c.l.b16 %v1366
        %v1670 = vunpack.c.h.b16 %v1366
        %v1671 = vunpack.c.l.b16 %v1367
        %v1672 = vunpack.c.h.b16 %v1367
        %v1673 = vunpack.c.l.b16 %v1368
        %v1674 = vunpack.c.h.b16 %v1368
        %v1675 = vunpack.c.l.b16 %v1369
        %v1676 = vunpack.c.h.b16 %v1369
        %v1677 = vunpack.c.l.b16 %v1370
        %v1678 = vunpack.c.h.b16 %v1370
        %v1679 = vunpack.c.l.b16 %v1371
        %v1680 = vunpack.c.h.b16 %v1371
        %v1681 = vunpack.c.l.b16 %v1372
        %v1682 = vunpack.c.h.b16 %v1372
        %v1683 = vunpack.c.l.b16 %v1373
        %v1684 = vunpack.c.h.b16 %v1373
        %v1685 = vunpack.c.l.b16 %v1374
        %v1686 = vunpack.c.h.b16 %v1374
        %v1687 = vunpack.c.l.b16 %v1375
        %v1688 = vunpack.c.h.b16 %v1375
        %v1689 = vunpack.c.l.b16 %v1376
        %v1690 = vunpack.c.h.b16 %v1376
        %v1691 = vunpack.c.l.b16 %v1377
        %v1692 = vunpack.c.h.b16 %v1377
        %v1693 = vunpack.c.l.b16 %v1378
        %v1694 = vunpack.c.h.b16 %v1378
        %v1695 = vunpack.c.l.b16 %v1379
        %v1696 = vunpack.c.h.b16 %v1379
        %v1697 = vunpack.c.l.b16 %v1380
        %v1698 = vunpack.c.h.b16 %v1380
        %v1699 = vunpack.c.l.b16 %v1381
        %v1700 = vunpack.c.h.b16 %v1381
        %v1701 = vunpack.c.l.b16 %v1382
        %v1702 = vunpack.c.h.b16 %v1382
        %v1703 = vunpack.c.l.b16 %v1383
        %v1704 = vunpack.c.h.b16 %v1383
        %v1705 = vunpack.c.l.b16 %v1384
        %v1706 = vunpack.c.h.b16 %v1384
        %v1707 = vunpack.c.l.b16 %v1385
        %v1708 = vunpack.c.h.b16 %v1385
        %v1709 = vunpack.c.l.b16 %v1386
        %v1710 = vunpack.c.h.b16 %v1386
        %v1711 = vunpack.c.l.b16 %v1387
        %v1712 = vunpack.c.h.b16 %v1387
        %v1713 = vunpack.c.l.b16 %v1388
        %v1714 = vunpack.c.h.b16 %v1388
        %v1715 = vunpack.c.l.b16 %v1389
        %v1716 = vunpack.c.h.b16 %v1389
        %v1717 = vunpack.c.l.b16 %v1390
        %v1718 = vunpack.c.h.b16 %v1390
        %v1719 = vunpack.c.l.b16 %v1391
        %v1720 = vunpack.c.h.b16 %v1391
        %v1721 = vunpack.c.l.b16 %v1392
        %v1722 = vunpack.c.h.b16 %v1392
        %v1723 = vunpack.c.l.b16 %v1393
        %v1724 = vunpack.c.h.b16 %v1393
        %v1725 = vunpack.c.l.b16 %v1394
        %v1726 = vunpack.c.h.b16 %v1394
        %v1727 = vunpack.c.l.b16 %v1395
        %v1728 = vunpack.c.h.b16 %v1395
        %v1729 = vunpack.c.l.b16 %v1396
        %v1730 = vunpack.c.h.b16 %v1396
        %v1731 = vunpack.c.l.b16 %v1397
        %v1732 = vunpack.c.h.b16 %v1397
        %v1733 = vunpack.c.l.b16 %v1398
        %v1734 = vunpack.c.h.b16 %v1398
        %v1735 = vunpack.c.l.b16 %v1399
        %v1736 = vunpack.c.h.b16 %v1399
        %v1737 = vunpack.c.l.b16 %v1400
        %v1738 = vunpack.c.h.b16 %v1400
        %v1739 = vunpack.c.l.b16 %v1401
        %v1740 = vunpack.c.h.b16 %v1401
        %v1741 = vunpack.c.l.b16 %v1402
        %v1742 = vunpack.c.h.b16 %v1402
        %v1743 = vunpack.c.l.b16 %v1403
        %v1744 = vunpack.c.h.b16 %v1403
        %v1745 = vunpack.c.l.b16 %v1404
        %v1746 = vunpack.c.h.b16 %v1404
        %v1747 = vunpack.c.l.b16 %v1405
        %v1748 = vunpack.c.h.b16 %v1405
        %v1749 = vunpack.c.l.b16 %v1406
        %v1750 = vunpack.c.h.b16 %v1406
        %v1751 = vunpack.c.l.b16 %v1407
        %v1752 = vunpack.c.h.b16 %v1407
        %v1753 = vunpack.c.l.b16 %v1408
        %v1754 = vunpack.c.h.b16 %v1408
        %v1755 = vunpack.c.l.b16 %v1409
        %v1756 = vunpack.c.h.b16 %v1409
        %v1757 = vunpack.c.l.b16 %v1410
        %v1758 = vunpack.c.h.b16 %v1410
        %v1759 = vunpack.c.l.b16 %v1411
        %v1760 = vunpack.c.h.b16 %v1411
        %v1761 = vunpack.c.l.b16 %v1412
        %v1762 = vunpack.c.h.b16 %v1412
        %v1763 = vunpack.c.l.b16 %v1413
        %v1764 = vunpack.c.h.b16 %v1413
        %v1765 = vunpack.c.l.b16 %v1414
        %v1766 = vunpack.c.h.b16 %v1414
        %v1767 = vunpack.c.l.b16 %v1415
        %v1768 = vunpack.c.h.b16 %v1415
        %v1769 = vunpack.c.l.b16 %v1416
        %v1770 = vunpack.c.h.b16 %v1416
        %v1771 = vunpack.c.l.b16 %v1417
        %v1772 = vunpack.c.h.b16 %v1417
        %v1773 = vunpack.c.l.b16 %v1418
        %v1774 = vunpack.c.h.b16 %v1418
        %v1775 = vunpack.c.l.b16 %v1419
        %v1776 = vunpack.c.h.b16 %v1419
        %v1777 = vunpack.c.l.b16 %v1420
        %v1778 = vunpack.c.h.b16 %v1420
        %v1779 = vunpack.c.l.b16 %v1421
        %v1780 = vunpack.c.h.b16 %v1421
        %v1781 = vunpack.c.l.b16 %v1422
        %v1782 = vunpack.c.h.b16 %v1422
        %v1783 = vunpack.c.l.b16 %v1423
        %v1784 = vunpack.c.h.b16 %v1423
        %v1785 = vunpack.c.l.b16 %v1424
        %v1786 = vunpack.c.h.b16 %v1424
        %v1787 = vunpack.c.l.b16 %v1425
        %v1788 = vunpack.c.h.b16 %v1425
        %v1789 = vunpack.c.l.b16 %v1426
        %v1790 = vunpack.c.h.b16 %v1426
        %v1791 = vunpack.c.l.b16 %v1427
        %v1792 = vunpack.c.h.b16 %v1427
        %v1793 = vunpack.c.l.b16 %v1428
        %v1794 = vunpack.c.h.b16 %v1428
        %v1795 = vunpack.c.l.b16 %v1429
        %v1796 = vunpack.c.h.b16 %v1429
        %v1797 = vunpack.c.l.b16 %v1430
        %v1798 = vunpack.c.h.b16 %v1430
        %v1799 = vunpack.c.l.b16 %v1431
        %v1800 = vunpack.c.h.b16 %v1431
        %v1801 = vunpack.c.l.b16 %v1432
        %v1802 = vunpack.c.h.b16 %v1432
        %v1803 = vunpack.c.l.b16 %v1433
        %v1804 = vunpack.c.h.b16 %v1433
        %v1805 = vunpack.c.l.b16 %v1434
        %v1806 = vunpack.c.h.b16 %v1434
        %v1807 = vunpack.c.l.b16 %v1435
        %v1808 = vunpack.c.h.b16 %v1435
        %v1809 = vunpack.c.l.b16 %v1436
        %v1810 = vunpack.c.h.b16 %v1436
        %v1811 = vunpack.c.l.b16 %v1437
        %v1812 = vunpack.c.h.b16 %v1437
        %v1813 = vunpack.c.l.b16 %v1438
        %v1814 = vunpack.c.h.b16 %v1438
        %v1815 = vunpack.c.l.b16 %v1439
        %v1816 = vunpack.c.h.b16 %v1439
        %v1817 = vunpack.c.l.b16 %v1440
        %v1818 = vunpack.c.h.b16 %v1440
        %v1819 = vunpack.c.l.b16 %v1441
        %v1820 = vunpack.c.h.b16 %v1441
        %v1821 = vunpack.c.l.b16 %v1442
        %v1822 = vunpack.c.h.b16 %v1442
        %v1823 = vunpack.c.l.b16 %v1443
        %v1824 = vunpack.c.h.b16 %v1443
        %v1825 = vunpack.c.l.b16 %v1444
        %v1826 = vunpack.c.h.b16 %v1444
        %v1827 = vunpack.c.l.b16 %v1445
        %v1828 = vunpack.c.h.b16 %v1445
        %v1829 = vunpack.c.l.b16 %v1446
        %v1830 = vunpack.c.h.b16 %v1446
        %v1831 = vunpack.c.l.b16 %v1447
        %v1832 = vunpack.c.h.b16 %v1447
        %v1833 = vunpack.c.l.b16 %v1448
        %v1834 = vunpack.c.h.b16 %v1448
        %v1835 = vunpack.c.l.b16 %v1449
        %v1836 = vunpack.c.h.b16 %v1449
        %v1837 = vunpack.c.l.b16 %v1450
        %v1838 = vunpack.c.h.b16 %v1450
        %v1839 = vunpack.c.l.b16 %v1451
        %v1840 = vunpack.c.h.b16 %v1451
        %v1841 = vunpack.c.l.b16 %v1452
        %v1842 = vunpack.c.h.b16 %v1452
        %v1843 = vunpack.c.l.b16 %v1453
        %v1844 = vunpack.c.h.b16 %v1453
        %v1845 = vunpack.c.l.b16 %v1454
        %v1846 = vunpack.c.h.b16 %v1454
        %v1847 = vunpack.c.l.b16 %v1455
        %v1848 = vunpack.c.h.b16 %v1455
        %v1849 = vunpack.c.l.b16 %v1456
        %v1850 = vunpack.c.h.b16 %v1456
        %v1851 = vunpack.c.l.b16 %v1457
        %v1852 = vunpack.c.h.b16 %v1457
        %v1853 = vunpack.c.l.b16 %v1458
        %v1854 = vunpack.c.h.b16 %v1458
        %v1855 = vunpack.c.l.b16 %v1459
        %v1856 = vunpack.c.h.b16 %v1459
        %v1857 = vunpack.c.l.b16 %v1460
        %v1858 = vunpack.c.h.b16 %v1460
        %v1859 = vunpack.c.l.b16 %v1461
        %v1860 = vunpack.c.h.b16 %v1461
        %v1861 = vpack.c.b16 %v1609, %v1605
        %v1862 = vpack.c.b16 %v1610, %v1606
        %v1863 = vpack.c.b16 %v1611, %v1607
        %v1864 = vpack.c.b16 %v1612, %v1608
        %v1865 = vpack.c.b16 %v1617, %v1613
        %v1866 = vpack.c.b16 %v1618, %v1614
        %v1867 = vpack.c.b16 %v1619, %v1615
        %v1868 = vpack.c.b16 %v1620, %v1616
        %v1869 = vpack.c.b16 %v1625, %v1621
        %v1870 = vpack.c.b16 %v1626, %v1622
        %v1871 = vpack.c.b16 %v1627, %v1623
        %v1872 = vpack.c.b16 %v1628, %v1624
        %v1873 = vpack.c.b16 %v1633, %v1629
        %v1874 = vpack.c.b16 %v1634, %v1630
        %v1875 = vpack.c.b16 %v1635, %v1631
        %v1876 = vpack.c.b16 %v1636, %v1632
        %v1877 = vpack.c.b16 %v1641, %v1637
        %v1878 = vpack.c.b16 %v1642, %v1638
        %v1879 = vpack.c.b16 %v1643, %v1639
        %v1880 = vpack.c.b16 %v1644, %v1640
        %v1881 = vpack.c.b16 %v1649, %v1645
        %v1882 = vpack.c.b16 %v1650, %v1646
        %v1883 = vpack.c.b16 %v1651, %v1647
        %v1884 = vpack.c.b16 %v1652, %v1648
        %v1885 = vpack.c.b16 %v1657, %v1653
        %v1886 = vpack.c.b16 %v1658, %v1654
        %v1887 = vpack.c.b16 %v1659, %v1655
        %v1888 = vpack.c.b16 %v1660, %v1656
        %v1889 = vpack.c.b16 %v1665, %v1661
        %v1890 = vpack.c.b16 %v1666, %v1662
        %v1891 = vpack.c.b16 %v1667, %v1663
        %v1892 = vpack.c.b16 %v1668, %v1664
        %v1893 = vpack.c.b16 %v1673, %v1669
        %v1894 = vpack.c.b16 %v1674, %v1670
        %v1895 = vpack.c.b16 %v1675, %v1671
        %v1896 = vpack.c.b16 %v1676, %v1672
        %v1897 = vpack.c.b16 %v1681, %v1677
        %v1898 = vpack.c.b16 %v1682, %v1678
        %v1899 = vpack.c.b16 %v1683, %v1679
        %v1900 = vpack.c.b16 %v1684, %v1680
        %v1901 = vpack.c.b16 %v1689, %v1685
        %v1902 = vpack.c.b16 %v1690, %v1686
        %v1903 = vpack.c.b16 %v1691, %v1687
        %v1904 = vpack.c.b16 %v1692, %v1688
        %v1905 = vpack.c.b16 %v1697, %v1693
        %v1906 = vpack.c.b16 %v1698, %v1694
        %v1907 = vpack.c.b16 %v1699, %v1695
        %v1908 = vpack.c.b16 %v1700, %v1696
        %v1909 = vpack.c.b16 %v1705, %v1701
        %v1910 = vpack.c.b16 %v1706, %v1702
        %v1911 = vpack.c.b16 %v1707, %v1703
        %v1912 = vpack.c.b16 %v1708, %v1704
        %v1913 = vpack.c.b16 %v1713, %v1709
        %v1914 = vpack.c.b16 %v1714, %v1710
        %v1915 = vpack.c.b16 %v1715, %v1711
        %v1916 = vpack.c.b16 %v1716, %v1712
        %v1917 = vpack.c.b16 %v1721, %v1717
        %v1918 = vpack.c.b16 %v1722, %v1718
        %v1919 = vpack.c.b16 %v1723, %v1719
        %v1920 = vpack.c.b16 %v1724, %v1720
        %v1921 = vpack.c.b16 %v1729, %v1725
        %v1922 = vpack.c.b16 %v1730, %v1726
        %v1923 = vpack.c.b16 %v1731, %v1727
        %v1924 = vpack.c.b16 %v1732, %v1728
        %v1925 = vpack.c.b16 %v1737, %v1733
        %v1926 = vpack.c.b16 %v1738, %v1734
        %v1927 = vpack.c.b16 %v1739, %v1735
        %v1928 = vpack.c.b16 %v1740, %v1736
        %v1929 = vpack.c.b16 %v1745, %v1741
        %v1930 = vpack.c.b16 %v1746, %v1742
        %v1931 = vpack.c.b16 %v1747, %v1743
        %v1932 = vpack.c.b16 %v1748, %v1744
        %v1933 = vpack.c.b16 %v1753, %v1749
        %v1934 = vpack.c.b16 %v1754, %v1750
        %v1935 = vpack.c.b16 %v1755, %v1751
        %v1936 = vpack.c.b16 %v1756, %v1752
        %v1937 = vpack.c.b16 %v1761, %v1757
        %v1938 = vpack.c.b16 %v1762, %v1758
        %v1939 = vpack.c.b16 %v1763, %v1759
        %v1940 = vpack.c.b16 %v1764, %v1760
        %v1941 = vpack.c.b16 %v1769, %v1765
        %v1942 = vpack.c.b16 %v1770, %v1766
        %v1943 = vpack.c.b16 %v1771, %v1767
        %v1944 = vpack.c.b16 %v1772, %v1768
        %v1945 = vpack.c.b16 %v1777, %v1773
        %v1946 = vpack.c.b16 %v1778, %v1774
        %v1947 = vpack.c.b16 %v1779, %v1775
        %v1948 = vpack.c.b16 %v1780, %v1776
        %v1949 = vpack.c.b16 %v1785, %v1781
        %v1950 = vpack.c.b16 %v1786, %v1782
        %v1951 = vpack.c.b16 %v1787, %v1783
        %v1952 = vpack.c.b16 %v1788, %v1784
        %v1953 = vpack.c.b16 %v1793, %v1789
        %v1954 = vpack.c.b16 %v1794, %v1790
        %v1955 = vpack.c.b16 %v1795, %v1791
        %v1956 = vpack.c.b16 %v1796, %v1792
        %v1957 = vpack.c.b16 %v1801, %v1797
        %v1958 = vpack.c.b16 %v1802, %v1798
        %v1959 = vpack.c.b16 %v1803, %v1799
        %v1960 = vpack.c.b16 %v1804, %v1800
        %v1961 = vpack.c.b16 %v1809, %v1805
        %v1962 = vpack.c.b16 %v1810, %v1806
        %v1963 = vpack.c.b16 %v1811, %v1807
        %v1964 = vpack.c.b16 %v1812, %v1808
        %v1965 = vpack.c.b16 %v1817, %v1813
        %v1966 = vpack.c.b16 %v1818, %v1814
        %v1967 = vpack.c.b16 %v1819, %v1815
        %v1968 = vpack.c.b16 %v1820, %v1816
        %v1969 = vpack.c.b16 %v1825, %v1821
        %v1970 = vpack.c.b16 %v1826, %v1822
        %v1971 = vpack.c.b16 %v1827, %v1823
        %v1972 = vpack.c.b16 %v1828, %v1824
        %v1973 = vpack.c.b16 %v1833, %v1829
        %v1974 = vpack.c.b16 %v1834, %v1830
        %v1975 = vpack.c.b16 %v1835, %v1831
        %v1976 = vpack.c.b16 %v1836, %v1832
        %v1977 = vpack.c.b16 %v1841, %v1837
        %v1978 = vpack.c.b16 %v1842, %v1838
        %v1979 = vpack.c.b16 %v1843, %v1839
        %v1980 = vpack.c.b16 %v1844, %v1840
        %v1981 = vpack.c.b16 %v1849, %v1845
        %v1982 = vpack.c.b16 %v1850, %v1846
        %v1983 = vpack.c.b16 %v1851, %v1847
        %v1984 = vpack.c.b16 %v1852, %v1848
        %v1985 = vpack.c.b16 %v1857, %v1853
        %v1986 = vpack.c.b16 %v1858, %v1854
        %v1987 = vpack.c.b16 %v1859, %v1855
        %v1988 = vpack.c.b16 %v1860, %v1856
        %2117 = vmatpush.bf16.msra.mxu0 %v1889
        %2118 = vmatpush.bf16.msra.mxu0 %v1885
        %2119 = vmatpush.bf16.msra.mxu0 %v1881
        %2120 = vmatpush.bf16.msra.mxu0 %v1877
        %2121 = vmatpush.bf16.msra.mxu0 %v1873
        %2122 = vmatpush.bf16.msra.mxu0 %v1869
        %2123 = vmatpush.bf16.msra.mxu0 %v1865
        %2124 = vmatpush.bf16.msra.mxu0 %v1861
        %2125 = vmatmul.bf16.gmra.mxu0 %v1462
        %v2126 = vpop.f32.mrf.mxu0
        %v2127 = vadd.f32 %v1469, %v2126
        %v2128 = vpop.f32.mrf.mxu0
        %2129 = vdwg.mxu0
        %2130 = vmatpush.bf16.msra.mxu0 %v1921
        %2131 = vmatpush.bf16.msra.mxu0 %v1917
        %2132 = vmatpush.bf16.msra.mxu0 %v1913
        %2133 = vmatpush.bf16.msra.mxu0 %v1909
        %2134 = vmatpush.bf16.msra.mxu0 %v1905
        %2135 = vmatpush.bf16.msra.mxu0 %v1901
        %2136 = vmatpush.bf16.msra.mxu0 %v1897
        %2137 = vmatpush.bf16.msra.mxu0 %v1893
        %2138 = vmatmul.bf16.gmra.mxu0 %v1463
        %v2139 = vpop.f32.mrf.mxu0
        %v2140 = vadd.f32 %v2127, %v2139
        %v2141 = vpop.f32.mrf.mxu0
        %2142 = vdwg.mxu0
        %2143 = vmatpush.bf16.msra.mxu0 %v1953
        %2144 = vmatpush.bf16.msra.mxu0 %v1949
        %2145 = vmatpush.bf16.msra.mxu0 %v1945
        %2146 = vmatpush.bf16.msra.mxu0 %v1941
        %2147 = vmatpush.bf16.msra.mxu0 %v1937
        %2148 = vmatpush.bf16.msra.mxu0 %v1933
        %2149 = vmatpush.bf16.msra.mxu0 %v1929
        %2150 = vmatpush.bf16.msra.mxu0 %v1925
        %2151 = vmatmul.bf16.gmra.mxu0 %v1464
        %v2152 = vpop.f32.mrf.mxu0
        %v2153 = vadd.f32 %v2140, %v2152
        %v2154 = vpop.f32.mrf.mxu0
        %2155 = vdwg.mxu0
        %2156 = vmatpush.bf16.msra.mxu0 %v1985
        %2157 = vmatpush.bf16.msra.mxu0 %v1981
        %2158 = vmatpush.bf16.msra.mxu0 %v1977
        %2159 = vmatpush.bf16.msra.mxu0 %v1973
        %2160 = vmatpush.bf16.msra.mxu0 %v1969
        %2161 = vmatpush.bf16.msra.mxu0 %v1965
        %2162 = vmatpush.bf16.msra.mxu0 %v1961
        %2163 = vmatpush.bf16.msra.mxu0 %v1957
        %2164 = vmatmul.bf16.gmra.mxu0 %v1465
        %v2165 = vpop.f32.mrf.mxu0
        %v2166 = vadd.f32 %v2153, %v2165
        %v2167 = vpop.f32.mrf.mxu0
        %2168 = vdwg.mxu0
        %2169 = vmatpush.bf16.msra.mxu0 %v1890
        %2170 = vmatpush.bf16.msra.mxu0 %v1886
        %2171 = vmatpush.bf16.msra.mxu0 %v1882
        %2172 = vmatpush.bf16.msra.mxu0 %v1878
        %2173 = vmatpush.bf16.msra.mxu0 %v1874
        %2174 = vmatpush.bf16.msra.mxu0 %v1870
        %2175 = vmatpush.bf16.msra.mxu0 %v1866
        %2176 = vmatpush.bf16.msra.mxu0 %v1862
        %2177 = vmatmul.bf16.gmra.mxu0 %v1462
        %v2178 = vpop.f32.mrf.mxu0
        %v2179 = vadd.f32 %v1470, %v2178
        %v2180 = vpop.f32.mrf.mxu0
        %2181 = vdwg.mxu0
        %2182 = vmatpush.bf16.msra.mxu0 %v1922
        %2183 = vmatpush.bf16.msra.mxu0 %v1918
        %2184 = vmatpush.bf16.msra.mxu0 %v1914
        %2185 = vmatpush.bf16.msra.mxu0 %v1910
        %2186 = vmatpush.bf16.msra.mxu0 %v1906
        %2187 = vmatpush.bf16.msra.mxu0 %v1902
        %2188 = vmatpush.bf16.msra.mxu0 %v1898
        %2189 = vmatpush.bf16.msra.mxu0 %v1894
        %2190 = vmatmul.bf16.gmra.mxu0 %v1463
        %v2191 = vpop.f32.mrf.mxu0
        %v2192 = vadd.f32 %v2179, %v2191
        %v2193 = vpop.f32.mrf.mxu0
        %2194 = vdwg.mxu0
        %2195 = vmatpush.bf16.msra.mxu0 %v1954
        %2196 = vmatpush.bf16.msra.mxu0 %v1950
        %2197 = vmatpush.bf16.msra.mxu0 %v1946
        %2198 = vmatpush.bf16.msra.mxu0 %v1942
        %2199 = vmatpush.bf16.msra.mxu0 %v1938
        %2200 = vmatpush.bf16.msra.mxu0 %v1934
        %2201 = vmatpush.bf16.msra.mxu0 %v1930
        %2202 = vmatpush.bf16.msra.mxu0 %v1926
        %2203 = vmatmul.bf16.gmra.mxu0 %v1464
        %v2204 = vpop.f32.mrf.mxu0
        %v2205 = vadd.f32 %v2192, %v2204
        %v2206 = vpop.f32.mrf.mxu0
        %2207 = vdwg.mxu0
        %2208 = vmatpush.bf16.msra.mxu0 %v1986
        %2209 = vmatpush.bf16.msra.mxu0 %v1982
        %2210 = vmatpush.bf16.msra.mxu0 %v1978
        %2211 = vmatpush.bf16.msra.mxu0 %v1974
        %2212 = vmatpush.bf16.msra.mxu0 %v1970
        %2213 = vmatpush.bf16.msra.mxu0 %v1966
        %2214 = vmatpush.bf16.msra.mxu0 %v1962
        %2215 = vmatpush.bf16.msra.mxu0 %v1958
        %2216 = vmatmul.bf16.gmra.mxu0 %v1465
        %v2217 = vpop.f32.mrf.mxu0
        %v2218 = vadd.f32 %v2205, %v2217
        %v2219 = vpop.f32.mrf.mxu0
        %2220 = vdwg.mxu0
        %2221 = vmatpush.bf16.msra.mxu0 %v1891
        %2222 = vmatpush.bf16.msra.mxu0 %v1887
        %2223 = vmatpush.bf16.msra.mxu0 %v1883
        %2224 = vmatpush.bf16.msra.mxu0 %v1879
        %2225 = vmatpush.bf16.msra.mxu0 %v1875
        %2226 = vmatpush.bf16.msra.mxu0 %v1871
        %2227 = vmatpush.bf16.msra.mxu0 %v1867
        %2228 = vmatpush.bf16.msra.mxu0 %v1863
        %2229 = vmatmul.bf16.gmra.mxu0 %v1462
        %v2230 = vpop.f32.mrf.mxu0
        %v2231 = vadd.f32 %v1471, %v2230
        %v2232 = vpop.f32.mrf.mxu0
        %2233 = vdwg.mxu0
        %2234 = vmatpush.bf16.msra.mxu0 %v1923
        %2235 = vmatpush.bf16.msra.mxu0 %v1919
        %2236 = vmatpush.bf16.msra.mxu0 %v1915
        %2237 = vmatpush.bf16.msra.mxu0 %v1911
        %2238 = vmatpush.bf16.msra.mxu0 %v1907
        %2239 = vmatpush.bf16.msra.mxu0 %v1903
        %2240 = vmatpush.bf16.msra.mxu0 %v1899
        %2241 = vmatpush.bf16.msra.mxu0 %v1895
        %2242 = vmatmul.bf16.gmra.mxu0 %v1463
        %v2243 = vpop.f32.mrf.mxu0
        %v2244 = vadd.f32 %v2231, %v2243
        %v2245 = vpop.f32.mrf.mxu0
        %2246 = vdwg.mxu0
        %2247 = vmatpush.bf16.msra.mxu0 %v1955
        %2248 = vmatpush.bf16.msra.mxu0 %v1951
        %2249 = vmatpush.bf16.msra.mxu0 %v1947
        %2250 = vmatpush.bf16.msra.mxu0 %v1943
        %2251 = vmatpush.bf16.msra.mxu0 %v1939
        %2252 = vmatpush.bf16.msra.mxu0 %v1935
        %2253 = vmatpush.bf16.msra.mxu0 %v1931
        %2254 = vmatpush.bf16.msra.mxu0 %v1927
        %2255 = vmatmul.bf16.gmra.mxu0 %v1464
        %v2256 = vpop.f32.mrf.mxu0
        %v2257 = vadd.f32 %v2244, %v2256
        %v2258 = vpop.f32.mrf.mxu0
        %2259 = vdwg.mxu0
        %2260 = vmatpush.bf16.msra.mxu0 %v1987
        %2261 = vmatpush.bf16.msra.mxu0 %v1983
        %2262 = vmatpush.bf16.msra.mxu0 %v1979
        %2263 = vmatpush.bf16.msra.mxu0 %v1975
        %2264 = vmatpush.bf16.msra.mxu0 %v1971
        %2265 = vmatpush.bf16.msra.mxu0 %v1967
        %2266 = vmatpush.bf16.msra.mxu0 %v1963
        %2267 = vmatpush.bf16.msra.mxu0 %v1959
        %2268 = vmatmul.bf16.gmra.mxu0 %v1465
        %v2269 = vpop.f32.mrf.mxu0
        %v2270 = vadd.f32 %v2257, %v2269
        %v2271 = vpop.f32.mrf.mxu0
        %2272 = vdwg.mxu0
        %2273 = vmatpush.bf16.msra.mxu0 %v1892
        %2274 = vmatpush.bf16.msra.mxu0 %v1888
        %2275 = vmatpush.bf16.msra.mxu0 %v1884
        %2276 = vmatpush.bf16.msra.mxu0 %v1880
        %2277 = vmatpush.bf16.msra.mxu0 %v1876
        %2278 = vmatpush.bf16.msra.mxu0 %v1872
        %2279 = vmatpush.bf16.msra.mxu0 %v1868
        %2280 = vmatpush.bf16.msra.mxu0 %v1864
        %2281 = vmatmul.bf16.gmra.mxu0 %v1462
        %v2282 = vpop.f32.mrf.mxu0
        %v2283 = vadd.f32 %v1472, %v2282
        %v2284 = vpop.f32.mrf.mxu0
        %2285 = vdwg.mxu0
        %2286 = vmatpush.bf16.msra.mxu0 %v1924
        %2287 = vmatpush.bf16.msra.mxu0 %v1920
        %2288 = vmatpush.bf16.msra.mxu0 %v1916
        %2289 = vmatpush.bf16.msra.mxu0 %v1912
        %2290 = vmatpush.bf16.msra.mxu0 %v1908
        %2291 = vmatpush.bf16.msra.mxu0 %v1904
        %2292 = vmatpush.bf16.msra.mxu0 %v1900
        %2293 = vmatpush.bf16.msra.mxu0 %v1896
        %2294 = vmatmul.bf16.gmra.mxu0 %v1463
        %v2295 = vpop.f32.mrf.mxu0
        %v2296 = vadd.f32 %v2283, %v2295
        %v2297 = vpop.f32.mrf.mxu0
        %2298 = vdwg.mxu0
        %2299 = vmatpush.bf16.msra.mxu0 %v1956
        %2300 = vmatpush.bf16.msra.mxu0 %v1952
        %2301 = vmatpush.bf16.msra.mxu0 %v1948
        %2302 = vmatpush.bf16.msra.mxu0 %v1944
        %2303 = vmatpush.bf16.msra.mxu0 %v1940
        %2304 = vmatpush.bf16.msra.mxu0 %v1936
        %2305 = vmatpush.bf16.msra.mxu0 %v1932
        %2306 = vmatpush.bf16.msra.mxu0 %v1928
        %2307 = vmatmul.bf16.gmra.mxu0 %v1464
        %v2308 = vpop.f32.mrf.mxu0
        %v2309 = vadd.f32 %v2296, %v2308
        %v2310 = vpop.f32.mrf.mxu0
        %2311 = vdwg.mxu0
        %2312 = vmatpush.bf16.msra.mxu0 %v1988
        %2313 = vmatpush.bf16.msra.mxu0 %v1984
        %2314 = vmatpush.bf16.msra.mxu0 %v1980
        %2315 = vmatpush.bf16.msra.mxu0 %v1976
        %2316 = vmatpush.bf16.msra.mxu0 %v1972
        %2317 = vmatpush.bf16.msra.mxu0 %v1968
        %2318 = vmatpush.bf16.msra.mxu0 %v1964
        %2319 = vmatpush.bf16.msra.mxu0 %v1960
        %2320 = vmatmul.bf16.gmra.mxu0 %v1465
        %v2321 = vpop.f32.mrf.mxu0
        %v2322 = vadd.f32 %v2309, %v2321
        %v2323 = vpop.f32.mrf.mxu0
        %2324 = vdwg.mxu0
        %vm2325 = vcmp.ge.f32.partialorder %v2166, 0.0
        %vm2326 = vcmp.ge.f32.partialorder %v2218, 0.0
        %vm2327 = vcmp.ge.f32.partialorder %v2270, 0.0
        %vm2328 = vcmp.ge.f32.partialorder %v2322, 0.0
        %v2329 = vmul.f32 %v2166, 0.2
        %v2330 = vmul.f32 %v2218, 0.2
        %v2331 = vmul.f32 %v2270, 0.2
        %v2332 = vmul.f32 %v2322, 0.2
        %v2333 = vsel %vm2325, %v2166, %v2329
        %v2334 = vsel %vm2326, %v2218, %v2330
        %v2335 = vsel %vm2327, %v2270, %v2331
        %v2336 = vsel %vm2328, %v2322, %v2332
        %v2337 = vmul.f32 %v2333, 1.4142135
        %v2338 = vmul.f32 %v2334, 1.4142135
        %v2339 = vmul.f32 %v2335, 1.4142135
        %v2340 = vmul.f32 %v2336, 1.4142135
        %s2341 = scalar_lea.vmem %s225, 2048 [#allocation5]
        %v2342 = vld [vmem:[%s2341] sm:$0xff]
        %v2343 = vld [vmem:[%s2341 + $0x8] sm:$0xff]
        %v2344 = vld [vmem:[%s2341 + $0x10] sm:$0xff]
        %v2345 = vld [vmem:[%s2341 + $0x18] sm:$0xff]
        %v2346 = vld [vmem:[%s2341 + $0x20] sm:$0xff]
        %v2347 = vld [vmem:[%s2341 + $0x28] sm:$0xff]
        %v2348 = vld [vmem:[%s2341 + $0x30] sm:$0xff]
        %v2349 = vld [vmem:[%s2341 + $0x38] sm:$0xff]
        %v2350 = vld [vmem:[%s2341 + $0x40] sm:$0xff]
        %v2351 = vld [vmem:[%s2341 + $0x48] sm:$0xff]
        %v2352 = vld [vmem:[%s2341 + $0x50] sm:$0xff]
        %v2353 = vld [vmem:[%s2341 + $0x58] sm:$0xff]
        %v2354 = vld [vmem:[%s2341 + $0x60] sm:$0xff]
        %v2355 = vld [vmem:[%s2341 + $0x68] sm:$0xff]
        %v2356 = vld [vmem:[%s2341 + $0x70] sm:$0xff]
        %v2357 = vld [vmem:[%s2341 + $0x78] sm:$0xff]
        %v2358 = vld [vmem:[%s2341 + $0x80] sm:$0xff]
        %v2359 = vld [vmem:[%s2341 + $0x88] sm:$0xff]
        %v2360 = vld [vmem:[%s2341 + $0x90] sm:$0xff]
        %v2361 = vld [vmem:[%s2341 + $0x98] sm:$0xff]
        %v2362 = vld [vmem:[%s2341 + $0xa0] sm:$0xff]
        %v2363 = vld [vmem:[%s2341 + $0xa8] sm:$0xff]
        %v2364 = vld [vmem:[%s2341 + $0xb0] sm:$0xff]
        %v2365 = vld [vmem:[%s2341 + $0xb8] sm:$0xff]
        %v2366 = vld [vmem:[%s2341 + $0xc0] sm:$0xff]
        %v2367 = vld [vmem:[%s2341 + $0xc8] sm:$0xff]
        %v2368 = vld [vmem:[%s2341 + $0xd0] sm:$0xff]
        %v2369 = vld [vmem:[%s2341 + $0xd8] sm:$0xff]
        %v2370 = vld [vmem:[%s2341 + $0xe0] sm:$0xff]
        %v2371 = vld [vmem:[%s2341 + $0xe8] sm:$0xff]
        %v2372 = vld [vmem:[%s2341 + $0xf0] sm:$0xff]
        %v2373 = vld [vmem:[%s2341 + $0xf8] sm:$0xff]
        %v2374 = vld [vmem:[%s2341 + $0x100] sm:$0xff]
        %v2375 = vld [vmem:[%s2341 + $0x108] sm:$0xff]
        %v2376 = vld [vmem:[%s2341 + $0x110] sm:$0xff]
        %v2377 = vld [vmem:[%s2341 + $0x118] sm:$0xff]
        %v2378 = vld [vmem:[%s2341 + $0x120] sm:$0xff]
        %v2379 = vld [vmem:[%s2341 + $0x128] sm:$0xff]
        %v2380 = vld [vmem:[%s2341 + $0x130] sm:$0xff]
        %v2381 = vld [vmem:[%s2341 + $0x138] sm:$0xff]
        %v2382 = vld [vmem:[%s2341 + $0x140] sm:$0xff]
        %v2383 = vld [vmem:[%s2341 + $0x148] sm:$0xff]
        %v2384 = vld [vmem:[%s2341 + $0x150] sm:$0xff]
        %v2385 = vld [vmem:[%s2341 + $0x158] sm:$0xff]
        %v2386 = vld [vmem:[%s2341 + $0x160] sm:$0xff]
        %v2387 = vld [vmem:[%s2341 + $0x168] sm:$0xff]
        %v2388 = vld [vmem:[%s2341 + $0x170] sm:$0xff]
        %v2389 = vld [vmem:[%s2341 + $0x178] sm:$0xff]
        %v2390 = vld [vmem:[%s2341 + $0x180] sm:$0xff]
        %v2391 = vld [vmem:[%s2341 + $0x188] sm:$0xff]
        %v2392 = vld [vmem:[%s2341 + $0x190] sm:$0xff]
        %v2393 = vld [vmem:[%s2341 + $0x198] sm:$0xff]
        %v2394 = vld [vmem:[%s2341 + $0x1a0] sm:$0xff]
        %v2395 = vld [vmem:[%s2341 + $0x1a8] sm:$0xff]
        %v2396 = vld [vmem:[%s2341 + $0x1b0] sm:$0xff]
        %v2397 = vld [vmem:[%s2341 + $0x1b8] sm:$0xff]
        %v2398 = vld [vmem:[%s2341 + $0x1c0] sm:$0xff]
        %v2399 = vld [vmem:[%s2341 + $0x1c8] sm:$0xff]
        %v2400 = vld [vmem:[%s2341 + $0x1d0] sm:$0xff]
        %v2401 = vld [vmem:[%s2341 + $0x1d8] sm:$0xff]
        %v2402 = vld [vmem:[%s2341 + $0x1e0] sm:$0xff]
        %v2403 = vld [vmem:[%s2341 + $0x1e8] sm:$0xff]
        %v2404 = vld [vmem:[%s2341 + $0x1f0] sm:$0xff]
        %v2405 = vld [vmem:[%s2341 + $0x1f8] sm:$0xff]
        %v2406 = vld [vmem:[%s2341 + $0x200] sm:$0xff]
        %v2407 = vld [vmem:[%s2341 + $0x208] sm:$0xff]
        %v2408 = vld [vmem:[%s2341 + $0x210] sm:$0xff]
        %v2409 = vld [vmem:[%s2341 + $0x218] sm:$0xff]
        %v2410 = vld [vmem:[%s2341 + $0x220] sm:$0xff]
        %v2411 = vld [vmem:[%s2341 + $0x228] sm:$0xff]
        %v2412 = vld [vmem:[%s2341 + $0x230] sm:$0xff]
        %v2413 = vld [vmem:[%s2341 + $0x238] sm:$0xff]
        %v2414 = vld [vmem:[%s2341 + $0x240] sm:$0xff]
        %v2415 = vld [vmem:[%s2341 + $0x248] sm:$0xff]
        %v2416 = vld [vmem:[%s2341 + $0x250] sm:$0xff]
        %v2417 = vld [vmem:[%s2341 + $0x258] sm:$0xff]
        %v2418 = vld [vmem:[%s2341 + $0x260] sm:$0xff]
        %v2419 = vld [vmem:[%s2341 + $0x268] sm:$0xff]
        %v2420 = vld [vmem:[%s2341 + $0x270] sm:$0xff]
        %v2421 = vld [vmem:[%s2341 + $0x278] sm:$0xff]
        %v2422 = vld [vmem:[%s2341 + $0x280] sm:$0xff]
        %v2423 = vld [vmem:[%s2341 + $0x288] sm:$0xff]
        %v2424 = vld [vmem:[%s2341 + $0x290] sm:$0xff]
        %v2425 = vld [vmem:[%s2341 + $0x298] sm:$0xff]
        %v2426 = vld [vmem:[%s2341 + $0x2a0] sm:$0xff]
        %v2427 = vld [vmem:[%s2341 + $0x2a8] sm:$0xff]
        %v2428 = vld [vmem:[%s2341 + $0x2b0] sm:$0xff]
        %v2429 = vld [vmem:[%s2341 + $0x2b8] sm:$0xff]
        %v2430 = vld [vmem:[%s2341 + $0x2c0] sm:$0xff]
        %v2431 = vld [vmem:[%s2341 + $0x2c8] sm:$0xff]
        %v2432 = vld [vmem:[%s2341 + $0x2d0] sm:$0xff]
        %v2433 = vld [vmem:[%s2341 + $0x2d8] sm:$0xff]
        %v2434 = vld [vmem:[%s2341 + $0x2e0] sm:$0xff]
        %v2435 = vld [vmem:[%s2341 + $0x2e8] sm:$0xff]
        %v2436 = vld [vmem:[%s2341 + $0x2f0] sm:$0xff]
        %v2437 = vld [vmem:[%s2341 + $0x2f8] sm:$0xff]
        %v2438 = vld [vmem:[%s2341 + $0x300] sm:$0xff]
        %v2439 = vld [vmem:[%s2341 + $0x308] sm:$0xff]
        %v2440 = vld [vmem:[%s2341 + $0x310] sm:$0xff]
        %v2441 = vld [vmem:[%s2341 + $0x318] sm:$0xff]
        %v2442 = vld [vmem:[%s2341 + $0x320] sm:$0xff]
        %v2443 = vld [vmem:[%s2341 + $0x328] sm:$0xff]
        %v2444 = vld [vmem:[%s2341 + $0x330] sm:$0xff]
        %v2445 = vld [vmem:[%s2341 + $0x338] sm:$0xff]
        %v2446 = vld [vmem:[%s2341 + $0x340] sm:$0xff]
        %v2447 = vld [vmem:[%s2341 + $0x348] sm:$0xff]
        %v2448 = vld [vmem:[%s2341 + $0x350] sm:$0xff]
        %v2449 = vld [vmem:[%s2341 + $0x358] sm:$0xff]
        %v2450 = vld [vmem:[%s2341 + $0x360] sm:$0xff]
        %v2451 = vld [vmem:[%s2341 + $0x368] sm:$0xff]
        %v2452 = vld [vmem:[%s2341 + $0x370] sm:$0xff]
        %v2453 = vld [vmem:[%s2341 + $0x378] sm:$0xff]
        %v2454 = vld [vmem:[%s2341 + $0x380] sm:$0xff]
        %v2455 = vld [vmem:[%s2341 + $0x388] sm:$0xff]
        %v2456 = vld [vmem:[%s2341 + $0x390] sm:$0xff]
        %v2457 = vld [vmem:[%s2341 + $0x398] sm:$0xff]
        %v2458 = vld [vmem:[%s2341 + $0x3a0] sm:$0xff]
        %v2459 = vld [vmem:[%s2341 + $0x3a8] sm:$0xff]
        %v2460 = vld [vmem:[%s2341 + $0x3b0] sm:$0xff]
        %v2461 = vld [vmem:[%s2341 + $0x3b8] sm:$0xff]
        %v2462 = vld [vmem:[%s2341 + $0x3c0] sm:$0xff]
        %v2463 = vld [vmem:[%s2341 + $0x3c8] sm:$0xff]
        %v2464 = vld [vmem:[%s2341 + $0x3d0] sm:$0xff]
        %v2465 = vld [vmem:[%s2341 + $0x3d8] sm:$0xff]
        %v2466 = vld [vmem:[%s2341 + $0x3e0] sm:$0xff]
        %v2467 = vld [vmem:[%s2341 + $0x3e8] sm:$0xff]
        %v2468 = vld [vmem:[%s2341 + $0x3f0] sm:$0xff]
        %v2469 = vld [vmem:[%s2341 + $0x3f8] sm:$0xff]
        %v2470 = vpack.c.bf16 %v2337, %v2337
        %v2471 = vpack.c.bf16 %v2338, %v2338
        %v2472 = vpack.c.bf16 %v2339, %v2339
        %v2473 = vpack.c.bf16 %v2340, %v2340
        %s2474 = scalar_lea.vmem %s235, 8 [#allocation7]
        %v2475 = vld [vmem:[%s2474] sm:$0xf]
        %v2477 = vperm.slane %v2475, 0
        %v2478 = vperm.slane %v2475, 1
        %v2479 = vperm.slane %v2475, 2
        %v2480 = vperm.slane %v2475, 3
        %v2613 = vunpack.c.l.b16 %v2342
        %v2614 = vunpack.c.h.b16 %v2342
        %v2615 = vunpack.c.l.b16 %v2343
        %v2616 = vunpack.c.h.b16 %v2343
        %v2617 = vunpack.c.l.b16 %v2344
        %v2618 = vunpack.c.h.b16 %v2344
        %v2619 = vunpack.c.l.b16 %v2345
        %v2620 = vunpack.c.h.b16 %v2345
        %v2621 = vunpack.c.l.b16 %v2346
        %v2622 = vunpack.c.h.b16 %v2346
        %v2623 = vunpack.c.l.b16 %v2347
        %v2624 = vunpack.c.h.b16 %v2347
        %v2625 = vunpack.c.l.b16 %v2348
        %v2626 = vunpack.c.h.b16 %v2348
        %v2627 = vunpack.c.l.b16 %v2349
        %v2628 = vunpack.c.h.b16 %v2349
        %v2629 = vunpack.c.l.b16 %v2350
        %v2630 = vunpack.c.h.b16 %v2350
        %v2631 = vunpack.c.l.b16 %v2351
        %v2632 = vunpack.c.h.b16 %v2351
        %v2633 = vunpack.c.l.b16 %v2352
        %v2634 = vunpack.c.h.b16 %v2352
        %v2635 = vunpack.c.l.b16 %v2353
        %v2636 = vunpack.c.h.b16 %v2353
        %v2637 = vunpack.c.l.b16 %v2354
        %v2638 = vunpack.c.h.b16 %v2354
        %v2639 = vunpack.c.l.b16 %v2355
        %v2640 = vunpack.c.h.b16 %v2355
        %v2641 = vunpack.c.l.b16 %v2356
        %v2642 = vunpack.c.h.b16 %v2356
        %v2643 = vunpack.c.l.b16 %v2357
        %v2644 = vunpack.c.h.b16 %v2357
        %v2645 = vunpack.c.l.b16 %v2358
        %v2646 = vunpack.c.h.b16 %v2358
        %v2647 = vunpack.c.l.b16 %v2359
        %v2648 = vunpack.c.h.b16 %v2359
        %v2649 = vunpack.c.l.b16 %v2360
        %v2650 = vunpack.c.h.b16 %v2360
        %v2651 = vunpack.c.l.b16 %v2361
        %v2652 = vunpack.c.h.b16 %v2361
        %v2653 = vunpack.c.l.b16 %v2362
        %v2654 = vunpack.c.h.b16 %v2362
        %v2655 = vunpack.c.l.b16 %v2363
        %v2656 = vunpack.c.h.b16 %v2363
        %v2657 = vunpack.c.l.b16 %v2364
        %v2658 = vunpack.c.h.b16 %v2364
        %v2659 = vunpack.c.l.b16 %v2365
        %v2660 = vunpack.c.h.b16 %v2365
        %v2661 = vunpack.c.l.b16 %v2366
        %v2662 = vunpack.c.h.b16 %v2366
        %v2663 = vunpack.c.l.b16 %v2367
        %v2664 = vunpack.c.h.b16 %v2367
        %v2665 = vunpack.c.l.b16 %v2368
        %v2666 = vunpack.c.h.b16 %v2368
        %v2667 = vunpack.c.l.b16 %v2369
        %v2668 = vunpack.c.h.b16 %v2369
        %v2669 = vunpack.c.l.b16 %v2370
        %v2670 = vunpack.c.h.b16 %v2370
        %v2671 = vunpack.c.l.b16 %v2371
        %v2672 = vunpack.c.h.b16 %v2371
        %v2673 = vunpack.c.l.b16 %v2372
        %v2674 = vunpack.c.h.b16 %v2372
        %v2675 = vunpack.c.l.b16 %v2373
        %v2676 = vunpack.c.h.b16 %v2373
        %v2677 = vunpack.c.l.b16 %v2374
        %v2678 = vunpack.c.h.b16 %v2374
        %v2679 = vunpack.c.l.b16 %v2375
        %v2680 = vunpack.c.h.b16 %v2375
        %v2681 = vunpack.c.l.b16 %v2376
        %v2682 = vunpack.c.h.b16 %v2376
        %v2683 = vunpack.c.l.b16 %v2377
        %v2684 = vunpack.c.h.b16 %v2377
        %v2685 = vunpack.c.l.b16 %v2378
        %v2686 = vunpack.c.h.b16 %v2378
        %v2687 = vunpack.c.l.b16 %v2379
        %v2688 = vunpack.c.h.b16 %v2379
        %v2689 = vunpack.c.l.b16 %v2380
        %v2690 = vunpack.c.h.b16 %v2380
        %v2691 = vunpack.c.l.b16 %v2381
        %v2692 = vunpack.c.h.b16 %v2381
        %v2693 = vunpack.c.l.b16 %v2382
        %v2694 = vunpack.c.h.b16 %v2382
        %v2695 = vunpack.c.l.b16 %v2383
        %v2696 = vunpack.c.h.b16 %v2383
        %v2697 = vunpack.c.l.b16 %v2384
        %v2698 = vunpack.c.h.b16 %v2384
        %v2699 = vunpack.c.l.b16 %v2385
        %v2700 = vunpack.c.h.b16 %v2385
        %v2701 = vunpack.c.l.b16 %v2386
        %v2702 = vunpack.c.h.b16 %v2386
        %v2703 = vunpack.c.l.b16 %v2387
        %v2704 = vunpack.c.h.b16 %v2387
        %v2705 = vunpack.c.l.b16 %v2388
        %v2706 = vunpack.c.h.b16 %v2388
        %v2707 = vunpack.c.l.b16 %v2389
        %v2708 = vunpack.c.h.b16 %v2389
        %v2709 = vunpack.c.l.b16 %v2390
        %v2710 = vunpack.c.h.b16 %v2390
        %v2711 = vunpack.c.l.b16 %v2391
        %v2712 = vunpack.c.h.b16 %v2391
        %v2713 = vunpack.c.l.b16 %v2392
        %v2714 = vunpack.c.h.b16 %v2392
        %v2715 = vunpack.c.l.b16 %v2393
        %v2716 = vunpack.c.h.b16 %v2393
        %v2717 = vunpack.c.l.b16 %v2394
        %v2718 = vunpack.c.h.b16 %v2394
        %v2719 = vunpack.c.l.b16 %v2395
        %v2720 = vunpack.c.h.b16 %v2395
        %v2721 = vunpack.c.l.b16 %v2396
        %v2722 = vunpack.c.h.b16 %v2396
        %v2723 = vunpack.c.l.b16 %v2397
        %v2724 = vunpack.c.h.b16 %v2397
        %v2725 = vunpack.c.l.b16 %v2398
        %v2726 = vunpack.c.h.b16 %v2398
        %v2727 = vunpack.c.l.b16 %v2399
        %v2728 = vunpack.c.h.b16 %v2399
        %v2729 = vunpack.c.l.b16 %v2400
        %v2730 = vunpack.c.h.b16 %v2400
        %v2731 = vunpack.c.l.b16 %v2401
        %v2732 = vunpack.c.h.b16 %v2401
        %v2733 = vunpack.c.l.b16 %v2402
        %v2734 = vunpack.c.h.b16 %v2402
        %v2735 = vunpack.c.l.b16 %v2403
        %v2736 = vunpack.c.h.b16 %v2403
        %v2737 = vunpack.c.l.b16 %v2404
        %v2738 = vunpack.c.h.b16 %v2404
        %v2739 = vunpack.c.l.b16 %v2405
        %v2740 = vunpack.c.h.b16 %v2405
        %v2741 = vunpack.c.l.b16 %v2406
        %v2742 = vunpack.c.h.b16 %v2406
        %v2743 = vunpack.c.l.b16 %v2407
        %v2744 = vunpack.c.h.b16 %v2407
        %v2745 = vunpack.c.l.b16 %v2408
        %v2746 = vunpack.c.h.b16 %v2408
        %v2747 = vunpack.c.l.b16 %v2409
        %v2748 = vunpack.c.h.b16 %v2409
        %v2749 = vunpack.c.l.b16 %v2410
        %v2750 = vunpack.c.h.b16 %v2410
        %v2751 = vunpack.c.l.b16 %v2411
        %v2752 = vunpack.c.h.b16 %v2411
        %v2753 = vunpack.c.l.b16 %v2412
        %v2754 = vunpack.c.h.b16 %v2412
        %v2755 = vunpack.c.l.b16 %v2413
        %v2756 = vunpack.c.h.b16 %v2413
        %v2757 = vunpack.c.l.b16 %v2414
        %v2758 = vunpack.c.h.b16 %v2414
        %v2759 = vunpack.c.l.b16 %v2415
        %v2760 = vunpack.c.h.b16 %v2415
        %v2761 = vunpack.c.l.b16 %v2416
        %v2762 = vunpack.c.h.b16 %v2416
        %v2763 = vunpack.c.l.b16 %v2417
        %v2764 = vunpack.c.h.b16 %v2417
        %v2765 = vunpack.c.l.b16 %v2418
        %v2766 = vunpack.c.h.b16 %v2418
        %v2767 = vunpack.c.l.b16 %v2419
        %v2768 = vunpack.c.h.b16 %v2419
        %v2769 = vunpack.c.l.b16 %v2420
        %v2770 = vunpack.c.h.b16 %v2420
        %v2771 = vunpack.c.l.b16 %v2421
        %v2772 = vunpack.c.h.b16 %v2421
        %v2773 = vunpack.c.l.b16 %v2422
        %v2774 = vunpack.c.h.b16 %v2422
        %v2775 = vunpack.c.l.b16 %v2423
        %v2776 = vunpack.c.h.b16 %v2423
        %v2777 = vunpack.c.l.b16 %v2424
        %v2778 = vunpack.c.h.b16 %v2424
        %v2779 = vunpack.c.l.b16 %v2425
        %v2780 = vunpack.c.h.b16 %v2425
        %v2781 = vunpack.c.l.b16 %v2426
        %v2782 = vunpack.c.h.b16 %v2426
        %v2783 = vunpack.c.l.b16 %v2427
        %v2784 = vunpack.c.h.b16 %v2427
        %v2785 = vunpack.c.l.b16 %v2428
        %v2786 = vunpack.c.h.b16 %v2428
        %v2787 = vunpack.c.l.b16 %v2429
        %v2788 = vunpack.c.h.b16 %v2429
        %v2789 = vunpack.c.l.b16 %v2430
        %v2790 = vunpack.c.h.b16 %v2430
        %v2791 = vunpack.c.l.b16 %v2431
        %v2792 = vunpack.c.h.b16 %v2431
        %v2793 = vunpack.c.l.b16 %v2432
        %v2794 = vunpack.c.h.b16 %v2432
        %v2795 = vunpack.c.l.b16 %v2433
        %v2796 = vunpack.c.h.b16 %v2433
        %v2797 = vunpack.c.l.b16 %v2434
        %v2798 = vunpack.c.h.b16 %v2434
        %v2799 = vunpack.c.l.b16 %v2435
        %v2800 = vunpack.c.h.b16 %v2435
        %v2801 = vunpack.c.l.b16 %v2436
        %v2802 = vunpack.c.h.b16 %v2436
        %v2803 = vunpack.c.l.b16 %v2437
        %v2804 = vunpack.c.h.b16 %v2437
        %v2805 = vunpack.c.l.b16 %v2438
        %v2806 = vunpack.c.h.b16 %v2438
        %v2807 = vunpack.c.l.b16 %v2439
        %v2808 = vunpack.c.h.b16 %v2439
        %v2809 = vunpack.c.l.b16 %v2440
        %v2810 = vunpack.c.h.b16 %v2440
        %v2811 = vunpack.c.l.b16 %v2441
        %v2812 = vunpack.c.h.b16 %v2441
        %v2813 = vunpack.c.l.b16 %v2442
        %v2814 = vunpack.c.h.b16 %v2442
        %v2815 = vunpack.c.l.b16 %v2443
        %v2816 = vunpack.c.h.b16 %v2443
        %v2817 = vunpack.c.l.b16 %v2444
        %v2818 = vunpack.c.h.b16 %v2444
        %v2819 = vunpack.c.l.b16 %v2445
        %v2820 = vunpack.c.h.b16 %v2445
        %v2821 = vunpack.c.l.b16 %v2446
        %v2822 = vunpack.c.h.b16 %v2446
        %v2823 = vunpack.c.l.b16 %v2447
        %v2824 = vunpack.c.h.b16 %v2447
        %v2825 = vunpack.c.l.b16 %v2448
        %v2826 = vunpack.c.h.b16 %v2448
        %v2827 = vunpack.c.l.b16 %v2449
        %v2828 = vunpack.c.h.b16 %v2449
        %v2829 = vunpack.c.l.b16 %v2450
        %v2830 = vunpack.c.h.b16 %v2450
        %v2831 = vunpack.c.l.b16 %v2451
        %v2832 = vunpack.c.h.b16 %v2451
        %v2833 = vunpack.c.l.b16 %v2452
        %v2834 = vunpack.c.h.b16 %v2452
        %v2835 = vunpack.c.l.b16 %v2453
        %v2836 = vunpack.c.h.b16 %v2453
        %v2837 = vunpack.c.l.b16 %v2454
        %v2838 = vunpack.c.h.b16 %v2454
        %v2839 = vunpack.c.l.b16 %v2455
        %v2840 = vunpack.c.h.b16 %v2455
        %v2841 = vunpack.c.l.b16 %v2456
        %v2842 = vunpack.c.h.b16 %v2456
        %v2843 = vunpack.c.l.b16 %v2457
        %v2844 = vunpack.c.h.b16 %v2457
        %v2845 = vunpack.c.l.b16 %v2458
        %v2846 = vunpack.c.h.b16 %v2458
        %v2847 = vunpack.c.l.b16 %v2459
        %v2848 = vunpack.c.h.b16 %v2459
        %v2849 = vunpack.c.l.b16 %v2460
        %v2850 = vunpack.c.h.b16 %v2460
        %v2851 = vunpack.c.l.b16 %v2461
        %v2852 = vunpack.c.h.b16 %v2461
        %v2853 = vunpack.c.l.b16 %v2462
        %v2854 = vunpack.c.h.b16 %v2462
        %v2855 = vunpack.c.l.b16 %v2463
        %v2856 = vunpack.c.h.b16 %v2463
        %v2857 = vunpack.c.l.b16 %v2464
        %v2858 = vunpack.c.h.b16 %v2464
        %v2859 = vunpack.c.l.b16 %v2465
        %v2860 = vunpack.c.h.b16 %v2465
        %v2861 = vunpack.c.l.b16 %v2466
        %v2862 = vunpack.c.h.b16 %v2466
        %v2863 = vunpack.c.l.b16 %v2467
        %v2864 = vunpack.c.h.b16 %v2467
        %v2865 = vunpack.c.l.b16 %v2468
        %v2866 = vunpack.c.h.b16 %v2468
        %v2867 = vunpack.c.l.b16 %v2469
        %v2868 = vunpack.c.h.b16 %v2469
        %v2869 = vpack.c.b16 %v2617, %v2613
        %v2870 = vpack.c.b16 %v2618, %v2614
        %v2871 = vpack.c.b16 %v2619, %v2615
        %v2872 = vpack.c.b16 %v2620, %v2616
        %v2873 = vpack.c.b16 %v2625, %v2621
        %v2874 = vpack.c.b16 %v2626, %v2622
        %v2875 = vpack.c.b16 %v2627, %v2623
        %v2876 = vpack.c.b16 %v2628, %v2624
        %v2877 = vpack.c.b16 %v2633, %v2629
        %v2878 = vpack.c.b16 %v2634, %v2630
        %v2879 = vpack.c.b16 %v2635, %v2631
        %v2880 = vpack.c.b16 %v2636, %v2632
        %v2881 = vpack.c.b16 %v2641, %v2637
        %v2882 = vpack.c.b16 %v2642, %v2638
        %v2883 = vpack.c.b16 %v2643, %v2639
        %v2884 = vpack.c.b16 %v2644, %v2640
        %v2885 = vpack.c.b16 %v2649, %v2645
        %v2886 = vpack.c.b16 %v2650, %v2646
        %v2887 = vpack.c.b16 %v2651, %v2647
        %v2888 = vpack.c.b16 %v2652, %v2648
        %v2889 = vpack.c.b16 %v2657, %v2653
        %v2890 = vpack.c.b16 %v2658, %v2654
        %v2891 = vpack.c.b16 %v2659, %v2655
        %v2892 = vpack.c.b16 %v2660, %v2656
        %v2893 = vpack.c.b16 %v2665, %v2661
        %v2894 = vpack.c.b16 %v2666, %v2662
        %v2895 = vpack.c.b16 %v2667, %v2663
        %v2896 = vpack.c.b16 %v2668, %v2664
        %v2897 = vpack.c.b16 %v2673, %v2669
        %v2898 = vpack.c.b16 %v2674, %v2670
        %v2899 = vpack.c.b16 %v2675, %v2671
        %v2900 = vpack.c.b16 %v2676, %v2672
        %v2901 = vpack.c.b16 %v2681, %v2677
        %v2902 = vpack.c.b16 %v2682, %v2678
        %v2903 = vpack.c.b16 %v2683, %v2679
        %v2904 = vpack.c.b16 %v2684, %v2680
        %v2905 = vpack.c.b16 %v2689, %v2685
        %v2906 = vpack.c.b16 %v2690, %v2686
        %v2907 = vpack.c.b16 %v2691, %v2687
        %v2908 = vpack.c.b16 %v2692, %v2688
        %v2909 = vpack.c.b16 %v2697, %v2693
        %v2910 = vpack.c.b16 %v2698, %v2694
        %v2911 = vpack.c.b16 %v2699, %v2695
        %v2912 = vpack.c.b16 %v2700, %v2696
        %v2913 = vpack.c.b16 %v2705, %v2701
        %v2914 = vpack.c.b16 %v2706, %v2702
        %v2915 = vpack.c.b16 %v2707, %v2703
        %v2916 = vpack.c.b16 %v2708, %v2704
        %v2917 = vpack.c.b16 %v2713, %v2709
        %v2918 = vpack.c.b16 %v2714, %v2710
        %v2919 = vpack.c.b16 %v2715, %v2711
        %v2920 = vpack.c.b16 %v2716, %v2712
        %v2921 = vpack.c.b16 %v2721, %v2717
        %v2922 = vpack.c.b16 %v2722, %v2718
        %v2923 = vpack.c.b16 %v2723, %v2719
        %v2924 = vpack.c.b16 %v2724, %v2720
        %v2925 = vpack.c.b16 %v2729, %v2725
        %v2926 = vpack.c.b16 %v2730, %v2726
        %v2927 = vpack.c.b16 %v2731, %v2727
        %v2928 = vpack.c.b16 %v2732, %v2728
        %v2929 = vpack.c.b16 %v2737, %v2733
        %v2930 = vpack.c.b16 %v2738, %v2734
        %v2931 = vpack.c.b16 %v2739, %v2735
        %v2932 = vpack.c.b16 %v2740, %v2736
        %v2933 = vpack.c.b16 %v2745, %v2741
        %v2934 = vpack.c.b16 %v2746, %v2742
        %v2935 = vpack.c.b16 %v2747, %v2743
        %v2936 = vpack.c.b16 %v2748, %v2744
        %v2937 = vpack.c.b16 %v2753, %v2749
        %v2938 = vpack.c.b16 %v2754, %v2750
        %v2939 = vpack.c.b16 %v2755, %v2751
        %v2940 = vpack.c.b16 %v2756, %v2752
        %v2941 = vpack.c.b16 %v2761, %v2757
        %v2942 = vpack.c.b16 %v2762, %v2758
        %v2943 = vpack.c.b16 %v2763, %v2759
        %v2944 = vpack.c.b16 %v2764, %v2760
        %v2945 = vpack.c.b16 %v2769, %v2765
        %v2946 = vpack.c.b16 %v2770, %v2766
        %v2947 = vpack.c.b16 %v2771, %v2767
        %v2948 = vpack.c.b16 %v2772, %v2768
        %v2949 = vpack.c.b16 %v2777, %v2773
        %v2950 = vpack.c.b16 %v2778, %v2774
        %v2951 = vpack.c.b16 %v2779, %v2775
        %v2952 = vpack.c.b16 %v2780, %v2776
        %v2953 = vpack.c.b16 %v2785, %v2781
        %v2954 = vpack.c.b16 %v2786, %v2782
        %v2955 = vpack.c.b16 %v2787, %v2783
        %v2956 = vpack.c.b16 %v2788, %v2784
        %v2957 = vpack.c.b16 %v2793, %v2789
        %v2958 = vpack.c.b16 %v2794, %v2790
        %v2959 = vpack.c.b16 %v2795, %v2791
        %v2960 = vpack.c.b16 %v2796, %v2792
        %v2961 = vpack.c.b16 %v2801, %v2797
        %v2962 = vpack.c.b16 %v2802, %v2798
        %v2963 = vpack.c.b16 %v2803, %v2799
        %v2964 = vpack.c.b16 %v2804, %v2800
        %v2965 = vpack.c.b16 %v2809, %v2805
        %v2966 = vpack.c.b16 %v2810, %v2806
        %v2967 = vpack.c.b16 %v2811, %v2807
        %v2968 = vpack.c.b16 %v2812, %v2808
        %v2969 = vpack.c.b16 %v2817, %v2813
        %v2970 = vpack.c.b16 %v2818, %v2814
        %v2971 = vpack.c.b16 %v2819, %v2815
        %v2972 = vpack.c.b16 %v2820, %v2816
        %v2973 = vpack.c.b16 %v2825, %v2821
        %v2974 = vpack.c.b16 %v2826, %v2822
        %v2975 = vpack.c.b16 %v2827, %v2823
        %v2976 = vpack.c.b16 %v2828, %v2824
        %v2977 = vpack.c.b16 %v2833, %v2829
        %v2978 = vpack.c.b16 %v2834, %v2830
        %v2979 = vpack.c.b16 %v2835, %v2831
        %v2980 = vpack.c.b16 %v2836, %v2832
        %v2981 = vpack.c.b16 %v2841, %v2837
        %v2982 = vpack.c.b16 %v2842, %v2838
        %v2983 = vpack.c.b16 %v2843, %v2839
        %v2984 = vpack.c.b16 %v2844, %v2840
        %v2985 = vpack.c.b16 %v2849, %v2845
        %v2986 = vpack.c.b16 %v2850, %v2846
        %v2987 = vpack.c.b16 %v2851, %v2847
        %v2988 = vpack.c.b16 %v2852, %v2848
        %v2989 = vpack.c.b16 %v2857, %v2853
        %v2990 = vpack.c.b16 %v2858, %v2854
        %v2991 = vpack.c.b16 %v2859, %v2855
        %v2992 = vpack.c.b16 %v2860, %v2856
        %v2993 = vpack.c.b16 %v2865, %v2861
        %v2994 = vpack.c.b16 %v2866, %v2862
        %v2995 = vpack.c.b16 %v2867, %v2863
        %v2996 = vpack.c.b16 %v2868, %v2864
        %3125 = vmatpush.bf16.msra.mxu0 %v2897
        %3126 = vmatpush.bf16.msra.mxu0 %v2893
        %3127 = vmatpush.bf16.msra.mxu0 %v2889
        %3128 = vmatpush.bf16.msra.mxu0 %v2885
        %3129 = vmatpush.bf16.msra.mxu0 %v2881
        %3130 = vmatpush.bf16.msra.mxu0 %v2877
        %3131 = vmatpush.bf16.msra.mxu0 %v2873
        %3132 = vmatpush.bf16.msra.mxu0 %v2869
        %3133 = vmatmul.bf16.gmra.mxu0 %v2470
        %v3134 = vpop.f32.mrf.mxu0
        %v3135 = vadd.f32 %v2477, %v3134
        %v3136 = vpop.f32.mrf.mxu0
        %3137 = vdwg.mxu0
        %3138 = vmatpush.bf16.msra.mxu0 %v2929
        %3139 = vmatpush.bf16.msra.mxu0 %v2925
        %3140 = vmatpush.bf16.msra.mxu0 %v2921
        %3141 = vmatpush.bf16.msra.mxu0 %v2917
        %3142 = vmatpush.bf16.msra.mxu0 %v2913
        %3143 = vmatpush.bf16.msra.mxu0 %v2909
        %3144 = vmatpush.bf16.msra.mxu0 %v2905
        %3145 = vmatpush.bf16.msra.mxu0 %v2901
        %3146 = vmatmul.bf16.gmra.mxu0 %v2471
        %v3147 = vpop.f32.mrf.mxu0
        %v3148 = vadd.f32 %v3135, %v3147
        %v3149 = vpop.f32.mrf.mxu0
        %3150 = vdwg.mxu0
        %3151 = vmatpush.bf16.msra.mxu0 %v2961
        %3152 = vmatpush.bf16.msra.mxu0 %v2957
        %3153 = vmatpush.bf16.msra.mxu0 %v2953
        %3154 = vmatpush.bf16.msra.mxu0 %v2949
        %3155 = vmatpush.bf16.msra.mxu0 %v2945
        %3156 = vmatpush.bf16.msra.mxu0 %v2941
        %3157 = vmatpush.bf16.msra.mxu0 %v2937
        %3158 = vmatpush.bf16.msra.mxu0 %v2933
        %3159 = vmatmul.bf16.gmra.mxu0 %v2472
        %v3160 = vpop.f32.mrf.mxu0
        %v3161 = vadd.f32 %v3148, %v3160
        %v3162 = vpop.f32.mrf.mxu0
        %3163 = vdwg.mxu0
        %3164 = vmatpush.bf16.msra.mxu0 %v2993
        %3165 = vmatpush.bf16.msra.mxu0 %v2989
        %3166 = vmatpush.bf16.msra.mxu0 %v2985
        %3167 = vmatpush.bf16.msra.mxu0 %v2981
        %3168 = vmatpush.bf16.msra.mxu0 %v2977
        %3169 = vmatpush.bf16.msra.mxu0 %v2973
        %3170 = vmatpush.bf16.msra.mxu0 %v2969
        %3171 = vmatpush.bf16.msra.mxu0 %v2965
        %3172 = vmatmul.bf16.gmra.mxu0 %v2473
        %v3173 = vpop.f32.mrf.mxu0
        %v3174 = vadd.f32 %v3161, %v3173
        %v3175 = vpop.f32.mrf.mxu0
        %3176 = vdwg.mxu0
        %3177 = vmatpush.bf16.msra.mxu0 %v2898
        %3178 = vmatpush.bf16.msra.mxu0 %v2894
        %3179 = vmatpush.bf16.msra.mxu0 %v2890
        %3180 = vmatpush.bf16.msra.mxu0 %v2886
        %3181 = vmatpush.bf16.msra.mxu0 %v2882
        %3182 = vmatpush.bf16.msra.mxu0 %v2878
        %3183 = vmatpush.bf16.msra.mxu0 %v2874
        %3184 = vmatpush.bf16.msra.mxu0 %v2870
        %3185 = vmatmul.bf16.gmra.mxu0 %v2470
        %v3186 = vpop.f32.mrf.mxu0
        %v3187 = vadd.f32 %v2478, %v3186
        %v3188 = vpop.f32.mrf.mxu0
        %3189 = vdwg.mxu0
        %3190 = vmatpush.bf16.msra.mxu0 %v2930
        %3191 = vmatpush.bf16.msra.mxu0 %v2926
        %3192 = vmatpush.bf16.msra.mxu0 %v2922
        %3193 = vmatpush.bf16.msra.mxu0 %v2918
        %3194 = vmatpush.bf16.msra.mxu0 %v2914
        %3195 = vmatpush.bf16.msra.mxu0 %v2910
        %3196 = vmatpush.bf16.msra.mxu0 %v2906
        %3197 = vmatpush.bf16.msra.mxu0 %v2902
        %3198 = vmatmul.bf16.gmra.mxu0 %v2471
        %v3199 = vpop.f32.mrf.mxu0
        %v3200 = vadd.f32 %v3187, %v3199
        %v3201 = vpop.f32.mrf.mxu0
        %3202 = vdwg.mxu0
        %3203 = vmatpush.bf16.msra.mxu0 %v2962
        %3204 = vmatpush.bf16.msra.mxu0 %v2958
        %3205 = vmatpush.bf16.msra.mxu0 %v2954
        %3206 = vmatpush.bf16.msra.mxu0 %v2950
        %3207 = vmatpush.bf16.msra.mxu0 %v2946
        %3208 = vmatpush.bf16.msra.mxu0 %v2942
        %3209 = vmatpush.bf16.msra.mxu0 %v2938
        %3210 = vmatpush.bf16.msra.mxu0 %v2934
        %3211 = vmatmul.bf16.gmra.mxu0 %v2472
        %v3212 = vpop.f32.mrf.mxu0
        %v3213 = vadd.f32 %v3200, %v3212
        %v3214 = vpop.f32.mrf.mxu0
        %3215 = vdwg.mxu0
        %3216 = vmatpush.bf16.msra.mxu0 %v2994
        %3217 = vmatpush.bf16.msra.mxu0 %v2990
        %3218 = vmatpush.bf16.msra.mxu0 %v2986
        %3219 = vmatpush.bf16.msra.mxu0 %v2982
        %3220 = vmatpush.bf16.msra.mxu0 %v2978
        %3221 = vmatpush.bf16.msra.mxu0 %v2974
        %3222 = vmatpush.bf16.msra.mxu0 %v2970
        %3223 = vmatpush.bf16.msra.mxu0 %v2966
        %3224 = vmatmul.bf16.gmra.mxu0 %v2473
        %v3225 = vpop.f32.mrf.mxu0
        %v3226 = vadd.f32 %v3213, %v3225
        %v3227 = vpop.f32.mrf.mxu0
        %3228 = vdwg.mxu0
        %3229 = vmatpush.bf16.msra.mxu0 %v2899
        %3230 = vmatpush.bf16.msra.mxu0 %v2895
        %3231 = vmatpush.bf16.msra.mxu0 %v2891
        %3232 = vmatpush.bf16.msra.mxu0 %v2887
        %3233 = vmatpush.bf16.msra.mxu0 %v2883
        %3234 = vmatpush.bf16.msra.mxu0 %v2879
        %3235 = vmatpush.bf16.msra.mxu0 %v2875
        %3236 = vmatpush.bf16.msra.mxu0 %v2871
        %3237 = vmatmul.bf16.gmra.mxu0 %v2470
        %v3238 = vpop.f32.mrf.mxu0
        %v3239 = vadd.f32 %v2479, %v3238
        %v3240 = vpop.f32.mrf.mxu0
        %3241 = vdwg.mxu0
        %3242 = vmatpush.bf16.msra.mxu0 %v2931
        %3243 = vmatpush.bf16.msra.mxu0 %v2927
        %3244 = vmatpush.bf16.msra.mxu0 %v2923
        %3245 = vmatpush.bf16.msra.mxu0 %v2919
        %3246 = vmatpush.bf16.msra.mxu0 %v2915
        %3247 = vmatpush.bf16.msra.mxu0 %v2911
        %3248 = vmatpush.bf16.msra.mxu0 %v2907
        %3249 = vmatpush.bf16.msra.mxu0 %v2903
        %3250 = vmatmul.bf16.gmra.mxu0 %v2471
        %v3251 = vpop.f32.mrf.mxu0
        %v3252 = vadd.f32 %v3239, %v3251
        %v3253 = vpop.f32.mrf.mxu0
        %3254 = vdwg.mxu0
        %3255 = vmatpush.bf16.msra.mxu0 %v2963
        %3256 = vmatpush.bf16.msra.mxu0 %v2959
        %3257 = vmatpush.bf16.msra.mxu0 %v2955
        %3258 = vmatpush.bf16.msra.mxu0 %v2951
        %3259 = vmatpush.bf16.msra.mxu0 %v2947
        %3260 = vmatpush.bf16.msra.mxu0 %v2943
        %3261 = vmatpush.bf16.msra.mxu0 %v2939
        %3262 = vmatpush.bf16.msra.mxu0 %v2935
        %3263 = vmatmul.bf16.gmra.mxu0 %v2472
        %v3264 = vpop.f32.mrf.mxu0
        %v3265 = vadd.f32 %v3252, %v3264
        %v3266 = vpop.f32.mrf.mxu0
        %3267 = vdwg.mxu0
        %3268 = vmatpush.bf16.msra.mxu0 %v2995
        %3269 = vmatpush.bf16.msra.mxu0 %v2991
        %3270 = vmatpush.bf16.msra.mxu0 %v2987
        %3271 = vmatpush.bf16.msra.mxu0 %v2983
        %3272 = vmatpush.bf16.msra.mxu0 %v2979
        %3273 = vmatpush.bf16.msra.mxu0 %v2975
        %3274 = vmatpush.bf16.msra.mxu0 %v2971
        %3275 = vmatpush.bf16.msra.mxu0 %v2967
        %3276 = vmatmul.bf16.gmra.mxu0 %v2473
        %v3277 = vpop.f32.mrf.mxu0
        %v3278 = vadd.f32 %v3265, %v3277
        %v3279 = vpop.f32.mrf.mxu0
        %3280 = vdwg.mxu0
        %3281 = vmatpush.bf16.msra.mxu0 %v2900
        %3282 = vmatpush.bf16.msra.mxu0 %v2896
        %3283 = vmatpush.bf16.msra.mxu0 %v2892
        %3284 = vmatpush.bf16.msra.mxu0 %v2888
        %3285 = vmatpush.bf16.msra.mxu0 %v2884
        %3286 = vmatpush.bf16.msra.mxu0 %v2880
        %3287 = vmatpush.bf16.msra.mxu0 %v2876
        %3288 = vmatpush.bf16.msra.mxu0 %v2872
        %3289 = vmatmul.bf16.gmra.mxu0 %v2470
        %v3290 = vpop.f32.mrf.mxu0
        %v3291 = vadd.f32 %v2480, %v3290
        %v3292 = vpop.f32.mrf.mxu0
        %3293 = vdwg.mxu0
        %3294 = vmatpush.bf16.msra.mxu0 %v2932
        %3295 = vmatpush.bf16.msra.mxu0 %v2928
        %3296 = vmatpush.bf16.msra.mxu0 %v2924
        %3297 = vmatpush.bf16.msra.mxu0 %v2920
        %3298 = vmatpush.bf16.msra.mxu0 %v2916
        %3299 = vmatpush.bf16.msra.mxu0 %v2912
        %3300 = vmatpush.bf16.msra.mxu0 %v2908
        %3301 = vmatpush.bf16.msra.mxu0 %v2904
        %3302 = vmatmul.bf16.gmra.mxu0 %v2471
        %v3303 = vpop.f32.mrf.mxu0
        %v3304 = vadd.f32 %v3291, %v3303
        %v3305 = vpop.f32.mrf.mxu0
        %3306 = vdwg.mxu0
        %3307 = vmatpush.bf16.msra.mxu0 %v2964
        %3308 = vmatpush.bf16.msra.mxu0 %v2960
        %3309 = vmatpush.bf16.msra.mxu0 %v2956
        %3310 = vmatpush.bf16.msra.mxu0 %v2952
        %3311 = vmatpush.bf16.msra.mxu0 %v2948
        %3312 = vmatpush.bf16.msra.mxu0 %v2944
        %3313 = vmatpush.bf16.msra.mxu0 %v2940
        %3314 = vmatpush.bf16.msra.mxu0 %v2936
        %3315 = vmatmul.bf16.gmra.mxu0 %v2472
        %v3316 = vpop.f32.mrf.mxu0
        %v3317 = vadd.f32 %v3304, %v3316
        %v3318 = vpop.f32.mrf.mxu0
        %3319 = vdwg.mxu0
        %3320 = vmatpush.bf16.msra.mxu0 %v2996
        %3321 = vmatpush.bf16.msra.mxu0 %v2992
        %3322 = vmatpush.bf16.msra.mxu0 %v2988
        %3323 = vmatpush.bf16.msra.mxu0 %v2984
        %3324 = vmatpush.bf16.msra.mxu0 %v2980
        %3325 = vmatpush.bf16.msra.mxu0 %v2976
        %3326 = vmatpush.bf16.msra.mxu0 %v2972
        %3327 = vmatpush.bf16.msra.mxu0 %v2968
        %3328 = vmatmul.bf16.gmra.mxu0 %v2473
        %v3329 = vpop.f32.mrf.mxu0
        %v3330 = vadd.f32 %v3317, %v3329
        %v3331 = vpop.f32.mrf.mxu0
        %3332 = vdwg.mxu0
        %vm3333 = vcmp.ge.f32.partialorder %v3174, 0.0
        %vm3334 = vcmp.ge.f32.partialorder %v3226, 0.0
        %vm3335 = vcmp.ge.f32.partialorder %v3278, 0.0
        %vm3336 = vcmp.ge.f32.partialorder %v3330, 0.0
        %v3337 = vmul.f32 %v3174, 0.2
        %v3338 = vmul.f32 %v3226, 0.2
        %v3339 = vmul.f32 %v3278, 0.2
        %v3340 = vmul.f32 %v3330, 0.2
        %v3341 = vsel %vm3333, %v3174, %v3337
        %v3342 = vsel %vm3334, %v3226, %v3338
        %v3343 = vsel %vm3335, %v3278, %v3339
        %v3344 = vsel %vm3336, %v3330, %v3340
        %v3345 = vmul.f32 %v3341, 1.4142135
        %v3346 = vmul.f32 %v3342, 1.4142135
        %v3347 = vmul.f32 %v3343, 1.4142135
        %v3348 = vmul.f32 %v3344, 1.4142135
        %s3349 = scalar_lea.vmem %s225, 3072 [#allocation5]
        %v3350 = vld [vmem:[%s3349] sm:$0xff]
        %v3351 = vld [vmem:[%s3349 + $0x8] sm:$0xff]
        %v3352 = vld [vmem:[%s3349 + $0x10] sm:$0xff]
        %v3353 = vld [vmem:[%s3349 + $0x18] sm:$0xff]
        %v3354 = vld [vmem:[%s3349 + $0x20] sm:$0xff]
        %v3355 = vld [vmem:[%s3349 + $0x28] sm:$0xff]
        %v3356 = vld [vmem:[%s3349 + $0x30] sm:$0xff]
        %v3357 = vld [vmem:[%s3349 + $0x38] sm:$0xff]
        %v3358 = vld [vmem:[%s3349 + $0x40] sm:$0xff]
        %v3359 = vld [vmem:[%s3349 + $0x48] sm:$0xff]
        %v3360 = vld [vmem:[%s3349 + $0x50] sm:$0xff]
        %v3361 = vld [vmem:[%s3349 + $0x58] sm:$0xff]
        %v3362 = vld [vmem:[%s3349 + $0x60] sm:$0xff]
        %v3363 = vld [vmem:[%s3349 + $0x68] sm:$0xff]
        %v3364 = vld [vmem:[%s3349 + $0x70] sm:$0xff]
        %v3365 = vld [vmem:[%s3349 + $0x78] sm:$0xff]
        %v3366 = vld [vmem:[%s3349 + $0x80] sm:$0xff]
        %v3367 = vld [vmem:[%s3349 + $0x88] sm:$0xff]
        %v3368 = vld [vmem:[%s3349 + $0x90] sm:$0xff]
        %v3369 = vld [vmem:[%s3349 + $0x98] sm:$0xff]
        %v3370 = vld [vmem:[%s3349 + $0xa0] sm:$0xff]
        %v3371 = vld [vmem:[%s3349 + $0xa8] sm:$0xff]
        %v3372 = vld [vmem:[%s3349 + $0xb0] sm:$0xff]
        %v3373 = vld [vmem:[%s3349 + $0xb8] sm:$0xff]
        %v3374 = vld [vmem:[%s3349 + $0xc0] sm:$0xff]
        %v3375 = vld [vmem:[%s3349 + $0xc8] sm:$0xff]
        %v3376 = vld [vmem:[%s3349 + $0xd0] sm:$0xff]
        %v3377 = vld [vmem:[%s3349 + $0xd8] sm:$0xff]
        %v3378 = vld [vmem:[%s3349 + $0xe0] sm:$0xff]
        %v3379 = vld [vmem:[%s3349 + $0xe8] sm:$0xff]
        %v3380 = vld [vmem:[%s3349 + $0xf0] sm:$0xff]
        %v3381 = vld [vmem:[%s3349 + $0xf8] sm:$0xff]
        %v3382 = vld [vmem:[%s3349 + $0x100] sm:$0xff]
        %v3383 = vld [vmem:[%s3349 + $0x108] sm:$0xff]
        %v3384 = vld [vmem:[%s3349 + $0x110] sm:$0xff]
        %v3385 = vld [vmem:[%s3349 + $0x118] sm:$0xff]
        %v3386 = vld [vmem:[%s3349 + $0x120] sm:$0xff]
        %v3387 = vld [vmem:[%s3349 + $0x128] sm:$0xff]
        %v3388 = vld [vmem:[%s3349 + $0x130] sm:$0xff]
        %v3389 = vld [vmem:[%s3349 + $0x138] sm:$0xff]
        %v3390 = vld [vmem:[%s3349 + $0x140] sm:$0xff]
        %v3391 = vld [vmem:[%s3349 + $0x148] sm:$0xff]
        %v3392 = vld [vmem:[%s3349 + $0x150] sm:$0xff]
        %v3393 = vld [vmem:[%s3349 + $0x158] sm:$0xff]
        %v3394 = vld [vmem:[%s3349 + $0x160] sm:$0xff]
        %v3395 = vld [vmem:[%s3349 + $0x168] sm:$0xff]
        %v3396 = vld [vmem:[%s3349 + $0x170] sm:$0xff]
        %v3397 = vld [vmem:[%s3349 + $0x178] sm:$0xff]
        %v3398 = vld [vmem:[%s3349 + $0x180] sm:$0xff]
        %v3399 = vld [vmem:[%s3349 + $0x188] sm:$0xff]
        %v3400 = vld [vmem:[%s3349 + $0x190] sm:$0xff]
        %v3401 = vld [vmem:[%s3349 + $0x198] sm:$0xff]
        %v3402 = vld [vmem:[%s3349 + $0x1a0] sm:$0xff]
        %v3403 = vld [vmem:[%s3349 + $0x1a8] sm:$0xff]
        %v3404 = vld [vmem:[%s3349 + $0x1b0] sm:$0xff]
        %v3405 = vld [vmem:[%s3349 + $0x1b8] sm:$0xff]
        %v3406 = vld [vmem:[%s3349 + $0x1c0] sm:$0xff]
        %v3407 = vld [vmem:[%s3349 + $0x1c8] sm:$0xff]
        %v3408 = vld [vmem:[%s3349 + $0x1d0] sm:$0xff]
        %v3409 = vld [vmem:[%s3349 + $0x1d8] sm:$0xff]
        %v3410 = vld [vmem:[%s3349 + $0x1e0] sm:$0xff]
        %v3411 = vld [vmem:[%s3349 + $0x1e8] sm:$0xff]
        %v3412 = vld [vmem:[%s3349 + $0x1f0] sm:$0xff]
        %v3413 = vld [vmem:[%s3349 + $0x1f8] sm:$0xff]
        %v3414 = vld [vmem:[%s3349 + $0x200] sm:$0xff]
        %v3415 = vld [vmem:[%s3349 + $0x208] sm:$0xff]
        %v3416 = vld [vmem:[%s3349 + $0x210] sm:$0xff]
        %v3417 = vld [vmem:[%s3349 + $0x218] sm:$0xff]
        %v3418 = vld [vmem:[%s3349 + $0x220] sm:$0xff]
        %v3419 = vld [vmem:[%s3349 + $0x228] sm:$0xff]
        %v3420 = vld [vmem:[%s3349 + $0x230] sm:$0xff]
        %v3421 = vld [vmem:[%s3349 + $0x238] sm:$0xff]
        %v3422 = vld [vmem:[%s3349 + $0x240] sm:$0xff]
        %v3423 = vld [vmem:[%s3349 + $0x248] sm:$0xff]
        %v3424 = vld [vmem:[%s3349 + $0x250] sm:$0xff]
        %v3425 = vld [vmem:[%s3349 + $0x258] sm:$0xff]
        %v3426 = vld [vmem:[%s3349 + $0x260] sm:$0xff]
        %v3427 = vld [vmem:[%s3349 + $0x268] sm:$0xff]
        %v3428 = vld [vmem:[%s3349 + $0x270] sm:$0xff]
        %v3429 = vld [vmem:[%s3349 + $0x278] sm:$0xff]
        %v3430 = vld [vmem:[%s3349 + $0x280] sm:$0xff]
        %v3431 = vld [vmem:[%s3349 + $0x288] sm:$0xff]
        %v3432 = vld [vmem:[%s3349 + $0x290] sm:$0xff]
        %v3433 = vld [vmem:[%s3349 + $0x298] sm:$0xff]
        %v3434 = vld [vmem:[%s3349 + $0x2a0] sm:$0xff]
        %v3435 = vld [vmem:[%s3349 + $0x2a8] sm:$0xff]
        %v3436 = vld [vmem:[%s3349 + $0x2b0] sm:$0xff]
        %v3437 = vld [vmem:[%s3349 + $0x2b8] sm:$0xff]
        %v3438 = vld [vmem:[%s3349 + $0x2c0] sm:$0xff]
        %v3439 = vld [vmem:[%s3349 + $0x2c8] sm:$0xff]
        %v3440 = vld [vmem:[%s3349 + $0x2d0] sm:$0xff]
        %v3441 = vld [vmem:[%s3349 + $0x2d8] sm:$0xff]
        %v3442 = vld [vmem:[%s3349 + $0x2e0] sm:$0xff]
        %v3443 = vld [vmem:[%s3349 + $0x2e8] sm:$0xff]
        %v3444 = vld [vmem:[%s3349 + $0x2f0] sm:$0xff]
        %v3445 = vld [vmem:[%s3349 + $0x2f8] sm:$0xff]
        %v3446 = vld [vmem:[%s3349 + $0x300] sm:$0xff]
        %v3447 = vld [vmem:[%s3349 + $0x308] sm:$0xff]
        %v3448 = vld [vmem:[%s3349 + $0x310] sm:$0xff]
        %v3449 = vld [vmem:[%s3349 + $0x318] sm:$0xff]
        %v3450 = vld [vmem:[%s3349 + $0x320] sm:$0xff]
        %v3451 = vld [vmem:[%s3349 + $0x328] sm:$0xff]
        %v3452 = vld [vmem:[%s3349 + $0x330] sm:$0xff]
        %v3453 = vld [vmem:[%s3349 + $0x338] sm:$0xff]
        %v3454 = vld [vmem:[%s3349 + $0x340] sm:$0xff]
        %v3455 = vld [vmem:[%s3349 + $0x348] sm:$0xff]
        %v3456 = vld [vmem:[%s3349 + $0x350] sm:$0xff]
        %v3457 = vld [vmem:[%s3349 + $0x358] sm:$0xff]
        %v3458 = vld [vmem:[%s3349 + $0x360] sm:$0xff]
        %v3459 = vld [vmem:[%s3349 + $0x368] sm:$0xff]
        %v3460 = vld [vmem:[%s3349 + $0x370] sm:$0xff]
        %v3461 = vld [vmem:[%s3349 + $0x378] sm:$0xff]
        %v3462 = vld [vmem:[%s3349 + $0x380] sm:$0xff]
        %v3463 = vld [vmem:[%s3349 + $0x388] sm:$0xff]
        %v3464 = vld [vmem:[%s3349 + $0x390] sm:$0xff]
        %v3465 = vld [vmem:[%s3349 + $0x398] sm:$0xff]
        %v3466 = vld [vmem:[%s3349 + $0x3a0] sm:$0xff]
        %v3467 = vld [vmem:[%s3349 + $0x3a8] sm:$0xff]
        %v3468 = vld [vmem:[%s3349 + $0x3b0] sm:$0xff]
        %v3469 = vld [vmem:[%s3349 + $0x3b8] sm:$0xff]
        %v3470 = vld [vmem:[%s3349 + $0x3c0] sm:$0xff]
        %v3471 = vld [vmem:[%s3349 + $0x3c8] sm:$0xff]
        %v3472 = vld [vmem:[%s3349 + $0x3d0] sm:$0xff]
        %v3473 = vld [vmem:[%s3349 + $0x3d8] sm:$0xff]
        %v3474 = vld [vmem:[%s3349 + $0x3e0] sm:$0xff]
        %v3475 = vld [vmem:[%s3349 + $0x3e8] sm:$0xff]
        %v3476 = vld [vmem:[%s3349 + $0x3f0] sm:$0xff]
        %v3477 = vld [vmem:[%s3349 + $0x3f8] sm:$0xff]
        %v3478 = vpack.c.bf16 %v3345, %v3345
        %v3479 = vpack.c.bf16 %v3346, %v3346
        %v3480 = vpack.c.bf16 %v3347, %v3347
        %v3481 = vpack.c.bf16 %v3348, %v3348
        %s3482 = scalar_lea.vmem %s235, 12 [#allocation7]
        %v3483 = vld [vmem:[%s3482] sm:$0xf]
        %v3485 = vperm.slane %v3483, 0
        %v3486 = vperm.slane %v3483, 1
        %v3487 = vperm.slane %v3483, 2
        %v3488 = vperm.slane %v3483, 3
        %v3621 = vunpack.c.l.b16 %v3350
        %v3622 = vunpack.c.h.b16 %v3350
        %v3623 = vunpack.c.l.b16 %v3351
        %v3624 = vunpack.c.h.b16 %v3351
        %v3625 = vunpack.c.l.b16 %v3352
        %v3626 = vunpack.c.h.b16 %v3352
        %v3627 = vunpack.c.l.b16 %v3353
        %v3628 = vunpack.c.h.b16 %v3353
        %v3629 = vunpack.c.l.b16 %v3354
        %v3630 = vunpack.c.h.b16 %v3354
        %v3631 = vunpack.c.l.b16 %v3355
        %v3632 = vunpack.c.h.b16 %v3355
        %v3633 = vunpack.c.l.b16 %v3356
        %v3634 = vunpack.c.h.b16 %v3356
        %v3635 = vunpack.c.l.b16 %v3357
        %v3636 = vunpack.c.h.b16 %v3357
        %v3637 = vunpack.c.l.b16 %v3358
        %v3638 = vunpack.c.h.b16 %v3358
        %v3639 = vunpack.c.l.b16 %v3359
        %v3640 = vunpack.c.h.b16 %v3359
        %v3641 = vunpack.c.l.b16 %v3360
        %v3642 = vunpack.c.h.b16 %v3360
        %v3643 = vunpack.c.l.b16 %v3361
        %v3644 = vunpack.c.h.b16 %v3361
        %v3645 = vunpack.c.l.b16 %v3362
        %v3646 = vunpack.c.h.b16 %v3362
        %v3647 = vunpack.c.l.b16 %v3363
        %v3648 = vunpack.c.h.b16 %v3363
        %v3649 = vunpack.c.l.b16 %v3364
        %v3650 = vunpack.c.h.b16 %v3364
        %v3651 = vunpack.c.l.b16 %v3365
        %v3652 = vunpack.c.h.b16 %v3365
        %v3653 = vunpack.c.l.b16 %v3366
        %v3654 = vunpack.c.h.b16 %v3366
        %v3655 = vunpack.c.l.b16 %v3367
        %v3656 = vunpack.c.h.b16 %v3367
        %v3657 = vunpack.c.l.b16 %v3368
        %v3658 = vunpack.c.h.b16 %v3368
        %v3659 = vunpack.c.l.b16 %v3369
        %v3660 = vunpack.c.h.b16 %v3369
        %v3661 = vunpack.c.l.b16 %v3370
        %v3662 = vunpack.c.h.b16 %v3370
        %v3663 = vunpack.c.l.b16 %v3371
        %v3664 = vunpack.c.h.b16 %v3371
        %v3665 = vunpack.c.l.b16 %v3372
        %v3666 = vunpack.c.h.b16 %v3372
        %v3667 = vunpack.c.l.b16 %v3373
        %v3668 = vunpack.c.h.b16 %v3373
        %v3669 = vunpack.c.l.b16 %v3374
        %v3670 = vunpack.c.h.b16 %v3374
        %v3671 = vunpack.c.l.b16 %v3375
        %v3672 = vunpack.c.h.b16 %v3375
        %v3673 = vunpack.c.l.b16 %v3376
        %v3674 = vunpack.c.h.b16 %v3376
        %v3675 = vunpack.c.l.b16 %v3377
        %v3676 = vunpack.c.h.b16 %v3377
        %v3677 = vunpack.c.l.b16 %v3378
        %v3678 = vunpack.c.h.b16 %v3378
        %v3679 = vunpack.c.l.b16 %v3379
        %v3680 = vunpack.c.h.b16 %v3379
        %v3681 = vunpack.c.l.b16 %v3380
        %v3682 = vunpack.c.h.b16 %v3380
        %v3683 = vunpack.c.l.b16 %v3381
        %v3684 = vunpack.c.h.b16 %v3381
        %v3685 = vunpack.c.l.b16 %v3382
        %v3686 = vunpack.c.h.b16 %v3382
        %v3687 = vunpack.c.l.b16 %v3383
        %v3688 = vunpack.c.h.b16 %v3383
        %v3689 = vunpack.c.l.b16 %v3384
        %v3690 = vunpack.c.h.b16 %v3384
        %v3691 = vunpack.c.l.b16 %v3385
        %v3692 = vunpack.c.h.b16 %v3385
        %v3693 = vunpack.c.l.b16 %v3386
        %v3694 = vunpack.c.h.b16 %v3386
        %v3695 = vunpack.c.l.b16 %v3387
        %v3696 = vunpack.c.h.b16 %v3387
        %v3697 = vunpack.c.l.b16 %v3388
        %v3698 = vunpack.c.h.b16 %v3388
        %v3699 = vunpack.c.l.b16 %v3389
        %v3700 = vunpack.c.h.b16 %v3389
        %v3701 = vunpack.c.l.b16 %v3390
        %v3702 = vunpack.c.h.b16 %v3390
        %v3703 = vunpack.c.l.b16 %v3391
        %v3704 = vunpack.c.h.b16 %v3391
        %v3705 = vunpack.c.l.b16 %v3392
        %v3706 = vunpack.c.h.b16 %v3392
        %v3707 = vunpack.c.l.b16 %v3393
        %v3708 = vunpack.c.h.b16 %v3393
        %v3709 = vunpack.c.l.b16 %v3394
        %v3710 = vunpack.c.h.b16 %v3394
        %v3711 = vunpack.c.l.b16 %v3395
        %v3712 = vunpack.c.h.b16 %v3395
        %v3713 = vunpack.c.l.b16 %v3396
        %v3714 = vunpack.c.h.b16 %v3396
        %v3715 = vunpack.c.l.b16 %v3397
        %v3716 = vunpack.c.h.b16 %v3397
        %v3717 = vunpack.c.l.b16 %v3398
        %v3718 = vunpack.c.h.b16 %v3398
        %v3719 = vunpack.c.l.b16 %v3399
        %v3720 = vunpack.c.h.b16 %v3399
        %v3721 = vunpack.c.l.b16 %v3400
        %v3722 = vunpack.c.h.b16 %v3400
        %v3723 = vunpack.c.l.b16 %v3401
        %v3724 = vunpack.c.h.b16 %v3401
        %v3725 = vunpack.c.l.b16 %v3402
        %v3726 = vunpack.c.h.b16 %v3402
        %v3727 = vunpack.c.l.b16 %v3403
        %v3728 = vunpack.c.h.b16 %v3403
        %v3729 = vunpack.c.l.b16 %v3404
        %v3730 = vunpack.c.h.b16 %v3404
        %v3731 = vunpack.c.l.b16 %v3405
        %v3732 = vunpack.c.h.b16 %v3405
        %v3733 = vunpack.c.l.b16 %v3406
        %v3734 = vunpack.c.h.b16 %v3406
        %v3735 = vunpack.c.l.b16 %v3407
        %v3736 = vunpack.c.h.b16 %v3407
        %v3737 = vunpack.c.l.b16 %v3408
        %v3738 = vunpack.c.h.b16 %v3408
        %v3739 = vunpack.c.l.b16 %v3409
        %v3740 = vunpack.c.h.b16 %v3409
        %v3741 = vunpack.c.l.b16 %v3410
        %v3742 = vunpack.c.h.b16 %v3410
        %v3743 = vunpack.c.l.b16 %v3411
        %v3744 = vunpack.c.h.b16 %v3411
        %v3745 = vunpack.c.l.b16 %v3412
        %v3746 = vunpack.c.h.b16 %v3412
        %v3747 = vunpack.c.l.b16 %v3413
        %v3748 = vunpack.c.h.b16 %v3413
        %v3749 = vunpack.c.l.b16 %v3414
        %v3750 = vunpack.c.h.b16 %v3414
        %v3751 = vunpack.c.l.b16 %v3415
        %v3752 = vunpack.c.h.b16 %v3415
        %v3753 = vunpack.c.l.b16 %v3416
        %v3754 = vunpack.c.h.b16 %v3416
        %v3755 = vunpack.c.l.b16 %v3417
        %v3756 = vunpack.c.h.b16 %v3417
        %v3757 = vunpack.c.l.b16 %v3418
        %v3758 = vunpack.c.h.b16 %v3418
        %v3759 = vunpack.c.l.b16 %v3419
        %v3760 = vunpack.c.h.b16 %v3419
        %v3761 = vunpack.c.l.b16 %v3420
        %v3762 = vunpack.c.h.b16 %v3420
        %v3763 = vunpack.c.l.b16 %v3421
        %v3764 = vunpack.c.h.b16 %v3421
        %v3765 = vunpack.c.l.b16 %v3422
        %v3766 = vunpack.c.h.b16 %v3422
        %v3767 = vunpack.c.l.b16 %v3423
        %v3768 = vunpack.c.h.b16 %v3423
        %v3769 = vunpack.c.l.b16 %v3424
        %v3770 = vunpack.c.h.b16 %v3424
        %v3771 = vunpack.c.l.b16 %v3425
        %v3772 = vunpack.c.h.b16 %v3425
        %v3773 = vunpack.c.l.b16 %v3426
        %v3774 = vunpack.c.h.b16 %v3426
        %v3775 = vunpack.c.l.b16 %v3427
        %v3776 = vunpack.c.h.b16 %v3427
        %v3777 = vunpack.c.l.b16 %v3428
        %v3778 = vunpack.c.h.b16 %v3428
        %v3779 = vunpack.c.l.b16 %v3429
        %v3780 = vunpack.c.h.b16 %v3429
        %v3781 = vunpack.c.l.b16 %v3430
        %v3782 = vunpack.c.h.b16 %v3430
        %v3783 = vunpack.c.l.b16 %v3431
        %v3784 = vunpack.c.h.b16 %v3431
        %v3785 = vunpack.c.l.b16 %v3432
        %v3786 = vunpack.c.h.b16 %v3432
        %v3787 = vunpack.c.l.b16 %v3433
        %v3788 = vunpack.c.h.b16 %v3433
        %v3789 = vunpack.c.l.b16 %v3434
        %v3790 = vunpack.c.h.b16 %v3434
        %v3791 = vunpack.c.l.b16 %v3435
        %v3792 = vunpack.c.h.b16 %v3435
        %v3793 = vunpack.c.l.b16 %v3436
        %v3794 = vunpack.c.h.b16 %v3436
        %v3795 = vunpack.c.l.b16 %v3437
        %v3796 = vunpack.c.h.b16 %v3437
        %v3797 = vunpack.c.l.b16 %v3438
        %v3798 = vunpack.c.h.b16 %v3438
        %v3799 = vunpack.c.l.b16 %v3439
        %v3800 = vunpack.c.h.b16 %v3439
        %v3801 = vunpack.c.l.b16 %v3440
        %v3802 = vunpack.c.h.b16 %v3440
        %v3803 = vunpack.c.l.b16 %v3441
        %v3804 = vunpack.c.h.b16 %v3441
        %v3805 = vunpack.c.l.b16 %v3442
        %v3806 = vunpack.c.h.b16 %v3442
        %v3807 = vunpack.c.l.b16 %v3443
        %v3808 = vunpack.c.h.b16 %v3443
        %v3809 = vunpack.c.l.b16 %v3444
        %v3810 = vunpack.c.h.b16 %v3444
        %v3811 = vunpack.c.l.b16 %v3445
        %v3812 = vunpack.c.h.b16 %v3445
        %v3813 = vunpack.c.l.b16 %v3446
        %v3814 = vunpack.c.h.b16 %v3446
        %v3815 = vunpack.c.l.b16 %v3447
        %v3816 = vunpack.c.h.b16 %v3447
        %v3817 = vunpack.c.l.b16 %v3448
        %v3818 = vunpack.c.h.b16 %v3448
        %v3819 = vunpack.c.l.b16 %v3449
        %v3820 = vunpack.c.h.b16 %v3449
        %v3821 = vunpack.c.l.b16 %v3450
        %v3822 = vunpack.c.h.b16 %v3450
        %v3823 = vunpack.c.l.b16 %v3451
        %v3824 = vunpack.c.h.b16 %v3451
        %v3825 = vunpack.c.l.b16 %v3452
        %v3826 = vunpack.c.h.b16 %v3452
        %v3827 = vunpack.c.l.b16 %v3453
        %v3828 = vunpack.c.h.b16 %v3453
        %v3829 = vunpack.c.l.b16 %v3454
        %v3830 = vunpack.c.h.b16 %v3454
        %v3831 = vunpack.c.l.b16 %v3455
        %v3832 = vunpack.c.h.b16 %v3455
        %v3833 = vunpack.c.l.b16 %v3456
        %v3834 = vunpack.c.h.b16 %v3456
        %v3835 = vunpack.c.l.b16 %v3457
        %v3836 = vunpack.c.h.b16 %v3457
        %v3837 = vunpack.c.l.b16 %v3458
        %v3838 = vunpack.c.h.b16 %v3458
        %v3839 = vunpack.c.l.b16 %v3459
        %v3840 = vunpack.c.h.b16 %v3459
        %v3841 = vunpack.c.l.b16 %v3460
        %v3842 = vunpack.c.h.b16 %v3460
        %v3843 = vunpack.c.l.b16 %v3461
        %v3844 = vunpack.c.h.b16 %v3461
        %v3845 = vunpack.c.l.b16 %v3462
        %v3846 = vunpack.c.h.b16 %v3462
        %v3847 = vunpack.c.l.b16 %v3463
        %v3848 = vunpack.c.h.b16 %v3463
        %v3849 = vunpack.c.l.b16 %v3464
        %v3850 = vunpack.c.h.b16 %v3464
        %v3851 = vunpack.c.l.b16 %v3465
        %v3852 = vunpack.c.h.b16 %v3465
        %v3853 = vunpack.c.l.b16 %v3466
        %v3854 = vunpack.c.h.b16 %v3466
        %v3855 = vunpack.c.l.b16 %v3467
        %v3856 = vunpack.c.h.b16 %v3467
        %v3857 = vunpack.c.l.b16 %v3468
        %v3858 = vunpack.c.h.b16 %v3468
        %v3859 = vunpack.c.l.b16 %v3469
        %v3860 = vunpack.c.h.b16 %v3469
        %v3861 = vunpack.c.l.b16 %v3470
        %v3862 = vunpack.c.h.b16 %v3470
        %v3863 = vunpack.c.l.b16 %v3471
        %v3864 = vunpack.c.h.b16 %v3471
        %v3865 = vunpack.c.l.b16 %v3472
        %v3866 = vunpack.c.h.b16 %v3472
        %v3867 = vunpack.c.l.b16 %v3473
        %v3868 = vunpack.c.h.b16 %v3473
        %v3869 = vunpack.c.l.b16 %v3474
        %v3870 = vunpack.c.h.b16 %v3474
        %v3871 = vunpack.c.l.b16 %v3475
        %v3872 = vunpack.c.h.b16 %v3475
        %v3873 = vunpack.c.l.b16 %v3476
        %v3874 = vunpack.c.h.b16 %v3476
        %v3875 = vunpack.c.l.b16 %v3477
        %v3876 = vunpack.c.h.b16 %v3477
        %v3877 = vpack.c.b16 %v3625, %v3621
        %v3878 = vpack.c.b16 %v3626, %v3622
        %v3879 = vpack.c.b16 %v3627, %v3623
        %v3880 = vpack.c.b16 %v3628, %v3624
        %v3881 = vpack.c.b16 %v3633, %v3629
        %v3882 = vpack.c.b16 %v3634, %v3630
        %v3883 = vpack.c.b16 %v3635, %v3631
        %v3884 = vpack.c.b16 %v3636, %v3632
        %v3885 = vpack.c.b16 %v3641, %v3637
        %v3886 = vpack.c.b16 %v3642, %v3638
        %v3887 = vpack.c.b16 %v3643, %v3639
        %v3888 = vpack.c.b16 %v3644, %v3640
        %v3889 = vpack.c.b16 %v3649, %v3645
        %v3890 = vpack.c.b16 %v3650, %v3646
        %v3891 = vpack.c.b16 %v3651, %v3647
        %v3892 = vpack.c.b16 %v3652, %v3648
        %v3893 = vpack.c.b16 %v3657, %v3653
        %v3894 = vpack.c.b16 %v3658, %v3654
        %v3895 = vpack.c.b16 %v3659, %v3655
        %v3896 = vpack.c.b16 %v3660, %v3656
        %v3897 = vpack.c.b16 %v3665, %v3661
        %v3898 = vpack.c.b16 %v3666, %v3662
        %v3899 = vpack.c.b16 %v3667, %v3663
        %v3900 = vpack.c.b16 %v3668, %v3664
        %v3901 = vpack.c.b16 %v3673, %v3669
        %v3902 = vpack.c.b16 %v3674, %v3670
        %v3903 = vpack.c.b16 %v3675, %v3671
        %v3904 = vpack.c.b16 %v3676, %v3672
        %v3905 = vpack.c.b16 %v3681, %v3677
        %v3906 = vpack.c.b16 %v3682, %v3678
        %v3907 = vpack.c.b16 %v3683, %v3679
        %v3908 = vpack.c.b16 %v3684, %v3680
        %v3909 = vpack.c.b16 %v3689, %v3685
        %v3910 = vpack.c.b16 %v3690, %v3686
        %v3911 = vpack.c.b16 %v3691, %v3687
        %v3912 = vpack.c.b16 %v3692, %v3688
        %v3913 = vpack.c.b16 %v3697, %v3693
        %v3914 = vpack.c.b16 %v3698, %v3694
        %v3915 = vpack.c.b16 %v3699, %v3695
        %v3916 = vpack.c.b16 %v3700, %v3696
        %v3917 = vpack.c.b16 %v3705, %v3701
        %v3918 = vpack.c.b16 %v3706, %v3702
        %v3919 = vpack.c.b16 %v3707, %v3703
        %v3920 = vpack.c.b16 %v3708, %v3704
        %v3921 = vpack.c.b16 %v3713, %v3709
        %v3922 = vpack.c.b16 %v3714, %v3710
        %v3923 = vpack.c.b16 %v3715, %v3711
        %v3924 = vpack.c.b16 %v3716, %v3712
        %v3925 = vpack.c.b16 %v3721, %v3717
        %v3926 = vpack.c.b16 %v3722, %v3718
        %v3927 = vpack.c.b16 %v3723, %v3719
        %v3928 = vpack.c.b16 %v3724, %v3720
        %v3929 = vpack.c.b16 %v3729, %v3725
        %v3930 = vpack.c.b16 %v3730, %v3726
        %v3931 = vpack.c.b16 %v3731, %v3727
        %v3932 = vpack.c.b16 %v3732, %v3728
        %v3933 = vpack.c.b16 %v3737, %v3733
        %v3934 = vpack.c.b16 %v3738, %v3734
        %v3935 = vpack.c.b16 %v3739, %v3735
        %v3936 = vpack.c.b16 %v3740, %v3736
        %v3937 = vpack.c.b16 %v3745, %v3741
        %v3938 = vpack.c.b16 %v3746, %v3742
        %v3939 = vpack.c.b16 %v3747, %v3743
        %v3940 = vpack.c.b16 %v3748, %v3744
        %v3941 = vpack.c.b16 %v3753, %v3749
        %v3942 = vpack.c.b16 %v3754, %v3750
        %v3943 = vpack.c.b16 %v3755, %v3751
        %v3944 = vpack.c.b16 %v3756, %v3752
        %v3945 = vpack.c.b16 %v3761, %v3757
        %v3946 = vpack.c.b16 %v3762, %v3758
        %v3947 = vpack.c.b16 %v3763, %v3759
        %v3948 = vpack.c.b16 %v3764, %v3760
        %v3949 = vpack.c.b16 %v3769, %v3765
        %v3950 = vpack.c.b16 %v3770, %v3766
        %v3951 = vpack.c.b16 %v3771, %v3767
        %v3952 = vpack.c.b16 %v3772, %v3768
        %v3953 = vpack.c.b16 %v3777, %v3773
        %v3954 = vpack.c.b16 %v3778, %v3774
        %v3955 = vpack.c.b16 %v3779, %v3775
        %v3956 = vpack.c.b16 %v3780, %v3776
        %v3957 = vpack.c.b16 %v3785, %v3781
        %v3958 = vpack.c.b16 %v3786, %v3782
        %v3959 = vpack.c.b16 %v3787, %v3783
        %v3960 = vpack.c.b16 %v3788, %v3784
        %v3961 = vpack.c.b16 %v3793, %v3789
        %v3962 = vpack.c.b16 %v3794, %v3790
        %v3963 = vpack.c.b16 %v3795, %v3791
        %v3964 = vpack.c.b16 %v3796, %v3792
        %v3965 = vpack.c.b16 %v3801, %v3797
        %v3966 = vpack.c.b16 %v3802, %v3798
        %v3967 = vpack.c.b16 %v3803, %v3799
        %v3968 = vpack.c.b16 %v3804, %v3800
        %v3969 = vpack.c.b16 %v3809, %v3805
        %v3970 = vpack.c.b16 %v3810, %v3806
        %v3971 = vpack.c.b16 %v3811, %v3807
        %v3972 = vpack.c.b16 %v3812, %v3808
        %v3973 = vpack.c.b16 %v3817, %v3813
        %v3974 = vpack.c.b16 %v3818, %v3814
        %v3975 = vpack.c.b16 %v3819, %v3815
        %v3976 = vpack.c.b16 %v3820, %v3816
        %v3977 = vpack.c.b16 %v3825, %v3821
        %v3978 = vpack.c.b16 %v3826, %v3822
        %v3979 = vpack.c.b16 %v3827, %v3823
        %v3980 = vpack.c.b16 %v3828, %v3824
        %v3981 = vpack.c.b16 %v3833, %v3829
        %v3982 = vpack.c.b16 %v3834, %v3830
        %v3983 = vpack.c.b16 %v3835, %v3831
        %v3984 = vpack.c.b16 %v3836, %v3832
        %v3985 = vpack.c.b16 %v3841, %v3837
        %v3986 = vpack.c.b16 %v3842, %v3838
        %v3987 = vpack.c.b16 %v3843, %v3839
        %v3988 = vpack.c.b16 %v3844, %v3840
        %v3989 = vpack.c.b16 %v3849, %v3845
        %v3990 = vpack.c.b16 %v3850, %v3846
        %v3991 = vpack.c.b16 %v3851, %v3847
        %v3992 = vpack.c.b16 %v3852, %v3848
        %v3993 = vpack.c.b16 %v3857, %v3853
        %v3994 = vpack.c.b16 %v3858, %v3854
        %v3995 = vpack.c.b16 %v3859, %v3855
        %v3996 = vpack.c.b16 %v3860, %v3856
        %v3997 = vpack.c.b16 %v3865, %v3861
        %v3998 = vpack.c.b16 %v3866, %v3862
        %v3999 = vpack.c.b16 %v3867, %v3863
        %v4000 = vpack.c.b16 %v3868, %v3864
        %v4001 = vpack.c.b16 %v3873, %v3869
        %v4002 = vpack.c.b16 %v3874, %v3870
        %v4003 = vpack.c.b16 %v3875, %v3871
        %v4004 = vpack.c.b16 %v3876, %v3872
        %4133 = vmatpush.bf16.msra.mxu0 %v3905
        %4134 = vmatpush.bf16.msra.mxu0 %v3901
        %4135 = vmatpush.bf16.msra.mxu0 %v3897
        %4136 = vmatpush.bf16.msra.mxu0 %v3893
        %4137 = vmatpush.bf16.msra.mxu0 %v3889
        %4138 = vmatpush.bf16.msra.mxu0 %v3885
        %4139 = vmatpush.bf16.msra.mxu0 %v3881
        %4140 = vmatpush.bf16.msra.mxu0 %v3877
        %4141 = vmatmul.bf16.gmra.mxu0 %v3478
        %v4142 = vpop.f32.mrf.mxu0
        %v4143 = vadd.f32 %v3485, %v4142
        %v4144 = vpop.f32.mrf.mxu0
        %4145 = vdwg.mxu0
        %4146 = vmatpush.bf16.msra.mxu0 %v3937
        %4147 = vmatpush.bf16.msra.mxu0 %v3933
        %4148 = vmatpush.bf16.msra.mxu0 %v3929
        %4149 = vmatpush.bf16.msra.mxu0 %v3925
        %4150 = vmatpush.bf16.msra.mxu0 %v3921
        %4151 = vmatpush.bf16.msra.mxu0 %v3917
        %4152 = vmatpush.bf16.msra.mxu0 %v3913
        %4153 = vmatpush.bf16.msra.mxu0 %v3909
        %4154 = vmatmul.bf16.gmra.mxu0 %v3479
        %v4155 = vpop.f32.mrf.mxu0
        %v4156 = vadd.f32 %v4143, %v4155
        %v4157 = vpop.f32.mrf.mxu0
        %4158 = vdwg.mxu0
        %4159 = vmatpush.bf16.msra.mxu0 %v3969
        %4160 = vmatpush.bf16.msra.mxu0 %v3965
        %4161 = vmatpush.bf16.msra.mxu0 %v3961
        %4162 = vmatpush.bf16.msra.mxu0 %v3957
        %4163 = vmatpush.bf16.msra.mxu0 %v3953
        %4164 = vmatpush.bf16.msra.mxu0 %v3949
        %4165 = vmatpush.bf16.msra.mxu0 %v3945
        %4166 = vmatpush.bf16.msra.mxu0 %v3941
        %4167 = vmatmul.bf16.gmra.mxu0 %v3480
        %v4168 = vpop.f32.mrf.mxu0
        %v4169 = vadd.f32 %v4156, %v4168
        %v4170 = vpop.f32.mrf.mxu0
        %4171 = vdwg.mxu0
        %4172 = vmatpush.bf16.msra.mxu0 %v4001
        %4173 = vmatpush.bf16.msra.mxu0 %v3997
        %4174 = vmatpush.bf16.msra.mxu0 %v3993
        %4175 = vmatpush.bf16.msra.mxu0 %v3989
        %4176 = vmatpush.bf16.msra.mxu0 %v3985
        %4177 = vmatpush.bf16.msra.mxu0 %v3981
        %4178 = vmatpush.bf16.msra.mxu0 %v3977
        %4179 = vmatpush.bf16.msra.mxu0 %v3973
        %4180 = vmatmul.bf16.gmra.mxu0 %v3481
        %v4181 = vpop.f32.mrf.mxu0
        %v4182 = vadd.f32 %v4169, %v4181
        %v4183 = vpop.f32.mrf.mxu0
        %4184 = vdwg.mxu0
        %4185 = vmatpush.bf16.msra.mxu0 %v3906
        %4186 = vmatpush.bf16.msra.mxu0 %v3902
        %4187 = vmatpush.bf16.msra.mxu0 %v3898
        %4188 = vmatpush.bf16.msra.mxu0 %v3894
        %4189 = vmatpush.bf16.msra.mxu0 %v3890
        %4190 = vmatpush.bf16.msra.mxu0 %v3886
        %4191 = vmatpush.bf16.msra.mxu0 %v3882
        %4192 = vmatpush.bf16.msra.mxu0 %v3878
        %4193 = vmatmul.bf16.gmra.mxu0 %v3478
        %v4194 = vpop.f32.mrf.mxu0
        %v4195 = vadd.f32 %v3486, %v4194
        %v4196 = vpop.f32.mrf.mxu0
        %4197 = vdwg.mxu0
        %4198 = vmatpush.bf16.msra.mxu0 %v3938
        %4199 = vmatpush.bf16.msra.mxu0 %v3934
        %4200 = vmatpush.bf16.msra.mxu0 %v3930
        %4201 = vmatpush.bf16.msra.mxu0 %v3926
        %4202 = vmatpush.bf16.msra.mxu0 %v3922
        %4203 = vmatpush.bf16.msra.mxu0 %v3918
        %4204 = vmatpush.bf16.msra.mxu0 %v3914
        %4205 = vmatpush.bf16.msra.mxu0 %v3910
        %4206 = vmatmul.bf16.gmra.mxu0 %v3479
        %v4207 = vpop.f32.mrf.mxu0
        %v4208 = vadd.f32 %v4195, %v4207
        %v4209 = vpop.f32.mrf.mxu0
        %4210 = vdwg.mxu0
        %4211 = vmatpush.bf16.msra.mxu0 %v3970
        %4212 = vmatpush.bf16.msra.mxu0 %v3966
        %4213 = vmatpush.bf16.msra.mxu0 %v3962
        %4214 = vmatpush.bf16.msra.mxu0 %v3958
        %4215 = vmatpush.bf16.msra.mxu0 %v3954
        %4216 = vmatpush.bf16.msra.mxu0 %v3950
        %4217 = vmatpush.bf16.msra.mxu0 %v3946
        %4218 = vmatpush.bf16.msra.mxu0 %v3942
        %4219 = vmatmul.bf16.gmra.mxu0 %v3480
        %v4220 = vpop.f32.mrf.mxu0
        %v4221 = vadd.f32 %v4208, %v4220
        %v4222 = vpop.f32.mrf.mxu0
        %4223 = vdwg.mxu0
        %4224 = vmatpush.bf16.msra.mxu0 %v4002
        %4225 = vmatpush.bf16.msra.mxu0 %v3998
        %4226 = vmatpush.bf16.msra.mxu0 %v3994
        %4227 = vmatpush.bf16.msra.mxu0 %v3990
        %4228 = vmatpush.bf16.msra.mxu0 %v3986
        %4229 = vmatpush.bf16.msra.mxu0 %v3982
        %4230 = vmatpush.bf16.msra.mxu0 %v3978
        %4231 = vmatpush.bf16.msra.mxu0 %v3974
        %4232 = vmatmul.bf16.gmra.mxu0 %v3481
        %v4233 = vpop.f32.mrf.mxu0
        %v4234 = vadd.f32 %v4221, %v4233
        %v4235 = vpop.f32.mrf.mxu0
        %4236 = vdwg.mxu0
        %4237 = vmatpush.bf16.msra.mxu0 %v3907
        %4238 = vmatpush.bf16.msra.mxu0 %v3903
        %4239 = vmatpush.bf16.msra.mxu0 %v3899
        %4240 = vmatpush.bf16.msra.mxu0 %v3895
        %4241 = vmatpush.bf16.msra.mxu0 %v3891
        %4242 = vmatpush.bf16.msra.mxu0 %v3887
        %4243 = vmatpush.bf16.msra.mxu0 %v3883
        %4244 = vmatpush.bf16.msra.mxu0 %v3879
        %4245 = vmatmul.bf16.gmra.mxu0 %v3478
        %v4246 = vpop.f32.mrf.mxu0
        %v4247 = vadd.f32 %v3487, %v4246
        %v4248 = vpop.f32.mrf.mxu0
        %4249 = vdwg.mxu0
        %4250 = vmatpush.bf16.msra.mxu0 %v3939
        %4251 = vmatpush.bf16.msra.mxu0 %v3935
        %4252 = vmatpush.bf16.msra.mxu0 %v3931
        %4253 = vmatpush.bf16.msra.mxu0 %v3927
        %4254 = vmatpush.bf16.msra.mxu0 %v3923
        %4255 = vmatpush.bf16.msra.mxu0 %v3919
        %4256 = vmatpush.bf16.msra.mxu0 %v3915
        %4257 = vmatpush.bf16.msra.mxu0 %v3911
        %4258 = vmatmul.bf16.gmra.mxu0 %v3479
        %v4259 = vpop.f32.mrf.mxu0
        %v4260 = vadd.f32 %v4247, %v4259
        %v4261 = vpop.f32.mrf.mxu0
        %4262 = vdwg.mxu0
        %4263 = vmatpush.bf16.msra.mxu0 %v3971
        %4264 = vmatpush.bf16.msra.mxu0 %v3967
        %4265 = vmatpush.bf16.msra.mxu0 %v3963
        %4266 = vmatpush.bf16.msra.mxu0 %v3959
        %4267 = vmatpush.bf16.msra.mxu0 %v3955
        %4268 = vmatpush.bf16.msra.mxu0 %v3951
        %4269 = vmatpush.bf16.msra.mxu0 %v3947
        %4270 = vmatpush.bf16.msra.mxu0 %v3943
        %4271 = vmatmul.bf16.gmra.mxu0 %v3480
        %v4272 = vpop.f32.mrf.mxu0
        %v4273 = vadd.f32 %v4260, %v4272
        %v4274 = vpop.f32.mrf.mxu0
        %4275 = vdwg.mxu0
        %4276 = vmatpush.bf16.msra.mxu0 %v4003
        %4277 = vmatpush.bf16.msra.mxu0 %v3999
        %4278 = vmatpush.bf16.msra.mxu0 %v3995
        %4279 = vmatpush.bf16.msra.mxu0 %v3991
        %4280 = vmatpush.bf16.msra.mxu0 %v3987
        %4281 = vmatpush.bf16.msra.mxu0 %v3983
        %4282 = vmatpush.bf16.msra.mxu0 %v3979
        %4283 = vmatpush.bf16.msra.mxu0 %v3975
        %4284 = vmatmul.bf16.gmra.mxu0 %v3481
        %v4285 = vpop.f32.mrf.mxu0
        %v4286 = vadd.f32 %v4273, %v4285
        %v4287 = vpop.f32.mrf.mxu0
        %4288 = vdwg.mxu0
        %4289 = vmatpush.bf16.msra.mxu0 %v3908
        %4290 = vmatpush.bf16.msra.mxu0 %v3904
        %4291 = vmatpush.bf16.msra.mxu0 %v3900
        %4292 = vmatpush.bf16.msra.mxu0 %v3896
        %4293 = vmatpush.bf16.msra.mxu0 %v3892
        %4294 = vmatpush.bf16.msra.mxu0 %v3888
        %4295 = vmatpush.bf16.msra.mxu0 %v3884
        %4296 = vmatpush.bf16.msra.mxu0 %v3880
        %4297 = vmatmul.bf16.gmra.mxu0 %v3478
        %v4298 = vpop.f32.mrf.mxu0
        %v4299 = vadd.f32 %v3488, %v4298
        %v4300 = vpop.f32.mrf.mxu0
        %4301 = vdwg.mxu0
        %4302 = vmatpush.bf16.msra.mxu0 %v3940
        %4303 = vmatpush.bf16.msra.mxu0 %v3936
        %4304 = vmatpush.bf16.msra.mxu0 %v3932
        %4305 = vmatpush.bf16.msra.mxu0 %v3928
        %4306 = vmatpush.bf16.msra.mxu0 %v3924
        %4307 = vmatpush.bf16.msra.mxu0 %v3920
        %4308 = vmatpush.bf16.msra.mxu0 %v3916
        %4309 = vmatpush.bf16.msra.mxu0 %v3912
        %4310 = vmatmul.bf16.gmra.mxu0 %v3479
        %v4311 = vpop.f32.mrf.mxu0
        %v4312 = vadd.f32 %v4299, %v4311
        %v4313 = vpop.f32.mrf.mxu0
        %4314 = vdwg.mxu0
        %4315 = vmatpush.bf16.msra.mxu0 %v3972
        %4316 = vmatpush.bf16.msra.mxu0 %v3968
        %4317 = vmatpush.bf16.msra.mxu0 %v3964
        %4318 = vmatpush.bf16.msra.mxu0 %v3960
        %4319 = vmatpush.bf16.msra.mxu0 %v3956
        %4320 = vmatpush.bf16.msra.mxu0 %v3952
        %4321 = vmatpush.bf16.msra.mxu0 %v3948
        %4322 = vmatpush.bf16.msra.mxu0 %v3944
        %4323 = vmatmul.bf16.gmra.mxu0 %v3480
        %v4324 = vpop.f32.mrf.mxu0
        %v4325 = vadd.f32 %v4312, %v4324
        %v4326 = vpop.f32.mrf.mxu0
        %4327 = vdwg.mxu0
        %4328 = vmatpush.bf16.msra.mxu0 %v4004
        %4329 = vmatpush.bf16.msra.mxu0 %v4000
        %4330 = vmatpush.bf16.msra.mxu0 %v3996
        %4331 = vmatpush.bf16.msra.mxu0 %v3992
        %4332 = vmatpush.bf16.msra.mxu0 %v3988
        %4333 = vmatpush.bf16.msra.mxu0 %v3984
        %4334 = vmatpush.bf16.msra.mxu0 %v3980
        %4335 = vmatpush.bf16.msra.mxu0 %v3976
        %4336 = vmatmul.bf16.gmra.mxu0 %v3481
        %v4337 = vpop.f32.mrf.mxu0
        %v4338 = vadd.f32 %v4325, %v4337
        %v4339 = vpop.f32.mrf.mxu0
        %4340 = vdwg.mxu0
        %vm4341 = vcmp.ge.f32.partialorder %v4182, 0.0
        %vm4342 = vcmp.ge.f32.partialorder %v4234, 0.0
        %vm4343 = vcmp.ge.f32.partialorder %v4286, 0.0
        %vm4344 = vcmp.ge.f32.partialorder %v4338, 0.0
        %v4345 = vmul.f32 %v4182, 0.2
        %v4346 = vmul.f32 %v4234, 0.2
        %v4347 = vmul.f32 %v4286, 0.2
        %v4348 = vmul.f32 %v4338, 0.2
        %v4349 = vsel %vm4341, %v4182, %v4345
        %v4350 = vsel %vm4342, %v4234, %v4346
        %v4351 = vsel %vm4343, %v4286, %v4347
        %v4352 = vsel %vm4344, %v4338, %v4348
        %v4353 = vmul.f32 %v4349, 1.4142135
        %v4354 = vmul.f32 %v4350, 1.4142135
        %v4355 = vmul.f32 %v4351, 1.4142135
        %v4356 = vmul.f32 %v4352, 1.4142135
        %v4361 = vrot.slane %v4354, 6
        %v4362 = vrot.slane %v4355, 4
        %v4363 = vrot.slane %v4356, 2
        %v4364 = vsel %vm281, %v4353, %v4361
        %vm4365 = vcmask 1045508
        %v4366 = vsel %vm4365, %v4362, %v4363
        %vm4367 = vcmask 1043456
        %v4368 = vsel %vm4367, %v4364, %v4366
        %4370 = vst [vmem:[%s268] sm:$0xff] %v4368
        %s4371 = sand.u32 %s109, 1
        %s4372 = scalar_lea.sflag [#allocation4], %s4371
        %s4373 = sand.u32 %s109, 1
        %s4374 = smul.addr %s4373, 8
        %s4375 = scalar_lea.vmem [#allocation8], %s4374
        // Predicated region
        $region45: #{tpu_custom_call.1} parent=31 // pred_check
          %p4376 = pneg %p119
        $region46: #{tpu_custom_call.1} parent=31 // pred_check_branch
          %4378 = sbr.rel (%p4376) target = $region48
        $region47: #{tpu_custom_call.1} parent=31 // pred_region
          %4380 = vsyncadd %s4372, 0
          %s4381 = smul.addr %s23, 4
          %s4382 = smul.addr %s4381, 2
          %s4383 = scalar_lea.hbm %s3, %s4382
          %s4385 = sshll.u32 %s4375, 4
          %s4386 = int_to_ptr.vmem [resolvable:$true] %s4385
          %s4387 = sshll.u32 %s4383, 4
          %s4388 = int_to_ptr.hbm [resolvable:$true] %s4387
          %4390 = dma.vmem_to_hbm [thread:$0]  %s4386, 128, %s4388, %s4372
        $region48: #{tpu_custom_call.1} parent=31 // pred_fallthru
          _
      $region32: #{tpu_custom_call.1} parent=5 // pred_fallthru
        _
      %p4391 = scmp.le.s32.totalorder 2, %s18
      // Predicated region
      $region49: #{tpu_custom_call.1} parent=5 // pred_check
        %p4392 = pneg %p4391
      $region50: #{tpu_custom_call.1} parent=5 // pred_check_branch
        %4394 = sbr.rel (%p4392) target = $region52
      $region51: #{tpu_custom_call.1} parent=5 // pred_region
        %s4395 = ssub.s32 %s18, 2
        // Predicated region
        $region53: #{tpu_custom_call.1} parent=51 // pred_check
          %p4396 = pneg %p125
        $region54: #{tpu_custom_call.1} parent=51 // pred_check_branch
          %4398 = sbr.rel (%p4396) target = $region56
        $region55: #{tpu_custom_call.1} parent=51 // pred_region
          %s4399 = sand.u32 %s110, 1
          %s4400 = scalar_lea.sflag [#allocation4], %s4399
          %s4401 = sand.u32 %s110, 1
          %s4402 = smul.addr %s4401, 8
          %s4403 = scalar_lea.vmem [#allocation8], %s4402
          %4405 = dma.done %s4400, 128
        $region56: #{tpu_custom_call.1} parent=51 // pred_fallthru
          _
      $region52: #{tpu_custom_call.1} parent=5 // pred_fallthru
        _
    $region6: #{tpu_custom_call.1} parent=1 // loop_footer
      %s22 = sadd.s32 1, %s18
    $region7: #{tpu_custom_call.1} parent=1 // loop_footer_branch
      %17 = sbr.rel target = $region3
    $region8: #{tpu_custom_call.1} parent=1 // loop_exit
      _
    %4406 = vsyncpa [#allocation3], 1
    %s4407 = scalar_lea.sflag [#allocation3], 1
    %4408 = vsyncpa %s4407, 1
    %4409 = vsyncpa [#allocation6], 1
    %s4410 = scalar_lea.sflag [#allocation6], 1
    %4411 = vsyncpa %s4410, 1
    %4412 = vsyncpa [#allocation4], 1
    %s4413 = scalar_lea.sflag [#allocation4], 1
    %4414 = vsyncpa %s4413, 1

</llo_original>
